<compile_context>
chip_gen: v7x
topology: tpu7x:2x2x1
jax: 0.10.0
libtpu: 0.0.40
codegen_flags: <defaults>
</compile_context>

<pallas_src>
import jax
import jax.numpy as jnp
from jax.experimental import pallas as pl
from jax.experimental.pallas import tpu as pltpu


def _round_up(v, m):
    return ((v + m - 1) // m) * m


def _vmem_limit_bytes():
    """Generation-aware VMEM cap: ~75% of physical, never above 100 MiB."""
    try:
        cap = pltpu.get_tpu_info().vmem_capacity_bytes
    except Exception:
        cap = 64 << 20  # conservative fallback (v7x-sized)
    return min(int(cap) * 3 // 4, 100 << 20)


# ---------------------------------------------------------------------------
# Kernel A: SAGE1 -> BN1 -> ReLU -> SAGE2 -> BN2 -> ReLU   (whole graph resident,
# single invocation, single-buffered VMEM operands)
# ---------------------------------------------------------------------------
def graph_kernel(a_ref, invdeg_ref, x_ref,
                 w1_ref, b1_ref, g1_ref, be1_ref,
                 w2_ref, b2_ref, g2_ref, be2_ref,
                 t1_ref, t2_ref):
    f32 = jnp.float32
    bf16 = jnp.bfloat16
    eps = 1e-5

    a = a_ref[...]              # [N, N]  bf16 edge counts (exact integers)
    inv_deg = invdeg_ref[...]   # [N, 1]  f32 per-row 1/max(deg,1)
    x = x_ref[...]              # [N, Cin] bf16

    # ---- SAGEConv 1 (fused projection + reassociated mean aggregation) ------
    # q = x @ [W1l | W1r];  h = inv_deg * (A_cnt @ q_l) + q_r + b1
    q = jnp.dot(x, w1_ref[...], preferred_element_type=f32)      # [N, 128]
    q_l = q[:, :64]
    q_r = q[:, 64:]
    h = (jnp.dot(a, q_l.astype(bf16), preferred_element_type=f32) * inv_deg
         + q_r + b1_ref[...])

    # ---- BatchNorm1d(64), two-pass batch stats, + ReLU -----------------------
    mu = jnp.mean(h, axis=0, keepdims=True)
    d = h - mu
    var = jnp.mean(d * d, axis=0, keepdims=True)
    h = d * jax.lax.rsqrt(var + eps) * g1_ref[...] + be1_ref[...]
    h = jnp.maximum(h, 0.0)
    t1_ref[...] = h                                              # x_temp_1 [N, 64] f32

    # ---- SAGEConv 2 (fused projection + reassociated mean aggregation) ------
    p = jnp.dot(h.astype(bf16), w2_ref[...], preferred_element_type=f32)  # [N, 64]
    p_l = p[:, :32]
    p_r = p[:, 32:]
    h2 = (jnp.dot(a, p_l.astype(bf16), preferred_element_type=f32) * inv_deg
          + p_r + b2_ref[...])

    # ---- BatchNorm1d(32), two-pass batch stats, + ReLU -----------------------
    mu2 = jnp.mean(h2, axis=0, keepdims=True)
    d2 = h2 - mu2
    var2 = jnp.mean(d2 * d2, axis=0, keepdims=True)
    h2 = d2 * jax.lax.rsqrt(var2 + eps) * g2_ref[...] + be2_ref[...]
    h2 = jnp.maximum(h2, 0.0)
    t2_ref[...] = h2.astype(t2_ref.dtype)                        # x_temp_2 [N, 32] bf16


# ---------------------------------------------------------------------------
# Kernel B: MLP classifier (32 -> 1024 -> 1024 -> C) + softmax, row-tiled
# ---------------------------------------------------------------------------
def mlp_kernel(h2_ref, w3_ref, b3_ref, w4_ref, b4_ref, w5_ref, b5_ref,
               probs_ref, logits_ref):
    f32 = jnp.float32
    bf16 = jnp.bfloat16

    h2 = h2_ref[...]                                             # [tm, 32] bf16
    # TODO(synk): Dropout treated as identity (eval mode).
    z = jnp.dot(h2, w3_ref[...], preferred_element_type=f32) + b3_ref[...]
    z = jnp.maximum(z, 0.0)
    z = jnp.dot(z.astype(bf16), w4_ref[...], preferred_element_type=f32) + b4_ref[...]
    z = jnp.maximum(z, 0.0)
    logits = jnp.dot(z.astype(bf16), w5_ref[...], preferred_element_type=f32) + b5_ref[...]
    logits_ref[...] = logits                                     # [tm, CP] lane-dense

    # softmax over classes (padded classes carry a -1e30 bias -> exp underflows to 0)
    m = jnp.max(logits, axis=1, keepdims=True)
    e = jnp.exp(logits - m)
    s = jnp.sum(e, axis=1, keepdims=True)
    probs_ref[...] = e / s                                       # exact divide


# ---------------------------------------------------------------------------
# Wrapper
# ---------------------------------------------------------------------------
def topology_extraction_forward(x, edge_index, params):
    """x: [N, Cin] f32, edge_index: [2, E] int32, params: dict of weights."""
    f32, bf16 = jnp.float32, jnp.bfloat16
    N, _ = x.shape
    E = edge_index.shape[1]
    C = params["w5"].shape[1]
    vmem_cap = _vmem_limit_bytes()

    # ---- adjacency: O(E) scatter-add of raw edge counts ----------------------
    src = edge_index[0]
    dst = edge_index[1]
    adj_cnt = jnp.zeros((N, N), f32).at[dst, src].add(1.0)        # counts, exact
    deg = jax.ops.segment_sum(jnp.ones((E,), f32), dst, num_segments=N)
    inv_deg = (1.0 / jnp.maximum(deg, 1.0)).reshape(N, 1)         # f32 post-scale
    a_cnt = adj_cnt.astype(bf16)                                  # exact for counts <= 256

    # fused projection weights (stored transposed: [in, out])
    w1 = jnp.concatenate([params["w1l"], params["w1r"]], axis=1).astype(bf16)  # [Cin, 128]
    w2 = jnp.concatenate([params["w2l"], params["w2r"]], axis=1).astype(bf16)  # [64, 64]
    x_bf = x.astype(bf16)

    # ---- Kernel A: graph stage (no grid -> single-buffered whole-resident) ----
    vmem_full = pl.BlockSpec(memory_space=pltpu.MemorySpace.VMEM)
    ka_inputs = (a_cnt, inv_deg, x_bf,
                 w1, params["b1"], params["g1"], params["be1"],
                 w2, params["b2"], params["g2"], params["be2"])
    t1, t2 = pl.pallas_call(
        graph_kernel,
        out_shape=(jax.ShapeDtypeStruct((N, 64), f32),    # x_temp_1
                   jax.ShapeDtypeStruct((N, 32), bf16)),  # x_temp_2 (bf16 handoff)
        in_specs=[vmem_full] * len(ka_inputs),
        out_specs=(vmem_full, vmem_full),
        compiler_params=pltpu.CompilerParams(vmem_limit_bytes=vmem_cap),
    )(*ka_inputs)

    # ---- Kernel B: row-tiled MLP + softmax ------------------------------------
    CP = _round_up(C, 128)                     # lane-dense class slab
    if N >= 4096:
        tm = 1024
    elif N >= 1024:
        tm = 512
    else:
        tm = _round_up(min(N, 512), 16)        # bf16-friendly sublane multiple
    Npad = _round_up(N, tm)

    t2p = jnp.pad(t2, ((0, Npad - N), (0, 0)))
    w3_bf = params["w3"].astype(bf16)
    w4_bf = params["w4"].astype(bf16)
    w5p = jnp.pad(params["w5"], ((0, 0), (0, CP - C))).astype(bf16)
    b5p = jnp.pad(params["b5"], ((0, 0), (0, CP - C)), constant_values=-1e30)

    kb_inputs = (t2p, w3_bf, params["b3"], w4_bf, params["b4"], w5p, b5p)
    kb_in_specs = [
        pl.BlockSpec((tm, 32), lambda i: (i, 0)),
        pl.BlockSpec((32, 1024), lambda i: (0, 0)),      # weights stay resident
        pl.BlockSpec((1, 1024), lambda i: (0, 0)),
        pl.BlockSpec((1024, 1024), lambda i: (0, 0)),
        pl.BlockSpec((1, 1024), lambda i: (0, 0)),
        pl.BlockSpec((1024, CP), lambda i: (0, 0)),
        pl.BlockSpec((1, CP), lambda i: (0, 0)),
    ]
    kb_out_shapes = (jax.ShapeDtypeStruct((Npad, CP), f32),   # softmax probs (padded)
                     jax.ShapeDtypeStruct((Npad, CP), f32))   # logits (padded)
    kb_out_specs = [pl.BlockSpec((tm, CP), lambda i: (i, 0)),
                    pl.BlockSpec((tm, CP), lambda i: (i, 0))]

    probs_pad, logits_pad = pl.pallas_call(
        mlp_kernel,
        out_shape=kb_out_shapes,
        grid=(Npad // tm,),
        in_specs=kb_in_specs,
        out_specs=kb_out_specs,
        compiler_params=pltpu.CompilerParams(
            dimension_semantics=("parallel",),   # dual-TC shard on v7x
            vmem_limit_bytes=vmem_cap,
        ),
    )(*kb_inputs)

    probs = probs_pad[:N, :C]
    logits = logits_pad[:N, :C]
    return probs, logits, t1, t2.astype(f32)


topology_extraction_forward = jax.jit(topology_extraction_forward)


# ---------------------------------------------------------------------------
# Deterministic parameter init (shapes from the module's __init__)
# ---------------------------------------------------------------------------
def init_params(key, in_channels, num_classes):
    ks = jax.random.split(key, 12)

    def lin(k, fan_in, fan_out):
        # weights stored transposed: [in, out] so the kernel computes X @ W
        bound = 1.0 / jnp.sqrt(jnp.float32(fan_in))
        return jax.random.uniform(k, (fan_in, fan_out), jnp.float32, -bound, bound)

    p = {}
    # SAGEConv 1: lin_l (with bias) on aggregated neighbours, lin_r (no bias) on root
    p["w1l"] = lin(ks[0], in_channels, 64)
    p["w1r"] = lin(ks[1], in_channels, 64)
    p["b1"] = jax.random.uniform(ks[2], (1, 64), jnp.float32, -0.1, 0.1)
    p["g1"] = 1.0 + 0.1 * jax.random.normal(ks[3], (1, 64), jnp.float32)
    p["be1"] = 0.1 * jax.random.normal(ks[4], (1, 64), jnp.float32)
    # SAGEConv 2
    p["w2l"] = lin(ks[5], 64, 32)
    p["w2r"] = lin(ks[6], 64, 32)
    p["b2"] = jax.random.uniform(ks[7], (1, 32), jnp.float32, -0.1, 0.1)
    p["g2"] = 1.0 + 0.1 * jax.random.normal(ks[8], (1, 32), jnp.float32)
    p["be2"] = 0.1 * jax.random.normal(ks[9], (1, 32), jnp.float32)
    # MLP classifier: 32 -> 1024 -> 1024 -> num_classes
    k10 = jax.random.split(ks[10], 3)
    k11 = jax.random.split(ks[11], 3)
    p["w3"] = lin(k10[0], 32, 1024)
    p["b3"] = jnp.zeros((1, 1024), jnp.float32)
    p["w4"] = lin(k10[1], 1024, 1024)
    p["b4"] = jnp.zeros((1, 1024), jnp.float32)
    p["w5"] = lin(k10[2], 1024, num_classes)
    p["b5"] = jax.random.uniform(k11[0], (1, num_classes), jnp.float32, -0.03, 0.03)
    return p


if __name__ == "__main__":
    key = jax.random.PRNGKey(0)
    k_x, k_e, k_p = jax.random.split(key, 3)

    N = 16            # number of graph nodes
    C_IN = 4          # in_channels
    NUM_CLASSES = 6
    E = 32            # number of edges

    x = jax.random.normal(k_x, (N, C_IN), jnp.float32)
    edge_index = jax.random.randint(k_e, (2, E), 0, N, jnp.int32)

    params = init_params(k_p, C_IN, NUM_CLASSES)

    probs, logits, x_temp_1, x_temp_2 = topology_extraction_forward(x, edge_index, params)
    jax.block_until_ready((probs, logits, x_temp_1, x_temp_2))

    assert probs.shape == (N, NUM_CLASSES)
    assert logits.shape == (N, NUM_CLASSES)
    assert x_temp_1.shape == (N, 64)
    assert x_temp_2.shape == (N, 32)
    assert bool(jnp.all(jnp.isfinite(probs)))
    assert bool(jnp.all(jnp.isfinite(logits)))
    # rows of the softmax output must sum to 1 (exact f32 divide in the kernel)
    assert jnp.allclose(jnp.sum(probs, axis=1), 1.0, atol=1e-4)

    print("KERNEL_OK")
</pallas_src>

<mosaic_0001>
module attributes {stable_mosaic.version = 11 : i64} {
  func.func private @main(%arg0: i32) attributes {dimension_semantics = [#tpu.dimension_semantics<core_parallel>], iteration_bounds = array<i64: 2>, tpu.core_type = #tpu.core_type<sc_scalar_subcore>, window_params = []} {
    return
  }
}

module attributes {stable_mosaic.version = 11 : i64} {
  func.func private @main(%arg0: i32) attributes {dimension_semantics = [#tpu.dimension_semantics<core_parallel>], iteration_bounds = array<i64: 2>, tpu.core_type = #tpu.core_type<sc_scalar_subcore>, window_params = []} {
    return
  }
}

module attributes {stable_mosaic.version = 11 : i64} {
  func.func @graph_kernel(%arg0: memref<16x16xbf16, #tpu.memory_space<vmem>>, %arg1: memref<16x1xf32, #tpu.memory_space<vmem>>, %arg2: memref<16x4xbf16, #tpu.memory_space<vmem>>, %arg3: memref<4x128xbf16, #tpu.memory_space<vmem>>, %arg4: memref<1x64xf32, #tpu.memory_space<vmem>>, %arg5: memref<1x64xf32, #tpu.memory_space<vmem>>, %arg6: memref<1x64xf32, #tpu.memory_space<vmem>>, %arg7: memref<64x64xbf16, #tpu.memory_space<vmem>>, %arg8: memref<1x32xf32, #tpu.memory_space<vmem>>, %arg9: memref<1x32xf32, #tpu.memory_space<vmem>>, %arg10: memref<1x32xf32, #tpu.memory_space<vmem>>, %arg11: memref<16x64xf32, #tpu.memory_space<vmem>>, %arg12: memref<16x32xbf16, #tpu.memory_space<vmem>>) attributes {dimension_semantics = [], scalar_prefetch = 0 : i64, scratch_operands = 0 : i64, tpu.core_type = #tpu.core_type<tc>} {
    %c0 = arith.constant 0 : index
    %c0_0 = arith.constant 0 : index
    %0 = vector.load %arg0[%c0, %c0_0] : memref<16x16xbf16, #tpu.memory_space<vmem>>, vector<16x16xbf16>
    %c0_1 = arith.constant 0 : index
    %c0_2 = arith.constant 0 : index
    %1 = vector.load %arg1[%c0_1, %c0_2] : memref<16x1xf32, #tpu.memory_space<vmem>>, vector<16x1xf32>
    %c0_3 = arith.constant 0 : index
    %c0_4 = arith.constant 0 : index
    %2 = vector.load %arg2[%c0_3, %c0_4] : memref<16x4xbf16, #tpu.memory_space<vmem>>, vector<16x4xbf16>
    %c0_5 = arith.constant 0 : index
    %c0_6 = arith.constant 0 : index
    %3 = vector.load %arg3[%c0_5, %c0_6] : memref<4x128xbf16, #tpu.memory_space<vmem>>, vector<4x128xbf16>
    %cst = arith.constant dense<0.000000e+00> : vector<16x128xf32>
    %4 = tpu.matmul %2, %3, %cst {dimension_numbers = #tpu.dot_dimension_numbers<[1], [0], [0], [1], [0, 0, 1, 1], [], []>} : vector<16x4xbf16>, vector<4x128xbf16>, vector<16x128xf32> -> vector<16x128xf32>
    %5 = vector.extract_strided_slice %4 {offsets = [0, 0], sizes = [16, 64], strides = [1, 1]} : vector<16x128xf32> to vector<16x64xf32>
    %6 = vector.extract_strided_slice %4 {offsets = [0, 64], sizes = [16, 64], strides = [1, 1]} : vector<16x128xf32> to vector<16x64xf32>
    %7 = arith.truncf %5 : vector<16x64xf32> to vector<16x64xbf16>
    %cst_7 = arith.constant dense<0.000000e+00> : vector<16x64xf32>
    %8 = tpu.matmul %0, %7, %cst_7 {dimension_numbers = #tpu.dot_dimension_numbers<[1], [0], [0], [1], [0, 0, 1, 1], [], []>} : vector<16x16xbf16>, vector<16x64xbf16>, vector<16x64xf32> -> vector<16x64xf32>
    %9 = vector.broadcast %1 : vector<16x1xf32> to vector<16x64xf32>
    %10 = arith.mulf %8, %9 : vector<16x64xf32>
    %11 = arith.addf %10, %6 : vector<16x64xf32>
    %c0_8 = arith.constant 0 : index
    %c0_9 = arith.constant 0 : index
    %12 = vector.load %arg4[%c0_8, %c0_9] : memref<1x64xf32, #tpu.memory_space<vmem>>, vector<1x64xf32>
    %13 = vector.broadcast %12 : vector<1x64xf32> to vector<16x64xf32>
    %14 = arith.addf %11, %13 : vector<16x64xf32>
    %cst_10 = arith.constant dense<0.000000e+00> : vector<64xf32>
    %15 = vector.multi_reduction <add>, %14, %cst_10 [0] : vector<16x64xf32> to vector<64xf32>
    %16 = vector.shape_cast %15 : vector<64xf32> to vector<1x64xf32>
    %cst_11 = arith.constant 1.600000e+01 : f32
    %17 = vector.broadcast %cst_11 : f32 to vector<1x64xf32>
    %18 = arith.divf %16, %17 : vector<1x64xf32>
    %19 = vector.broadcast %18 : vector<1x64xf32> to vector<16x64xf32>
    %20 = arith.subf %14, %19 : vector<16x64xf32>
    %21 = arith.mulf %20, %20 : vector<16x64xf32>
    %cst_12 = arith.constant dense<0.000000e+00> : vector<64xf32>
    %22 = vector.multi_reduction <add>, %21, %cst_12 [0] : vector<16x64xf32> to vector<64xf32>
    %23 = vector.shape_cast %22 : vector<64xf32> to vector<1x64xf32>
    %cst_13 = arith.constant 1.600000e+01 : f32
    %24 = vector.broadcast %cst_13 : f32 to vector<1x64xf32>
    %25 = arith.divf %23, %24 : vector<1x64xf32>
    %cst_14 = arith.constant 9.99999974E-6 : f32
    %26 = vector.broadcast %cst_14 : f32 to vector<1x64xf32>
    %27 = arith.addf %25, %26 : vector<1x64xf32>
    %28 = math.rsqrt %27 : vector<1x64xf32>
    %29 = vector.broadcast %28 : vector<1x64xf32> to vector<16x64xf32>
    %30 = arith.mulf %20, %29 : vector<16x64xf32>
    %c0_15 = arith.constant 0 : index
    %c0_16 = arith.constant 0 : index
    %31 = vector.load %arg5[%c0_15, %c0_16] : memref<1x64xf32, #tpu.memory_space<vmem>>, vector<1x64xf32>
    %32 = vector.broadcast %31 : vector<1x64xf32> to vector<16x64xf32>
    %33 = arith.mulf %30, %32 : vector<16x64xf32>
    %c0_17 = arith.constant 0 : index
    %c0_18 = arith.constant 0 : index
    %34 = vector.load %arg6[%c0_17, %c0_18] : memref<1x64xf32, #tpu.memory_space<vmem>>, vector<1x64xf32>
    %35 = vector.broadcast %34 : vector<1x64xf32> to vector<16x64xf32>
    %36 = arith.addf %33, %35 : vector<16x64xf32>
    %cst_19 = arith.constant 0.000000e+00 : f32
    %37 = vector.broadcast %cst_19 : f32 to vector<16x64xf32>
    %38 = arith.maximumf %36, %37 : vector<16x64xf32>
    %c0_20 = arith.constant 0 : index
    %c0_21 = arith.constant 0 : index
    %39 = vector.load %arg11[%c0_20, %c0_21] : memref<16x64xf32, #tpu.memory_space<vmem>>, vector<16x64xf32>
    tpu.vector_store %arg11[%c0_20, %c0_21], %38 {strides = array<i32>} : memref<16x64xf32, #tpu.memory_space<vmem>>, vector<16x64xf32>,
    %40 = arith.truncf %38 : vector<16x64xf32> to vector<16x64xbf16>
    %c0_22 = arith.constant 0 : index
    %c0_23 = arith.constant 0 : index
    %41 = vector.load %arg7[%c0_22, %c0_23] : memref<64x64xbf16, #tpu.memory_space<vmem>>, vector<64x64xbf16>
    %cst_24 = arith.constant dense<0.000000e+00> : vector<16x64xf32>
    %42 = tpu.matmul %40, %41, %cst_24 {dimension_numbers = #tpu.dot_dimension_numbers<[1], [0], [0], [1], [0, 0, 1, 1], [], []>} : vector<16x64xbf16>, vector<64x64xbf16>, vector<16x64xf32> -> vector<16x64xf32>
    %43 = vector.extract_strided_slice %42 {offsets = [0, 0], sizes = [16, 32], strides = [1, 1]} : vector<16x64xf32> to vector<16x32xf32>
    %44 = vector.extract_strided_slice %42 {offsets = [0, 32], sizes = [16, 32], strides = [1, 1]} : vector<16x64xf32> to vector<16x32xf32>
    %45 = arith.truncf %43 : vector<16x32xf32> to vector<16x32xbf16>
    %cst_25 = arith.constant dense<0.000000e+00> : vector<16x32xf32>
    %46 = tpu.matmul %0, %45, %cst_25 {dimension_numbers = #tpu.dot_dimension_numbers<[1], [0], [0], [1], [0, 0, 1, 1], [], []>} : vector<16x16xbf16>, vector<16x32xbf16>, vector<16x32xf32> -> vector<16x32xf32>
    %47 = vector.broadcast %1 : vector<16x1xf32> to vector<16x32xf32>
    %48 = arith.mulf %46, %47 : vector<16x32xf32>
    %49 = arith.addf %48, %44 : vector<16x32xf32>
    %c0_26 = arith.constant 0 : index
    %c0_27 = arith.constant 0 : index
    %50 = vector.load %arg8[%c0_26, %c0_27] : memref<1x32xf32, #tpu.memory_space<vmem>>, vector<1x32xf32>
    %51 = vector.broadcast %50 : vector<1x32xf32> to vector<16x32xf32>
    %52 = arith.addf %49, %51 : vector<16x32xf32>
    %cst_28 = arith.constant dense<0.000000e+00> : vector<32xf32>
    %53 = vector.multi_reduction <add>, %52, %cst_28 [0] : vector<16x32xf32> to vector<32xf32>
    %54 = vector.shape_cast %53 : vector<32xf32> to vector<1x32xf32>
    %cst_29 = arith.constant 1.600000e+01 : f32
    %55 = vector.broadcast %cst_29 : f32 to vector<1x32xf32>
    %56 = arith.divf %54, %55 : vector<1x32xf32>
    %57 = vector.broadcast %56 : vector<1x32xf32> to vector<16x32xf32>
    %58 = arith.subf %52, %57 : vector<16x32xf32>
    %59 = arith.mulf %58, %58 : vector<16x32xf32>
    %cst_30 = arith.constant dense<0.000000e+00> : vector<32xf32>
    %60 = vector.multi_reduction <add>, %59, %cst_30 [0] : vector<16x32xf32> to vector<32xf32>
    %61 = vector.shape_cast %60 : vector<32xf32> to vector<1x32xf32>
    %cst_31 = arith.constant 1.600000e+01 : f32
    %62 = vector.broadcast %cst_31 : f32 to vector<1x32xf32>
    %63 = arith.divf %61, %62 : vector<1x32xf32>
    %cst_32 = arith.constant 9.99999974E-6 : f32
    %64 = vector.broadcast %cst_32 : f32 to vector<1x32xf32>
    %65 = arith.addf %63, %64 : vector<1x32xf32>
    %66 = math.rsqrt %65 : vector<1x32xf32>
    %67 = vector.broadcast %66 : vector<1x32xf32> to vector<16x32xf32>
    %68 = arith.mulf %58, %67 : vector<16x32xf32>
    %c0_33 = arith.constant 0 : index
    %c0_34 = arith.constant 0 : index
    %69 = vector.load %arg9[%c0_33, %c0_34] : memref<1x32xf32, #tpu.memory_space<vmem>>, vector<1x32xf32>
    %70 = vector.broadcast %69 : vector<1x32xf32> to vector<16x32xf32>
    %71 = arith.mulf %68, %70 : vector<16x32xf32>
    %c0_35 = arith.constant 0 : index
    %c0_36 = arith.constant 0 : index
    %72 = vector.load %arg10[%c0_35, %c0_36] : memref<1x32xf32, #tpu.memory_space<vmem>>, vector<1x32xf32>
    %73 = vector.broadcast %72 : vector<1x32xf32> to vector<16x32xf32>
    %74 = arith.addf %71, %73 : vector<16x32xf32>
    %cst_37 = arith.constant 0.000000e+00 : f32
    %75 = vector.broadcast %cst_37 : f32 to vector<16x32xf32>
    %76 = arith.maximumf %74, %75 : vector<16x32xf32>
    %77 = arith.truncf %76 : vector<16x32xf32> to vector<16x32xbf16>
    %c0_38 = arith.constant 0 : index
    %c0_39 = arith.constant 0 : index
    %78 = vector.load %arg12[%c0_38, %c0_39] : memref<16x32xbf16, #tpu.memory_space<vmem>>, vector<16x32xbf16>
    tpu.vector_store %arg12[%c0_38, %c0_39], %77 {strides = array<i32>} : memref<16x32xbf16, #tpu.memory_space<vmem>>, vector<16x32xbf16>,
    return
  }
}

module attributes {stable_mosaic.version = 11 : i64} {
  func.func @mlp_kernel(%arg0: i32, %arg1: memref<16x32xbf16, #tpu.memory_space<vmem>>, %arg2: memref<32x1024xbf16, #tpu.memory_space<vmem>>, %arg3: memref<1x1024xf32, #tpu.memory_space<vmem>>, %arg4: memref<1024x1024xbf16, #tpu.memory_space<vmem>>, %arg5: memref<1x1024xf32, #tpu.memory_space<vmem>>, %arg6: memref<1024x128xbf16, #tpu.memory_space<vmem>>, %arg7: memref<1x128xf32, #tpu.memory_space<vmem>>, %arg8: memref<16x128xf32, #tpu.memory_space<vmem>>, %arg9: memref<16x128xf32, #tpu.memory_space<vmem>>) attributes {dimension_semantics = [#tpu.dimension_semantics<parallel>], iteration_bounds = array<i64: 1>, scalar_prefetch = 0 : i64, scratch_operands = 0 : i64, tpu.core_type = #tpu.core_type<tc>, window_params = [{transform_indices = @transform_0, window_bounds = array<i64: 16, 32>}, {pipeline_mode = #tpu.pipeline_mode<synchronous>, transform_indices = @transform_1, window_bounds = array<i64: 32, 1024>}, {pipeline_mode = #tpu.pipeline_mode<synchronous>, transform_indices = @transform_2, window_bounds = array<i64: 1, 1024>}, {pipeline_mode = #tpu.pipeline_mode<synchronous>, transform_indices = @transform_3, window_bounds = array<i64: 1024, 1024>}, {pipeline_mode = #tpu.pipeline_mode<synchronous>, transform_indices = @transform_4, window_bounds = array<i64: 1, 1024>}, {pipeline_mode = #tpu.pipeline_mode<synchronous>, transform_indices = @transform_5, window_bounds = array<i64: 1024, 128>}, {pipeline_mode = #tpu.pipeline_mode<synchronous>, transform_indices = @transform_6, window_bounds = array<i64: 1, 128>}, {transform_indices = @transform_7, window_bounds = array<i64: 16, 128>}, {transform_indices = @transform_8, window_bounds = array<i64: 16, 128>}]} {
    %c0 = arith.constant 0 : index
    %c0_0 = arith.constant 0 : index
    %0 = vector.load %arg1[%c0, %c0_0] : memref<16x32xbf16, #tpu.memory_space<vmem>>, vector<16x32xbf16>
    %c0_1 = arith.constant 0 : index
    %c0_2 = arith.constant 0 : index
    %1 = vector.load %arg2[%c0_1, %c0_2] : memref<32x1024xbf16, #tpu.memory_space<vmem>>, vector<32x1024xbf16>
    %cst = arith.constant dense<0.000000e+00> : vector<16x1024xf32>
    %2 = tpu.matmul %0, %1, %cst {dimension_numbers = #tpu.dot_dimension_numbers<[1], [0], [0], [1], [0, 0, 1, 1], [], []>} : vector<16x32xbf16>, vector<32x1024xbf16>, vector<16x1024xf32> -> vector<16x1024xf32>
    %c0_3 = arith.constant 0 : index
    %c0_4 = arith.constant 0 : index
    %3 = vector.load %arg3[%c0_3, %c0_4] : memref<1x1024xf32, #tpu.memory_space<vmem>>, vector<1x1024xf32>
    %4 = vector.broadcast %3 : vector<1x1024xf32> to vector<16x1024xf32>
    %5 = arith.addf %2, %4 : vector<16x1024xf32>
    %cst_5 = arith.constant 0.000000e+00 : f32
    %6 = vector.broadcast %cst_5 : f32 to vector<16x1024xf32>
    %7 = arith.maximumf %5, %6 : vector<16x1024xf32>
    %8 = arith.truncf %7 : vector<16x1024xf32> to vector<16x1024xbf16>
    %c0_6 = arith.constant 0 : index
    %c0_7 = arith.constant 0 : index
    %9 = vector.load %arg4[%c0_6, %c0_7] : memref<1024x1024xbf16, #tpu.memory_space<vmem>>, vector<1024x1024xbf16>
    %cst_8 = arith.constant dense<0.000000e+00> : vector<16x1024xf32>
    %10 = tpu.matmul %8, %9, %cst_8 {dimension_numbers = #tpu.dot_dimension_numbers<[1], [0], [0], [1], [0, 0, 1, 1], [], []>} : vector<16x1024xbf16>, vector<1024x1024xbf16>, vector<16x1024xf32> -> vector<16x1024xf32>
    %c0_9 = arith.constant 0 : index
    %c0_10 = arith.constant 0 : index
    %11 = vector.load %arg5[%c0_9, %c0_10] : memref<1x1024xf32, #tpu.memory_space<vmem>>, vector<1x1024xf32>
    %12 = vector.broadcast %11 : vector<1x1024xf32> to vector<16x1024xf32>
    %13 = arith.addf %10, %12 : vector<16x1024xf32>
    %cst_11 = arith.constant 0.000000e+00 : f32
    %14 = vector.broadcast %cst_11 : f32 to vector<16x1024xf32>
    %15 = arith.maximumf %13, %14 : vector<16x1024xf32>
    %16 = arith.truncf %15 : vector<16x1024xf32> to vector<16x1024xbf16>
    %c0_12 = arith.constant 0 : index
    %c0_13 = arith.constant 0 : index
    %17 = vector.load %arg6[%c0_12, %c0_13] : memref<1024x128xbf16, #tpu.memory_space<vmem>>, vector<1024x128xbf16>
    %cst_14 = arith.constant dense<0.000000e+00> : vector<16x128xf32>
    %18 = tpu.matmul %16, %17, %cst_14 {dimension_numbers = #tpu.dot_dimension_numbers<[1], [0], [0], [1], [0, 0, 1, 1], [], []>} : vector<16x1024xbf16>, vector<1024x128xbf16>, vector<16x128xf32> -> vector<16x128xf32>
    %c0_15 = arith.constant 0 : index
    %c0_16 = arith.constant 0 : index
    %19 = vector.load %arg7[%c0_15, %c0_16] : memref<1x128xf32, #tpu.memory_space<vmem>>, vector<1x128xf32>
    %20 = vector.broadcast %19 : vector<1x128xf32> to vector<16x128xf32>
    %21 = arith.addf %18, %20 : vector<16x128xf32>
    %c0_17 = arith.constant 0 : index
    %c0_18 = arith.constant 0 : index
    %22 = vector.load %arg9[%c0_17, %c0_18] : memref<16x128xf32, #tpu.memory_space<vmem>>, vector<16x128xf32>
    tpu.vector_store %arg9[%c0_17, %c0_18], %21 {strides = array<i32>} : memref<16x128xf32, #tpu.memory_space<vmem>>, vector<16x128xf32>,
    %cst_19 = arith.constant dense<0xFF800000> : vector<16xf32>
    %23 = vector.multi_reduction <maximumf>, %21, %cst_19 [1] : vector<16x128xf32> to vector<16xf32>
    %24 = vector.shape_cast %23 : vector<16xf32> to vector<16x1xf32>
    %25 = vector.broadcast %24 : vector<16x1xf32> to vector<16x128xf32>
    %26 = arith.subf %21, %25 : vector<16x128xf32>
    %27 = math.exp %26 : vector<16x128xf32>
    %cst_20 = arith.constant dense<0.000000e+00> : vector<16xf32>
    %28 = vector.multi_reduction <add>, %27, %cst_20 [1] : vector<16x128xf32> to vector<16xf32>
    %29 = vector.shape_cast %28 : vector<16xf32> to vector<16x1xf32>
    %30 = vector.broadcast %29 : vector<16x1xf32> to vector<16x128xf32>
    %31 = arith.divf %27, %30 : vector<16x128xf32>
    %c0_21 = arith.constant 0 : index
    %c0_22 = arith.constant 0 : index
    %32 = vector.load %arg8[%c0_21, %c0_22] : memref<16x128xf32, #tpu.memory_space<vmem>>, vector<16x128xf32>
    tpu.vector_store %arg8[%c0_21, %c0_22], %31 {strides = array<i32>} : memref<16x128xf32, #tpu.memory_space<vmem>>, vector<16x128xf32>,
    return
  }
  func.func @transform_0(%arg0: i32) -> (i32, i32) {
    %c0_i32 = arith.constant 0 : i32
    %c0_i32_0 = arith.constant 0 : i32
    return %arg0, %c0_i32 : i32, i32
  }
  func.func @transform_1(%arg0: i32) -> (i32, i32) {
    %c0_i32 = arith.constant 0 : i32
    %c0_i32_0 = arith.constant 0 : i32
    %c0_i32_1 = arith.constant 0 : i32
    return %c0_i32, %c0_i32_0 : i32, i32
  }
  func.func @transform_2(%arg0: i32) -> (i32, i32) {
    %c0_i32 = arith.constant 0 : i32
    %c0_i32_0 = arith.constant 0 : i32
    %c0_i32_1 = arith.constant 0 : i32
    return %c0_i32, %c0_i32_0 : i32, i32
  }
  func.func @transform_3(%arg0: i32) -> (i32, i32) {
    %c0_i32 = arith.constant 0 : i32
    %c0_i32_0 = arith.constant 0 : i32
    %c0_i32_1 = arith.constant 0 : i32
    return %c0_i32, %c0_i32_0 : i32, i32
  }
  func.func @transform_4(%arg0: i32) -> (i32, i32) {
    %c0_i32 = arith.constant 0 : i32
    %c0_i32_0 = arith.constant 0 : i32
    %c0_i32_1 = arith.constant 0 : i32
    return %c0_i32, %c0_i32_0 : i32, i32
  }
  func.func @transform_5(%arg0: i32) -> (i32, i32) {
    %c0_i32 = arith.constant 0 : i32
    %c0_i32_0 = arith.constant 0 : i32
    %c0_i32_1 = arith.constant 0 : i32
    return %c0_i32, %c0_i32_0 : i32, i32
  }
  func.func @transform_6(%arg0: i32) -> (i32, i32) {
    %c0_i32 = arith.constant 0 : i32
    %c0_i32_0 = arith.constant 0 : i32
    %c0_i32_1 = arith.constant 0 : i32
    return %c0_i32, %c0_i32_0 : i32, i32
  }
  func.func @transform_7(%arg0: i32) -> (i32, i32) {
    %c0_i32 = arith.constant 0 : i32
    %c0_i32_0 = arith.constant 0 : i32
    return %arg0, %c0_i32 : i32, i32
  }
  func.func @transform_8(%arg0: i32) -> (i32, i32) {
    %c0_i32 = arith.constant 0 : i32
    %c0_i32_0 = arith.constant 0 : i32
    return %arg0, %c0_i32 : i32, i32
  }
}

</mosaic_0001>

<llo_original>
// kernel: topology_extraction_forward.2
$region0: #{topology_extraction_forward.2}
  #allocation0 [shape = 'u32[]', space=smem, size = 0x4, offset = 0x4, fixed_abs, tag = 'smem constant byte address 0x4 - core index']
  #allocation1 [shape = 'u32[144,128]{1,0:T(1,128)}', space=vmem, size = 0x12000, scoped, tag = 'internal scratch']
  %s0 = inlined_call_operand.vmem [shape: bf16[16,16], index: 0, kind: input, shape index: {}]
  %s1 = inlined_call_operand.vmem [shape: f32[16,1], index: 1, kind: input, shape index: {}]
  %s2 = inlined_call_operand.vmem [shape: bf16[16,4], index: 2, kind: input, shape index: {}]
  %s3 = inlined_call_operand.vmem [shape: bf16[4,128], index: 3, kind: input, shape index: {}]
  %s4 = inlined_call_operand.vmem [shape: f32[1,64], index: 4, kind: input, shape index: {}]
  %s5 = inlined_call_operand.vmem [shape: f32[1,64], index: 5, kind: input, shape index: {}]
  %s6 = inlined_call_operand.vmem [shape: f32[1,64], index: 6, kind: input, shape index: {}]
  %s7 = inlined_call_operand.vmem [shape: bf16[64,64], index: 7, kind: input, shape index: {}]
  %s8 = inlined_call_operand.vmem [shape: f32[1,32], index: 8, kind: input, shape index: {}]
  %s9 = inlined_call_operand.vmem [shape: f32[1,32], index: 9, kind: input, shape index: {}]
  %s10 = inlined_call_operand.vmem [shape: f32[1,32], index: 10, kind: input, shape index: {}]
  %s11 = inlined_call_operand.hbm [shape: f32[16,64], index: 11, kind: output, shape index: {0}]
  %s12 = inlined_call_operand.vmem [shape: bf16[16,32], index: 12, kind: output, shape index: {1}]
  %13 = xla_tuple %s11, %s12
  %s14 = sld [smem:[#allocation0]]
  $region62: #{topology_extraction_forward.2} parent=0
    _
  %s16 = ssub.s32 1, %s14
  %s17 = scalar_select 0, %s16, %s14
  $region1: #{topology_extraction_forward.2} parent=0
    #allocation2 [shape = 'u8[8192]{0}', space=vmem, size = 0x2000, scoped, tag = 'output window, operand 0, single buffered']
    #allocation3 [shape = 's32[1]{0}', space=sflag, size = 0x4, scoped, tag = 'scoped memory for topology_extraction_forward.2']
    %18 = vsyncpa [#allocation3], 0
    // Predicated region
    $region2: #{topology_extraction_forward.2} parent=1 // pred_check
      _
    $region3: #{topology_extraction_forward.2} parent=1 // pred_check_branch
      %20 = sbr.rel (0) target = $region5
    $region4: #{topology_extraction_forward.2} parent=1 // pred_region
      _
    $region5: #{topology_extraction_forward.2} parent=1 // pred_fallthru
      _
    // Predicated region
    $region6: #{topology_extraction_forward.2} parent=1 // pred_check
      _
    $region7: #{topology_extraction_forward.2} parent=1 // pred_check_branch
      %22 = sbr.rel (0) target = $region9
    $region8: #{topology_extraction_forward.2} parent=1 // pred_region
      _
    $region9: #{topology_extraction_forward.2} parent=1 // pred_fallthru
      _
    // Predicated region
    $region10: #{topology_extraction_forward.2} parent=1 // pred_check
      _
    $region11: #{topology_extraction_forward.2} parent=1 // pred_check_branch
      %24 = sbr.rel (0) target = $region13
    $region12: #{topology_extraction_forward.2} parent=1 // pred_region
      _
    $region13: #{topology_extraction_forward.2} parent=1 // pred_fallthru
      _
    // Predicated region
    $region14: #{topology_extraction_forward.2} parent=1 // pred_check
      _
    $region15: #{topology_extraction_forward.2} parent=1 // pred_check_branch
      %26 = sbr.rel (0) target = $region17
    $region16: #{topology_extraction_forward.2} parent=1 // pred_region
      _
    $region17: #{topology_extraction_forward.2} parent=1 // pred_fallthru
      _
    // Predicated region
    $region18: #{topology_extraction_forward.2} parent=1 // pred_check
      _
    $region19: #{topology_extraction_forward.2} parent=1 // pred_check_branch
      %28 = sbr.rel (0) target = $region21
    $region20: #{topology_extraction_forward.2} parent=1 // pred_region
      _
    $region21: #{topology_extraction_forward.2} parent=1 // pred_fallthru
      _
    // Predicated region
    $region22: #{topology_extraction_forward.2} parent=1 // pred_check
      _
    $region23: #{topology_extraction_forward.2} parent=1 // pred_check_branch
      %30 = sbr.rel (0) target = $region25
    $region24: #{topology_extraction_forward.2} parent=1 // pred_region
      _
    $region25: #{topology_extraction_forward.2} parent=1 // pred_fallthru
      _
    // Predicated region
    $region26: #{topology_extraction_forward.2} parent=1 // pred_check
      _
    $region27: #{topology_extraction_forward.2} parent=1 // pred_check_branch
      %32 = sbr.rel (0) target = $region29
    $region28: #{topology_extraction_forward.2} parent=1 // pred_region
      _
    $region29: #{topology_extraction_forward.2} parent=1 // pred_fallthru
      _
    // Predicated region
    $region30: #{topology_extraction_forward.2} parent=1 // pred_check
      _
    $region31: #{topology_extraction_forward.2} parent=1 // pred_check_branch
      %34 = sbr.rel (0) target = $region33
    $region32: #{topology_extraction_forward.2} parent=1 // pred_region
      _
    $region33: #{topology_extraction_forward.2} parent=1 // pred_fallthru
      _
    // Predicated region
    $region34: #{topology_extraction_forward.2} parent=1 // pred_check
      _
    $region35: #{topology_extraction_forward.2} parent=1 // pred_check_branch
      %36 = sbr.rel (0) target = $region37
    $region36: #{topology_extraction_forward.2} parent=1 // pred_region
      _
    $region37: #{topology_extraction_forward.2} parent=1 // pred_fallthru
      _
    // Predicated region
    $region38: #{topology_extraction_forward.2} parent=1 // pred_check
      _
    $region39: #{topology_extraction_forward.2} parent=1 // pred_check_branch
      %38 = sbr.rel (0) target = $region41
    $region40: #{topology_extraction_forward.2} parent=1 // pred_region
      _
    $region41: #{topology_extraction_forward.2} parent=1 // pred_fallthru
      _
    // Predicated region
    $region42: #{topology_extraction_forward.2} parent=1 // pred_check
      _
    $region43: #{topology_extraction_forward.2} parent=1 // pred_check_branch
      %40 = sbr.rel (0) target = $region45
    $region44: #{topology_extraction_forward.2} parent=1 // pred_region
      _
    $region45: #{topology_extraction_forward.2} parent=1 // pred_fallthru
      _
    %v42 = vld [vmem:[%s0] sm:$0xf]
    %v43 = vld [vmem:[%s0 + $0x4] sm:$0xf]
    %v44 = vld [vmem:[%s1] sm:$0xff]
    %v45 = vld [vmem:[%s1 + $0x8] sm:$0xff]
    %v46 = vld [vmem:[%s2] sm:$0xf]
    %v47 = vld [vmem:[%s2 + $0x4] sm:$0xf]
    %v48 = vld [vmem:[%s3] sm:$0x3]
    %v51 = vunpack.c.l.b16 %v46
    %v52 = vunpack.c.l.b16 %v47
    %v53 = vpack.c.b16 %v52, %v51
    %vm54 = vcmask 31744
    %v56 = vsel %vm54, %v53, 0
    %vm58 = vcmask 1041408
    %v60 = vsel %vm58, %v48, 0
    %62 = vmatprep.subr.bf16.mxu0 0
    %63 = vmatpush1.bf16.msra.mxu0 %v60
    %64 = vmatprep.subr.bf16.mxu0 0
    %65 = vmatpush1.bf16.msra.mxu0 0
    %66 = vmatprep.subr.bf16.mxu0 0
    %67 = vmatpush1.bf16.msra.mxu0 0
    %68 = vmatprep.subr.bf16.mxu0 0
    %69 = vmatpush1.bf16.msra.mxu0 0
    %70 = vmatprep.subr.bf16.mxu0 0
    %71 = vmatpush1.bf16.msra.mxu0 0
    %72 = vmatprep.subr.bf16.mxu0 0
    %73 = vmatpush1.bf16.msra.mxu0 0
    %74 = vmatprep.subr.bf16.mxu0 0
    %75 = vmatpush1.bf16.msra.mxu0 0
    %76 = vmatprep.subr.bf16.mxu0 0
    %77 = vmatpush1.bf16.msra.mxu0 0
    %78 = vmatprep.subr.bf16.mxu0 0
    %79 = vmatpush1.bf16.msra.mxu0 0
    %80 = vmatprep.subr.bf16.mxu0 0
    %81 = vmatpush1.bf16.msra.mxu0 0
    %82 = vmatprep.subr.bf16.mxu0 0
    %83 = vmatpush1.bf16.msra.mxu0 0
    %84 = vmatprep.subr.bf16.mxu0 0
    %85 = vmatpush1.bf16.msra.mxu0 0
    %86 = vmatprep.subr.bf16.mxu0 0
    %87 = vmatpush1.bf16.msra.mxu0 0
    %88 = vmatprep.subr.bf16.mxu0 0
    %89 = vmatpush1.bf16.msra.mxu0 0
    %90 = vmatprep.subr.bf16.mxu0 0
    %91 = vmatpush1.bf16.msra.mxu0 0
    %92 = vmatprep.subr.bf16.mxu0 0
    %93 = vmatpush1.bf16.msra.mxu0 0
    %94 = vmatprep.mubr.bf16.mxu0 0
    %95 = vmatmul.mubr.bf16.gmra.mrb[0].mxu0 %v56
    %v96 = vpop.f32.mrb[0].mxu0
    %v97 = vadd.f32 0.0, %v96
    %v98 = vpop.f32.mrb[0].mxu0
    %v99 = vpop.f32.mrb[0].mxu0
    %v100 = vadd.f32 0.0, %v99
    %v101 = vpop.f32.mrb[0].mxu0
    %102 = vdwg.mxu0
    %v103 = vpack.c.bf16 %v100, %v97
    %v106 = vunpack.c.l.b16 %v42
    %v107 = vunpack.c.l.b16 %v43
    %v108 = vpack.c.b16 %v107, %v106
    %vm109 = vcmask 130048
    %v111 = vsel %vm109, %v108, 0
    %113 = vmatprep.subr.bf16.mxu0 0
    %114 = vmatpush1.bf16.msra.mxu0 %v103
    %115 = vmatprep.subr.bf16.mxu0 0
    %116 = vmatpush1.bf16.msra.mxu0 0
    %117 = vmatprep.subr.bf16.mxu0 0
    %118 = vmatpush1.bf16.msra.mxu0 0
    %119 = vmatprep.subr.bf16.mxu0 0
    %120 = vmatpush1.bf16.msra.mxu0 0
    %121 = vmatprep.subr.bf16.mxu0 0
    %122 = vmatpush1.bf16.msra.mxu0 0
    %123 = vmatprep.subr.bf16.mxu0 0
    %124 = vmatpush1.bf16.msra.mxu0 0
    %125 = vmatprep.subr.bf16.mxu0 0
    %126 = vmatpush1.bf16.msra.mxu0 0
    %127 = vmatprep.subr.bf16.mxu0 0
    %128 = vmatpush1.bf16.msra.mxu0 0
    %129 = vmatprep.subr.bf16.mxu0 0
    %130 = vmatpush1.bf16.msra.mxu0 0
    %131 = vmatprep.subr.bf16.mxu0 0
    %132 = vmatpush1.bf16.msra.mxu0 0
    %133 = vmatprep.subr.bf16.mxu0 0
    %134 = vmatpush1.bf16.msra.mxu0 0
    %135 = vmatprep.subr.bf16.mxu0 0
    %136 = vmatpush1.bf16.msra.mxu0 0
    %137 = vmatprep.subr.bf16.mxu0 0
    %138 = vmatpush1.bf16.msra.mxu0 0
    %139 = vmatprep.subr.bf16.mxu0 0
    %140 = vmatpush1.bf16.msra.mxu0 0
    %141 = vmatprep.subr.bf16.mxu0 0
    %142 = vmatpush1.bf16.msra.mxu0 0
    %143 = vmatprep.subr.bf16.mxu0 0
    %144 = vmatpush1.bf16.msra.mxu0 0
    %145 = vmatprep.mubr.bf16.mxu0 0
    %146 = vmatmul.mubr.bf16.gmra.mrb[0].mxu0 %v111
    %v147 = vpop.f32.mrb[0].mxu0
    %v148 = vadd.f32 0.0, %v147
    %v149 = vpop.f32.mrb[0].mxu0
    %v150 = vpop.f32.mrb[0].mxu0
    %v151 = vadd.f32 0.0, %v150
    %v152 = vpop.f32.mrb[0].mxu0
    %153 = vdwg.mxu0
    %155 = vset.pattern.permute.xlu0 0
    %156 = vperm.xlu0 %155, %v44
    %v157 = vpop.permute.xlu0 %156
    %160 = vset.pattern.permute.xlu0 0
    %161 = vperm.xlu0 %160, %v45
    %v162 = vpop.permute.xlu0 %161
    %v164 = vmul.f32 %v148, %v157
    %v165 = vmul.f32 %v151, %v162
    %168 = vrot.lane.b32.xlu0 %v97, 64
    %v169 = vpop.permute.xlu0 %168
    %170 = vrot.lane.b32.xlu0 %v100, 64
    %v171 = vpop.permute.xlu0 %170
    %v174 = vadd.f32 %v164, %v169
    %v175 = vadd.f32 %v165, %v171
    %v176 = vld [vmem:[%s4] sm:$0x1]
    %v178 = vlaneseq
    %v179 = vshrl.u32 %v178, 7
    %v180 = vsub.s32 0, %v179
    %v181 = vrot.slane %v176, %v180
    %v183 = vadd.f32 %v174, %v181
    %v184 = vadd.f32 %v175, %v181
    %vm185 = vcmask 523264
    %v186 = vsel %vm185, %v183, 0.0
    %v187 = vsel %vm185, %v184, 0.0
    %v188 = vadd.f32 %v186, %v187
    %v189 = vrot.slane %v188, 4
    %v190 = vadd.f32 %v188, %v189
    %v191 = vrot.slane %v190, 2
    %v192 = vadd.f32 %v190, %v191
    %v193 = vrot.slane %v192, 1
    %v194 = vadd.f32 %v192, %v193
    %v195 = vrcp.pop 16.0
    %v196 = vmul.f32 %v194, %v195
    %v197 = vsub.f32 %v183, %v196
    %v198 = vsub.f32 %v184, %v196
    %v199 = vmul.f32 %v197, %v197
    %v200 = vmul.f32 %v198, %v198
    %v201 = vsel %vm185, %v199, 0.0
    %v202 = vsel %vm185, %v200, 0.0
    %v203 = vadd.f32 %v201, %v202
    %v204 = vrot.slane %v203, 4
    %v205 = vadd.f32 %v203, %v204
    %v206 = vrot.slane %v205, 2
    %v207 = vadd.f32 %v205, %v206
    %v208 = vrot.slane %v207, 1
    %v209 = vadd.f32 %v207, %v208
    %v210 = vmul.f32 %v209, %v195
    %v211 = vadd.f32 %v210, 1e-05
    %v212 = vrsqrt.pop %v211
    %v213 = vmul.f32 %v197, %v212
    %v214 = vmul.f32 %v198, %v212
    %v215 = vld [vmem:[%s5] sm:$0x1]
    %v217 = vlaneseq
    %v218 = vshrl.u32 %v217, 7
    %v219 = vsub.s32 0, %v218
    %v220 = vrot.slane %v215, %v219
    %v222 = vmul.f32 %v213, %v220
    %v223 = vmul.f32 %v214, %v220
    %v224 = vld [vmem:[%s6] sm:$0x1]
    %v226 = vlaneseq
    %v227 = vshrl.u32 %v226, 7
    %v228 = vsub.s32 0, %v227
    %v229 = vrot.slane %v224, %v228
    %v231 = vadd.f32 %v222, %v229
    %v232 = vadd.f32 %v223, %v229
    %v233 = vmax.f32 %v231, 0.0
    %v234 = vmax.f32 %v232, 0.0
    %235 = vst.msk [vmem:[#allocation2] sm:$0xff] %vm185, %v233
    %236 = vst.msk [vmem:[#allocation2 + $0x8] sm:$0xff] %vm185, %v234
    %v237 = vpack.c.bf16 %v234, %v233
    %v238 = vld [vmem:[%s7] sm:$0xf]
    %v239 = vld [vmem:[%s7 + $0x4] sm:$0xf]
    %v240 = vld [vmem:[%s7 + $0x8] sm:$0xf]
    %v241 = vld [vmem:[%s7 + $0xc] sm:$0xf]
    %v242 = vld [vmem:[%s7 + $0x10] sm:$0xf]
    %v243 = vld [vmem:[%s7 + $0x14] sm:$0xf]
    %v244 = vld [vmem:[%s7 + $0x18] sm:$0xf]
    %v245 = vld [vmem:[%s7 + $0x1c] sm:$0xf]
    %v254 = vunpack.c.l.b16 %v238
    %v255 = vunpack.c.l.b16 %v239
    %v256 = vunpack.c.l.b16 %v240
    %v257 = vunpack.c.l.b16 %v241
    %v258 = vunpack.c.l.b16 %v242
    %v259 = vunpack.c.l.b16 %v243
    %v260 = vunpack.c.l.b16 %v244
    %v261 = vunpack.c.l.b16 %v245
    %v262 = vpack.c.b16 %v255, %v254
    %v263 = vpack.c.b16 %v257, %v256
    %v264 = vpack.c.b16 %v259, %v258
    %v265 = vpack.c.b16 %v261, %v260
    %v271 = vsel %vm185, %v237, 0
    %273 = vmatprep.subr.bf16.mxu0 0
    %274 = vmatpush1.bf16.msra.mxu0 %v262
    %275 = vmatprep.subr.bf16.mxu0 0
    %276 = vmatpush1.bf16.msra.mxu0 %v263
    %277 = vmatprep.subr.bf16.mxu0 0
    %278 = vmatpush1.bf16.msra.mxu0 %v264
    %279 = vmatprep.subr.bf16.mxu0 0
    %280 = vmatpush1.bf16.msra.mxu0 %v265
    %281 = vmatprep.subr.bf16.mxu0 0
    %282 = vmatpush1.bf16.msra.mxu0 0
    %283 = vmatprep.subr.bf16.mxu0 0
    %284 = vmatpush1.bf16.msra.mxu0 0
    %285 = vmatprep.subr.bf16.mxu0 0
    %286 = vmatpush1.bf16.msra.mxu0 0
    %287 = vmatprep.subr.bf16.mxu0 0
    %288 = vmatpush1.bf16.msra.mxu0 0
    %289 = vmatprep.subr.bf16.mxu0 0
    %290 = vmatpush1.bf16.msra.mxu0 0
    %291 = vmatprep.subr.bf16.mxu0 0
    %292 = vmatpush1.bf16.msra.mxu0 0
    %293 = vmatprep.subr.bf16.mxu0 0
    %294 = vmatpush1.bf16.msra.mxu0 0
    %295 = vmatprep.subr.bf16.mxu0 0
    %296 = vmatpush1.bf16.msra.mxu0 0
    %297 = vmatprep.subr.bf16.mxu0 0
    %298 = vmatpush1.bf16.msra.mxu0 0
    %299 = vmatprep.subr.bf16.mxu0 0
    %300 = vmatpush1.bf16.msra.mxu0 0
    %301 = vmatprep.subr.bf16.mxu0 0
    %302 = vmatpush1.bf16.msra.mxu0 0
    %303 = vmatprep.subr.bf16.mxu0 0
    %304 = vmatpush1.bf16.msra.mxu0 0
    %305 = vmatprep.mubr.bf16.mxu0 0
    %306 = vmatmul.mubr.bf16.gmra.mrb[0].mxu0 %v271
    %v307 = vpop.f32.mrb[0].mxu0
    %v308 = vadd.f32 0.0, %v307
    %v309 = vpop.f32.mrb[0].mxu0
    %v310 = vpop.f32.mrb[0].mxu0
    %v311 = vadd.f32 0.0, %v310
    %v312 = vpop.f32.mrb[0].mxu0
    %313 = vdwg.mxu0
    %v314 = vpack.c.bf16 %v311, %v308
    %315 = vmatprep.subr.bf16.mxu0 0
    %316 = vmatpush1.bf16.msra.mxu0 %v314
    %317 = vmatprep.subr.bf16.mxu0 0
    %318 = vmatpush1.bf16.msra.mxu0 0
    %319 = vmatprep.subr.bf16.mxu0 0
    %320 = vmatpush1.bf16.msra.mxu0 0
    %321 = vmatprep.subr.bf16.mxu0 0
    %322 = vmatpush1.bf16.msra.mxu0 0
    %323 = vmatprep.subr.bf16.mxu0 0
    %324 = vmatpush1.bf16.msra.mxu0 0
    %325 = vmatprep.subr.bf16.mxu0 0
    %326 = vmatpush1.bf16.msra.mxu0 0
    %327 = vmatprep.subr.bf16.mxu0 0
    %328 = vmatpush1.bf16.msra.mxu0 0
    %329 = vmatprep.subr.bf16.mxu0 0
    %330 = vmatpush1.bf16.msra.mxu0 0
    %331 = vmatprep.subr.bf16.mxu0 0
    %332 = vmatpush1.bf16.msra.mxu0 0
    %333 = vmatprep.subr.bf16.mxu0 0
    %334 = vmatpush1.bf16.msra.mxu0 0
    %335 = vmatprep.subr.bf16.mxu0 0
    %336 = vmatpush1.bf16.msra.mxu0 0
    %337 = vmatprep.subr.bf16.mxu0 0
    %338 = vmatpush1.bf16.msra.mxu0 0
    %339 = vmatprep.subr.bf16.mxu0 0
    %340 = vmatpush1.bf16.msra.mxu0 0
    %341 = vmatprep.subr.bf16.mxu0 0
    %342 = vmatpush1.bf16.msra.mxu0 0
    %343 = vmatprep.subr.bf16.mxu0 0
    %344 = vmatpush1.bf16.msra.mxu0 0
    %345 = vmatprep.subr.bf16.mxu0 0
    %346 = vmatpush1.bf16.msra.mxu0 0
    %347 = vmatprep.mubr.bf16.mxu0 0
    %348 = vmatmul.mubr.bf16.gmra.mrb[0].mxu0 %v111
    %v349 = vpop.f32.mrb[0].mxu0
    %v350 = vadd.f32 0.0, %v349
    %v351 = vpop.f32.mrb[0].mxu0
    %v352 = vpop.f32.mrb[0].mxu0
    %v353 = vadd.f32 0.0, %v352
    %v354 = vpop.f32.mrb[0].mxu0
    %355 = vdwg.mxu0
    %v356 = vmul.f32 %v350, %v157
    %v357 = vmul.f32 %v353, %v162
    %360 = vrot.lane.b32.xlu0 %v308, 96
    %v361 = vpop.permute.xlu0 %360
    %362 = vrot.lane.b32.xlu0 %v311, 96
    %v363 = vpop.permute.xlu0 %362
    %v366 = vadd.f32 %v356, %v361
    %v367 = vadd.f32 %v357, %v363
    %v368 = vld [vmem:[%s8] sm:$0x1]
    %v370 = vlaneseq
    %v371 = vshrl.u32 %v370, 7
    %v372 = vsub.s32 0, %v371
    %v373 = vrot.slane %v368, %v372
    %v375 = vadd.f32 %v366, %v373
    %v376 = vadd.f32 %v367, %v373
    %vm377 = vcmask 261120
    %v378 = vsel %vm377, %v375, 0.0
    %v379 = vsel %vm377, %v376, 0.0
    %v380 = vadd.f32 %v378, %v379
    %v381 = vrot.slane %v380, 4
    %v382 = vadd.f32 %v380, %v381
    %v383 = vrot.slane %v382, 2
    %v384 = vadd.f32 %v382, %v383
    %v385 = vrot.slane %v384, 1
    %v386 = vadd.f32 %v384, %v385
    %v387 = vmul.f32 %v386, %v195
    %v388 = vsub.f32 %v375, %v387
    %v389 = vsub.f32 %v376, %v387
    %v390 = vmul.f32 %v388, %v388
    %v391 = vmul.f32 %v389, %v389
    %v392 = vsel %vm377, %v390, 0.0
    %v393 = vsel %vm377, %v391, 0.0
    %v394 = vadd.f32 %v392, %v393
    %v395 = vrot.slane %v394, 4
    %v396 = vadd.f32 %v394, %v395
    %v397 = vrot.slane %v396, 2
    %v398 = vadd.f32 %v396, %v397
    %v399 = vrot.slane %v398, 1
    %v400 = vadd.f32 %v398, %v399
    %v401 = vmul.f32 %v400, %v195
    %v402 = vadd.f32 %v401, 1e-05
    %v403 = vrsqrt.pop %v402
    %v404 = vmul.f32 %v388, %v403
    %v405 = vmul.f32 %v389, %v403
    %v406 = vld [vmem:[%s9] sm:$0x1]
    %v408 = vlaneseq
    %v409 = vshrl.u32 %v408, 7
    %v410 = vsub.s32 0, %v409
    %v411 = vrot.slane %v406, %v410
    %v413 = vmul.f32 %v404, %v411
    %v414 = vmul.f32 %v405, %v411
    %v415 = vld [vmem:[%s10] sm:$0x1]
    %v417 = vlaneseq
    %v418 = vshrl.u32 %v417, 7
    %v419 = vsub.s32 0, %v418
    %v420 = vrot.slane %v415, %v419
    %v422 = vadd.f32 %v413, %v420
    %v423 = vadd.f32 %v414, %v420
    %v424 = vmax.f32 %v422, 0.0
    %v425 = vmax.f32 %v423, 0.0
    %v426 = vpack.c.bf16 %v425, %v424
    %v428 = vunpack.c.l.b16 %v426
    %v429 = vunpack.c.h.b16 %v426
    %v430 = vpack.c.b16 %v428, %v428
    %v431 = vpack.c.b16 %v429, %v429
    %vm434 = vcmask 257024
    %435 = vst.msk [vmem:[%s12] sm:$0xf] %vm434, %v430
    %436 = vst.msk [vmem:[%s12 + $0x4] sm:$0xf] %vm434, %v431
    // Predicated region
    $region46: #{topology_extraction_forward.2} parent=1 // pred_check
      _
    $region47: #{topology_extraction_forward.2} parent=1 // pred_check_branch
      %438 = sbr.rel (0) target = $region49
    $region48: #{topology_extraction_forward.2} parent=1 // pred_region
      %s440 = ssub.s32 256, 256
      %441 = vsyncadd [#allocation3], %s440
      %s442 = sshll.u32 [#allocation2], 4
      %s443 = int_to_ptr.vmem [resolvable:$true] %s442
      %448 = dma.vmem_to_hbm [thread:$0]  %s443, 256, %s11, [#allocation3], 128, 128, 8
    $region49: #{topology_extraction_forward.2} parent=1 // pred_fallthru
      _
    // Predicated region
    $region50: #{topology_extraction_forward.2} parent=1 // pred_check
      _
    $region51: #{topology_extraction_forward.2} parent=1 // pred_check_branch
      %450 = sbr.rel (0) target = $region53
    $region52: #{topology_extraction_forward.2} parent=1 // pred_region
      _
    $region53: #{topology_extraction_forward.2} parent=1 // pred_fallthru
      _
    // Predicated region
    $region54: #{topology_extraction_forward.2} parent=1 // pred_check
      _
    $region55: #{topology_extraction_forward.2} parent=1 // pred_check_branch
      %452 = sbr.rel (0) target = $region57
    $region56: #{topology_extraction_forward.2} parent=1 // pred_region
      %453 = dma.done [#allocation3], 256
    $region57: #{topology_extraction_forward.2} parent=1 // pred_fallthru
      _
    // Predicated region
    $region58: #{topology_extraction_forward.2} parent=1 // pred_check
      _
    $region59: #{topology_extraction_forward.2} parent=1 // pred_check_branch
      %455 = sbr.rel (0) target = $region61
    $region60: #{topology_extraction_forward.2} parent=1 // pred_region
      _
    $region61: #{topology_extraction_forward.2} parent=1 // pred_fallthru
      _
    %456 = vsyncpa [#allocation3], 1

// kernel: topology_extraction_forward.3
$region0: #{topology_extraction_forward.3}
  #allocation0 [shape = 'u32[]', space=smem, size = 0x4, offset = 0x4, fixed_abs, tag = 'smem constant byte address 0x4 - core index']
  #allocation1 [shape = 'u32[144,128]{1,0:T(1,128)}', space=vmem, size = 0x12000, scoped, tag = 'internal scratch']
  %s0 = inlined_call_operand.vmem [shape: bf16[16,32], index: 0, kind: input, shape index: {}]
  %s1 = inlined_call_operand.vmem [shape: bf16[32,1024], index: 1, kind: input, shape index: {}]
  %s2 = inlined_call_operand.vmem [shape: f32[1,1024], index: 2, kind: input, shape index: {}]
  %s3 = inlined_call_operand.vmem [shape: bf16[1024,1024], index: 3, kind: input, shape index: {}]
  %s4 = inlined_call_operand.vmem [shape: f32[1,1024], index: 4, kind: input, shape index: {}]
  %s5 = inlined_call_operand.vmem [shape: bf16[1024,128], index: 5, kind: input, shape index: {}]
  %s6 = inlined_call_operand.vmem [shape: f32[1,128], index: 6, kind: input, shape index: {}]
  %s7 = inlined_call_operand.vmem [shape: f32[16,128], index: 7, kind: output, shape index: {0}]
  %s8 = inlined_call_operand.vmem [shape: f32[16,128], index: 8, kind: output, shape index: {1}]
  %9 = xla_tuple %s7, %s8
  %s10 = sld [smem:[#allocation0]]
  $region46: #{topology_extraction_forward.3} parent=0
    _
  %s12 = ssub.s32 1, %s10
  %s13 = scalar_select 0, %s12, %s10
  // Predicated region
  $region2: #{topology_extraction_forward.3} parent=0 // pred_check
    _
  $region3: #{topology_extraction_forward.3} parent=0 // pred_check_branch
    %15 = sbr.rel (0) target = $region5
  $region4: #{topology_extraction_forward.3} parent=0 // pred_region
    _
  $region5: #{topology_extraction_forward.3} parent=0 // pred_fallthru
    _
  // Predicated region
  $region6: #{topology_extraction_forward.3} parent=0 // pred_check
    _
  $region7: #{topology_extraction_forward.3} parent=0 // pred_check_branch
    %17 = sbr.rel (0) target = $region9
  $region8: #{topology_extraction_forward.3} parent=0 // pred_region
    _
  $region9: #{topology_extraction_forward.3} parent=0 // pred_fallthru
    _
  // Predicated region
  $region10: #{topology_extraction_forward.3} parent=0 // pred_check
    _
  $region11: #{topology_extraction_forward.3} parent=0 // pred_check_branch
    %19 = sbr.rel (0) target = $region13
  $region12: #{topology_extraction_forward.3} parent=0 // pred_region
    _
  $region13: #{topology_extraction_forward.3} parent=0 // pred_fallthru
    _
  // Predicated region
  $region14: #{topology_extraction_forward.3} parent=0 // pred_check
    _
  $region15: #{topology_extraction_forward.3} parent=0 // pred_check_branch
    %21 = sbr.rel (0) target = $region17
  $region16: #{topology_extraction_forward.3} parent=0 // pred_region
    _
  $region17: #{topology_extraction_forward.3} parent=0 // pred_fallthru
    _
  // Predicated region
  $region18: #{topology_extraction_forward.3} parent=0 // pred_check
    _
  $region19: #{topology_extraction_forward.3} parent=0 // pred_check_branch
    %23 = sbr.rel (0) target = $region21
  $region20: #{topology_extraction_forward.3} parent=0 // pred_region
    _
  $region21: #{topology_extraction_forward.3} parent=0 // pred_fallthru
    _
  // Predicated region
  $region22: #{topology_extraction_forward.3} parent=0 // pred_check
    _
  $region23: #{topology_extraction_forward.3} parent=0 // pred_check_branch
    %25 = sbr.rel (0) target = $region25
  $region24: #{topology_extraction_forward.3} parent=0 // pred_region
    _
  $region25: #{topology_extraction_forward.3} parent=0 // pred_fallthru
    _
  // Predicated region
  $region26: #{topology_extraction_forward.3} parent=0 // pred_check
    _
  $region27: #{topology_extraction_forward.3} parent=0 // pred_check_branch
    %27 = sbr.rel (0) target = $region29
  $region28: #{topology_extraction_forward.3} parent=0 // pred_region
    _
  $region29: #{topology_extraction_forward.3} parent=0 // pred_fallthru
    _
  %v29 = vld [vmem:[%s0] sm:$0xf]
  %v30 = vld [vmem:[%s0 + $0x4] sm:$0xf]
  %v31 = vld [vmem:[%s1] sm:$0xff]
  %v32 = vld [vmem:[%s1 + $0x8] sm:$0xff]
  %v33 = vld [vmem:[%s1 + $0x10] sm:$0xff]
  %v34 = vld [vmem:[%s1 + $0x18] sm:$0xff]
  %v35 = vld [vmem:[%s1 + $0x20] sm:$0xff]
  %v36 = vld [vmem:[%s1 + $0x28] sm:$0xff]
  %v37 = vld [vmem:[%s1 + $0x30] sm:$0xff]
  %v38 = vld [vmem:[%s1 + $0x38] sm:$0xff]
  %v39 = vld [vmem:[%s1 + $0x40] sm:$0xff]
  %v40 = vld [vmem:[%s1 + $0x48] sm:$0xff]
  %v41 = vld [vmem:[%s1 + $0x50] sm:$0xff]
  %v42 = vld [vmem:[%s1 + $0x58] sm:$0xff]
  %v43 = vld [vmem:[%s1 + $0x60] sm:$0xff]
  %v44 = vld [vmem:[%s1 + $0x68] sm:$0xff]
  %v45 = vld [vmem:[%s1 + $0x70] sm:$0xff]
  %v46 = vld [vmem:[%s1 + $0x78] sm:$0xff]
  %v47 = vld [vmem:[%s2] sm:$0xff]
  %v49 = vlaneseq
  %v50 = vshrl.u32 %v49, 7
  %v51 = vsub.s32 0, %v50
  %v52 = vrot.slane %v47, %v51
  %v53 = vlaneseq
  %v54 = vshrl.u32 %v53, 7
  %v55 = vsub.s32 1, %v54
  %v56 = vrot.slane %v47, %v55
  %v57 = vlaneseq
  %v58 = vshrl.u32 %v57, 7
  %v59 = vsub.s32 2, %v58
  %v60 = vrot.slane %v47, %v59
  %v61 = vlaneseq
  %v62 = vshrl.u32 %v61, 7
  %v63 = vsub.s32 3, %v62
  %v64 = vrot.slane %v47, %v63
  %v65 = vlaneseq
  %v66 = vshrl.u32 %v65, 7
  %v67 = vsub.s32 4, %v66
  %v68 = vrot.slane %v47, %v67
  %v69 = vlaneseq
  %v70 = vshrl.u32 %v69, 7
  %v71 = vsub.s32 5, %v70
  %v72 = vrot.slane %v47, %v71
  %v73 = vlaneseq
  %v74 = vshrl.u32 %v73, 7
  %v75 = vsub.s32 6, %v74
  %v76 = vrot.slane %v47, %v75
  %v77 = vlaneseq
  %v78 = vshrl.u32 %v77, 7
  %v79 = vsub.s32 7, %v78
  %v80 = vrot.slane %v47, %v79
  %v91 = vunpack.c.l.b16 %v29
  %v92 = vunpack.c.l.b16 %v30
  %v93 = vpack.c.b16 %v92, %v91
  %v110 = vunpack.c.l.b16 %v31
  %v111 = vunpack.c.h.b16 %v31
  %v112 = vunpack.c.l.b16 %v32
  %v113 = vunpack.c.h.b16 %v32
  %v114 = vunpack.c.l.b16 %v33
  %v115 = vunpack.c.h.b16 %v33
  %v116 = vunpack.c.l.b16 %v34
  %v117 = vunpack.c.h.b16 %v34
  %v118 = vunpack.c.l.b16 %v35
  %v119 = vunpack.c.h.b16 %v35
  %v120 = vunpack.c.l.b16 %v36
  %v121 = vunpack.c.h.b16 %v36
  %v122 = vunpack.c.l.b16 %v37
  %v123 = vunpack.c.h.b16 %v37
  %v124 = vunpack.c.l.b16 %v38
  %v125 = vunpack.c.h.b16 %v38
  %v126 = vunpack.c.l.b16 %v39
  %v127 = vunpack.c.h.b16 %v39
  %v128 = vunpack.c.l.b16 %v40
  %v129 = vunpack.c.h.b16 %v40
  %v130 = vunpack.c.l.b16 %v41
  %v131 = vunpack.c.h.b16 %v41
  %v132 = vunpack.c.l.b16 %v42
  %v133 = vunpack.c.h.b16 %v42
  %v134 = vunpack.c.l.b16 %v43
  %v135 = vunpack.c.h.b16 %v43
  %v136 = vunpack.c.l.b16 %v44
  %v137 = vunpack.c.h.b16 %v44
  %v138 = vunpack.c.l.b16 %v45
  %v139 = vunpack.c.h.b16 %v45
  %v140 = vunpack.c.l.b16 %v46
  %v141 = vunpack.c.h.b16 %v46
  %v142 = vpack.c.b16 %v118, %v110
  %v143 = vpack.c.b16 %v119, %v111
  %v144 = vpack.c.b16 %v120, %v112
  %v145 = vpack.c.b16 %v121, %v113
  %v146 = vpack.c.b16 %v122, %v114
  %v147 = vpack.c.b16 %v123, %v115
  %v148 = vpack.c.b16 %v124, %v116
  %v149 = vpack.c.b16 %v125, %v117
  %v150 = vpack.c.b16 %v134, %v126
  %v151 = vpack.c.b16 %v135, %v127
  %v152 = vpack.c.b16 %v136, %v128
  %v153 = vpack.c.b16 %v137, %v129
  %v154 = vpack.c.b16 %v138, %v130
  %v155 = vpack.c.b16 %v139, %v131
  %v156 = vpack.c.b16 %v140, %v132
  %v157 = vpack.c.b16 %v141, %v133
  %vm174 = vcmask 261120
  %v176 = vsel %vm174, %v93, 0
  %178 = vmatprep.subr.bf16.mxu0 %v143
  %179 = vmatpush1.bf16.msra.mxu0 %v142
  %180 = vmatprep.subr.bf16.mxu0 %v151
  %181 = vmatpush1.bf16.msra.mxu0 %v150
  %182 = vmatprep.subr.bf16.mxu0 0
  %183 = vmatpush1.bf16.msra.mxu0 0
  %184 = vmatprep.subr.bf16.mxu0 0
  %185 = vmatpush1.bf16.msra.mxu0 0
  %186 = vmatprep.subr.bf16.mxu0 0
  %187 = vmatpush1.bf16.msra.mxu0 0
  %188 = vmatprep.subr.bf16.mxu0 0
  %189 = vmatpush1.bf16.msra.mxu0 0
  %190 = vmatprep.subr.bf16.mxu0 0
  %191 = vmatpush1.bf16.msra.mxu0 0
  %192 = vmatprep.subr.bf16.mxu0 0
  %193 = vmatpush1.bf16.msra.mxu0 0
  %194 = vmatprep.subr.bf16.mxu0 0
  %195 = vmatpush1.bf16.msra.mxu0 0
  %196 = vmatprep.subr.bf16.mxu0 0
  %197 = vmatpush1.bf16.msra.mxu0 0
  %198 = vmatprep.subr.bf16.mxu0 0
  %199 = vmatpush1.bf16.msra.mxu0 0
  %200 = vmatprep.subr.bf16.mxu0 0
  %201 = vmatpush1.bf16.msra.mxu0 0
  %202 = vmatprep.subr.bf16.mxu0 0
  %203 = vmatpush1.bf16.msra.mxu0 0
  %204 = vmatprep.subr.bf16.mxu0 0
  %205 = vmatpush1.bf16.msra.mxu0 0
  %206 = vmatprep.subr.bf16.mxu0 0
  %207 = vmatpush1.bf16.msra.mxu0 0
  %208 = vmatprep.subr.bf16.mxu0 0
  %209 = vmatpush1.bf16.msra.mxu0 0
  %210 = vmatprep.mubr.bf16.mxu0 0
  %211 = vmatmul.mubr.bf16.gmra.mrb[0].mxu0 %v176
  %v212 = vpop.f32.mrb[0].mxu0
  %v213 = vadd.f32 %v52, %v212
  %v214 = vpop.f32.mrb[0].mxu0
  %v215 = vadd.f32 %v56, %v214
  %v216 = vpop.f32.mrb[0].mxu0
  %v217 = vadd.f32 %v52, %v216
  %v218 = vpop.f32.mrb[0].mxu0
  %v219 = vadd.f32 %v56, %v218
  %220 = vdwg.mxu0
  %221 = vmatprep.subr.bf16.mxu0 %v145
  %222 = vmatpush1.bf16.msra.mxu0 %v144
  %223 = vmatprep.subr.bf16.mxu0 %v153
  %224 = vmatpush1.bf16.msra.mxu0 %v152
  %225 = vmatprep.subr.bf16.mxu0 0
  %226 = vmatpush1.bf16.msra.mxu0 0
  %227 = vmatprep.subr.bf16.mxu0 0
  %228 = vmatpush1.bf16.msra.mxu0 0
  %229 = vmatprep.subr.bf16.mxu0 0
  %230 = vmatpush1.bf16.msra.mxu0 0
  %231 = vmatprep.subr.bf16.mxu0 0
  %232 = vmatpush1.bf16.msra.mxu0 0
  %233 = vmatprep.subr.bf16.mxu0 0
  %234 = vmatpush1.bf16.msra.mxu0 0
  %235 = vmatprep.subr.bf16.mxu0 0
  %236 = vmatpush1.bf16.msra.mxu0 0
  %237 = vmatprep.subr.bf16.mxu0 0
  %238 = vmatpush1.bf16.msra.mxu0 0
  %239 = vmatprep.subr.bf16.mxu0 0
  %240 = vmatpush1.bf16.msra.mxu0 0
  %241 = vmatprep.subr.bf16.mxu0 0
  %242 = vmatpush1.bf16.msra.mxu0 0
  %243 = vmatprep.subr.bf16.mxu0 0
  %244 = vmatpush1.bf16.msra.mxu0 0
  %245 = vmatprep.subr.bf16.mxu0 0
  %246 = vmatpush1.bf16.msra.mxu0 0
  %247 = vmatprep.subr.bf16.mxu0 0
  %248 = vmatpush1.bf16.msra.mxu0 0
  %249 = vmatprep.subr.bf16.mxu0 0
  %250 = vmatpush1.bf16.msra.mxu0 0
  %251 = vmatprep.subr.bf16.mxu0 0
  %252 = vmatpush1.bf16.msra.mxu0 0
  %253 = vmatprep.mubr.bf16.mxu0 0
  %254 = vmatmul.mubr.bf16.gmra.mrb[0].mxu0 %v176
  %v255 = vpop.f32.mrb[0].mxu0
  %v256 = vadd.f32 %v60, %v255
  %v257 = vpop.f32.mrb[0].mxu0
  %v258 = vadd.f32 %v64, %v257
  %v259 = vpop.f32.mrb[0].mxu0
  %v260 = vadd.f32 %v60, %v259
  %v261 = vpop.f32.mrb[0].mxu0
  %v262 = vadd.f32 %v64, %v261
  %263 = vdwg.mxu0
  %264 = vmatprep.subr.bf16.mxu0 %v147
  %265 = vmatpush1.bf16.msra.mxu0 %v146
  %266 = vmatprep.subr.bf16.mxu0 %v155
  %267 = vmatpush1.bf16.msra.mxu0 %v154
  %268 = vmatprep.subr.bf16.mxu0 0
  %269 = vmatpush1.bf16.msra.mxu0 0
  %270 = vmatprep.subr.bf16.mxu0 0
  %271 = vmatpush1.bf16.msra.mxu0 0
  %272 = vmatprep.subr.bf16.mxu0 0
  %273 = vmatpush1.bf16.msra.mxu0 0
  %274 = vmatprep.subr.bf16.mxu0 0
  %275 = vmatpush1.bf16.msra.mxu0 0
  %276 = vmatprep.subr.bf16.mxu0 0
  %277 = vmatpush1.bf16.msra.mxu0 0
  %278 = vmatprep.subr.bf16.mxu0 0
  %279 = vmatpush1.bf16.msra.mxu0 0
  %280 = vmatprep.subr.bf16.mxu0 0
  %281 = vmatpush1.bf16.msra.mxu0 0
  %282 = vmatprep.subr.bf16.mxu0 0
  %283 = vmatpush1.bf16.msra.mxu0 0
  %284 = vmatprep.subr.bf16.mxu0 0
  %285 = vmatpush1.bf16.msra.mxu0 0
  %286 = vmatprep.subr.bf16.mxu0 0
  %287 = vmatpush1.bf16.msra.mxu0 0
  %288 = vmatprep.subr.bf16.mxu0 0
  %289 = vmatpush1.bf16.msra.mxu0 0
  %290 = vmatprep.subr.bf16.mxu0 0
  %291 = vmatpush1.bf16.msra.mxu0 0
  %292 = vmatprep.subr.bf16.mxu0 0
  %293 = vmatpush1.bf16.msra.mxu0 0
  %294 = vmatprep.subr.bf16.mxu0 0
  %295 = vmatpush1.bf16.msra.mxu0 0
  %296 = vmatprep.mubr.bf16.mxu0 0
  %297 = vmatmul.mubr.bf16.gmra.mrb[0].mxu0 %v176
  %v298 = vpop.f32.mrb[0].mxu0
  %v299 = vadd.f32 %v68, %v298
  %v300 = vpop.f32.mrb[0].mxu0
  %v301 = vadd.f32 %v72, %v300
  %v302 = vpop.f32.mrb[0].mxu0
  %v303 = vadd.f32 %v68, %v302
  %v304 = vpop.f32.mrb[0].mxu0
  %v305 = vadd.f32 %v72, %v304
  %306 = vdwg.mxu0
  %307 = vmatprep.subr.bf16.mxu0 %v149
  %308 = vmatpush1.bf16.msra.mxu0 %v148
  %309 = vmatprep.subr.bf16.mxu0 %v157
  %310 = vmatpush1.bf16.msra.mxu0 %v156
  %311 = vmatprep.subr.bf16.mxu0 0
  %312 = vmatpush1.bf16.msra.mxu0 0
  %313 = vmatprep.subr.bf16.mxu0 0
  %314 = vmatpush1.bf16.msra.mxu0 0
  %315 = vmatprep.subr.bf16.mxu0 0
  %316 = vmatpush1.bf16.msra.mxu0 0
  %317 = vmatprep.subr.bf16.mxu0 0
  %318 = vmatpush1.bf16.msra.mxu0 0
  %319 = vmatprep.subr.bf16.mxu0 0
  %320 = vmatpush1.bf16.msra.mxu0 0
  %321 = vmatprep.subr.bf16.mxu0 0
  %322 = vmatpush1.bf16.msra.mxu0 0
  %323 = vmatprep.subr.bf16.mxu0 0
  %324 = vmatpush1.bf16.msra.mxu0 0
  %325 = vmatprep.subr.bf16.mxu0 0
  %326 = vmatpush1.bf16.msra.mxu0 0
  %327 = vmatprep.subr.bf16.mxu0 0
  %328 = vmatpush1.bf16.msra.mxu0 0
  %329 = vmatprep.subr.bf16.mxu0 0
  %330 = vmatpush1.bf16.msra.mxu0 0
  %331 = vmatprep.subr.bf16.mxu0 0
  %332 = vmatpush1.bf16.msra.mxu0 0
  %333 = vmatprep.subr.bf16.mxu0 0
  %334 = vmatpush1.bf16.msra.mxu0 0
  %335 = vmatprep.subr.bf16.mxu0 0
  %336 = vmatpush1.bf16.msra.mxu0 0
  %337 = vmatprep.subr.bf16.mxu0 0
  %338 = vmatpush1.bf16.msra.mxu0 0
  %339 = vmatprep.mubr.bf16.mxu0 0
  %340 = vmatmul.mubr.bf16.gmra.mrb[0].mxu0 %v176
  %v341 = vpop.f32.mrb[0].mxu0
  %v342 = vadd.f32 %v76, %v341
  %v343 = vpop.f32.mrb[0].mxu0
  %v344 = vadd.f32 %v80, %v343
  %v345 = vpop.f32.mrb[0].mxu0
  %v346 = vadd.f32 %v76, %v345
  %v347 = vpop.f32.mrb[0].mxu0
  %v348 = vadd.f32 %v80, %v347
  %349 = vdwg.mxu0
  %v350 = vmax.f32 %v213, 0.0
  %v351 = vmax.f32 %v215, 0.0
  %v352 = vmax.f32 %v256, 0.0
  %v353 = vmax.f32 %v258, 0.0
  %v354 = vmax.f32 %v299, 0.0
  %v355 = vmax.f32 %v301, 0.0
  %v356 = vmax.f32 %v342, 0.0
  %v357 = vmax.f32 %v344, 0.0
  %v358 = vmax.f32 %v217, 0.0
  %v359 = vmax.f32 %v219, 0.0
  %v360 = vmax.f32 %v260, 0.0
  %v361 = vmax.f32 %v262, 0.0
  %v362 = vmax.f32 %v303, 0.0
  %v363 = vmax.f32 %v305, 0.0
  %v364 = vmax.f32 %v346, 0.0
  %v365 = vmax.f32 %v348, 0.0
  %v366 = vpack.c.bf16 %v358, %v350
  %v367 = vpack.c.bf16 %v359, %v351
  %v368 = vpack.c.bf16 %v360, %v352
  %v369 = vpack.c.bf16 %v361, %v353
  %v370 = vpack.c.bf16 %v362, %v354
  %v371 = vpack.c.bf16 %v363, %v355
  %v372 = vpack.c.bf16 %v364, %v356
  %v373 = vpack.c.bf16 %v365, %v357
  %v374 = vld [vmem:[%s3] sm:$0xff]
  %v375 = vld [vmem:[%s3 + $0x8] sm:$0xff]
  %v376 = vld [vmem:[%s3 + $0x10] sm:$0xff]
  %v377 = vld [vmem:[%s3 + $0x18] sm:$0xff]
  %v378 = vld [vmem:[%s3 + $0x20] sm:$0xff]
  %v379 = vld [vmem:[%s3 + $0x28] sm:$0xff]
  %v380 = vld [vmem:[%s3 + $0x30] sm:$0xff]
  %v381 = vld [vmem:[%s3 + $0x38] sm:$0xff]
  %v382 = vld [vmem:[%s3 + $0x40] sm:$0xff]
  %v383 = vld [vmem:[%s3 + $0x48] sm:$0xff]
  %v384 = vld [vmem:[%s3 + $0x50] sm:$0xff]
  %v385 = vld [vmem:[%s3 + $0x58] sm:$0xff]
  %v386 = vld [vmem:[%s3 + $0x60] sm:$0xff]
  %v387 = vld [vmem:[%s3 + $0x68] sm:$0xff]
  %v388 = vld [vmem:[%s3 + $0x70] sm:$0xff]
  %v389 = vld [vmem:[%s3 + $0x78] sm:$0xff]
  %v390 = vld [vmem:[%s3 + $0x80] sm:$0xff]
  %v391 = vld [vmem:[%s3 + $0x88] sm:$0xff]
  %v392 = vld [vmem:[%s3 + $0x90] sm:$0xff]
  %v393 = vld [vmem:[%s3 + $0x98] sm:$0xff]
  %v394 = vld [vmem:[%s3 + $0xa0] sm:$0xff]
  %v395 = vld [vmem:[%s3 + $0xa8] sm:$0xff]
  %v396 = vld [vmem:[%s3 + $0xb0] sm:$0xff]
  %v397 = vld [vmem:[%s3 + $0xb8] sm:$0xff]
  %v398 = vld [vmem:[%s3 + $0xc0] sm:$0xff]
  %v399 = vld [vmem:[%s3 + $0xc8] sm:$0xff]
  %v400 = vld [vmem:[%s3 + $0xd0] sm:$0xff]
  %v401 = vld [vmem:[%s3 + $0xd8] sm:$0xff]
  %v402 = vld [vmem:[%s3 + $0xe0] sm:$0xff]
  %v403 = vld [vmem:[%s3 + $0xe8] sm:$0xff]
  %v404 = vld [vmem:[%s3 + $0xf0] sm:$0xff]
  %v405 = vld [vmem:[%s3 + $0xf8] sm:$0xff]
  %v406 = vld [vmem:[%s3 + $0x100] sm:$0xff]
  %v407 = vld [vmem:[%s3 + $0x108] sm:$0xff]
  %v408 = vld [vmem:[%s3 + $0x110] sm:$0xff]
  %v409 = vld [vmem:[%s3 + $0x118] sm:$0xff]
  %v410 = vld [vmem:[%s3 + $0x120] sm:$0xff]
  %v411 = vld [vmem:[%s3 + $0x128] sm:$0xff]
  %v412 = vld [vmem:[%s3 + $0x130] sm:$0xff]
  %v413 = vld [vmem:[%s3 + $0x138] sm:$0xff]
  %v414 = vld [vmem:[%s3 + $0x140] sm:$0xff]
  %v415 = vld [vmem:[%s3 + $0x148] sm:$0xff]
  %v416 = vld [vmem:[%s3 + $0x150] sm:$0xff]
  %v417 = vld [vmem:[%s3 + $0x158] sm:$0xff]
  %v418 = vld [vmem:[%s3 + $0x160] sm:$0xff]
  %v419 = vld [vmem:[%s3 + $0x168] sm:$0xff]
  %v420 = vld [vmem:[%s3 + $0x170] sm:$0xff]
  %v421 = vld [vmem:[%s3 + $0x178] sm:$0xff]
  %v422 = vld [vmem:[%s3 + $0x180] sm:$0xff]
  %v423 = vld [vmem:[%s3 + $0x188] sm:$0xff]
  %v424 = vld [vmem:[%s3 + $0x190] sm:$0xff]
  %v425 = vld [vmem:[%s3 + $0x198] sm:$0xff]
  %v426 = vld [vmem:[%s3 + $0x1a0] sm:$0xff]
  %v427 = vld [vmem:[%s3 + $0x1a8] sm:$0xff]
  %v428 = vld [vmem:[%s3 + $0x1b0] sm:$0xff]
  %v429 = vld [vmem:[%s3 + $0x1b8] sm:$0xff]
  %v430 = vld [vmem:[%s3 + $0x1c0] sm:$0xff]
  %v431 = vld [vmem:[%s3 + $0x1c8] sm:$0xff]
  %v432 = vld [vmem:[%s3 + $0x1d0] sm:$0xff]
  %v433 = vld [vmem:[%s3 + $0x1d8] sm:$0xff]
  %v434 = vld [vmem:[%s3 + $0x1e0] sm:$0xff]
  %v435 = vld [vmem:[%s3 + $0x1e8] sm:$0xff]
  %v436 = vld [vmem:[%s3 + $0x1f0] sm:$0xff]
  %v437 = vld [vmem:[%s3 + $0x1f8] sm:$0xff]
  %v438 = vld [vmem:[%s3 + $0x200] sm:$0xff]
  %v439 = vld [vmem:[%s3 + $0x208] sm:$0xff]
  %v440 = vld [vmem:[%s3 + $0x210] sm:$0xff]
  %v441 = vld [vmem:[%s3 + $0x218] sm:$0xff]
  %v442 = vld [vmem:[%s3 + $0x220] sm:$0xff]
  %v443 = vld [vmem:[%s3 + $0x228] sm:$0xff]
  %v444 = vld [vmem:[%s3 + $0x230] sm:$0xff]
  %v445 = vld [vmem:[%s3 + $0x238] sm:$0xff]
  %v446 = vld [vmem:[%s3 + $0x240] sm:$0xff]
  %v447 = vld [vmem:[%s3 + $0x248] sm:$0xff]
  %v448 = vld [vmem:[%s3 + $0x250] sm:$0xff]
  %v449 = vld [vmem:[%s3 + $0x258] sm:$0xff]
  %v450 = vld [vmem:[%s3 + $0x260] sm:$0xff]
  %v451 = vld [vmem:[%s3 + $0x268] sm:$0xff]
  %v452 = vld [vmem:[%s3 + $0x270] sm:$0xff]
  %v453 = vld [vmem:[%s3 + $0x278] sm:$0xff]
  %v454 = vld [vmem:[%s3 + $0x280] sm:$0xff]
  %v455 = vld [vmem:[%s3 + $0x288] sm:$0xff]
  %v456 = vld [vmem:[%s3 + $0x290] sm:$0xff]
  %v457 = vld [vmem:[%s3 + $0x298] sm:$0xff]
  %v458 = vld [vmem:[%s3 + $0x2a0] sm:$0xff]
  %v459 = vld [vmem:[%s3 + $0x2a8] sm:$0xff]
  %v460 = vld [vmem:[%s3 + $0x2b0] sm:$0xff]
  %v461 = vld [vmem:[%s3 + $0x2b8] sm:$0xff]
  %v462 = vld [vmem:[%s3 + $0x2c0] sm:$0xff]
  %v463 = vld [vmem:[%s3 + $0x2c8] sm:$0xff]
  %v464 = vld [vmem:[%s3 + $0x2d0] sm:$0xff]
  %v465 = vld [vmem:[%s3 + $0x2d8] sm:$0xff]
  %v466 = vld [vmem:[%s3 + $0x2e0] sm:$0xff]
  %v467 = vld [vmem:[%s3 + $0x2e8] sm:$0xff]
  %v468 = vld [vmem:[%s3 + $0x2f0] sm:$0xff]
  %v469 = vld [vmem:[%s3 + $0x2f8] sm:$0xff]
  %v470 = vld [vmem:[%s3 + $0x300] sm:$0xff]
  %v471 = vld [vmem:[%s3 + $0x308] sm:$0xff]
  %v472 = vld [vmem:[%s3 + $0x310] sm:$0xff]
  %v473 = vld [vmem:[%s3 + $0x318] sm:$0xff]
  %v474 = vld [vmem:[%s3 + $0x320] sm:$0xff]
  %v475 = vld [vmem:[%s3 + $0x328] sm:$0xff]
  %v476 = vld [vmem:[%s3 + $0x330] sm:$0xff]
  %v477 = vld [vmem:[%s3 + $0x338] sm:$0xff]
  %v478 = vld [vmem:[%s3 + $0x340] sm:$0xff]
  %v479 = vld [vmem:[%s3 + $0x348] sm:$0xff]
  %v480 = vld [vmem:[%s3 + $0x350] sm:$0xff]
  %v481 = vld [vmem:[%s3 + $0x358] sm:$0xff]
  %v482 = vld [vmem:[%s3 + $0x360] sm:$0xff]
  %v483 = vld [vmem:[%s3 + $0x368] sm:$0xff]
  %v484 = vld [vmem:[%s3 + $0x370] sm:$0xff]
  %v485 = vld [vmem:[%s3 + $0x378] sm:$0xff]
  %v486 = vld [vmem:[%s3 + $0x380] sm:$0xff]
  %v487 = vld [vmem:[%s3 + $0x388] sm:$0xff]
  %v488 = vld [vmem:[%s3 + $0x390] sm:$0xff]
  %v489 = vld [vmem:[%s3 + $0x398] sm:$0xff]
  %v490 = vld [vmem:[%s3 + $0x3a0] sm:$0xff]
  %v491 = vld [vmem:[%s3 + $0x3a8] sm:$0xff]
  %v492 = vld [vmem:[%s3 + $0x3b0] sm:$0xff]
  %v493 = vld [vmem:[%s3 + $0x3b8] sm:$0xff]
  %v494 = vld [vmem:[%s3 + $0x3c0] sm:$0xff]
  %v495 = vld [vmem:[%s3 + $0x3c8] sm:$0xff]
  %v496 = vld [vmem:[%s3 + $0x3d0] sm:$0xff]
  %v497 = vld [vmem:[%s3 + $0x3d8] sm:$0xff]
  %v498 = vld [vmem:[%s3 + $0x3e0] sm:$0xff]
  %v499 = vld [vmem:[%s3 + $0x3e8] sm:$0xff]
  %v500 = vld [vmem:[%s3 + $0x3f0] sm:$0xff]
  %v501 = vld [vmem:[%s3 + $0x3f8] sm:$0xff]
  %v502 = vld [vmem:[%s3 + $0x400] sm:$0xff]
  %v503 = vld [vmem:[%s3 + $0x408] sm:$0xff]
  %v504 = vld [vmem:[%s3 + $0x410] sm:$0xff]
  %v505 = vld [vmem:[%s3 + $0x418] sm:$0xff]
  %v506 = vld [vmem:[%s3 + $0x420] sm:$0xff]
  %v507 = vld [vmem:[%s3 + $0x428] sm:$0xff]
  %v508 = vld [vmem:[%s3 + $0x430] sm:$0xff]
  %v509 = vld [vmem:[%s3 + $0x438] sm:$0xff]
  %v510 = vld [vmem:[%s3 + $0x440] sm:$0xff]
  %v511 = vld [vmem:[%s3 + $0x448] sm:$0xff]
  %v512 = vld [vmem:[%s3 + $0x450] sm:$0xff]
  %v513 = vld [vmem:[%s3 + $0x458] sm:$0xff]
  %v514 = vld [vmem:[%s3 + $0x460] sm:$0xff]
  %v515 = vld [vmem:[%s3 + $0x468] sm:$0xff]
  %v516 = vld [vmem:[%s3 + $0x470] sm:$0xff]
  %v517 = vld [vmem:[%s3 + $0x478] sm:$0xff]
  %v518 = vld [vmem:[%s3 + $0x480] sm:$0xff]
  %v519 = vld [vmem:[%s3 + $0x488] sm:$0xff]
  %v520 = vld [vmem:[%s3 + $0x490] sm:$0xff]
  %v521 = vld [vmem:[%s3 + $0x498] sm:$0xff]
  %v522 = vld [vmem:[%s3 + $0x4a0] sm:$0xff]
  %v523 = vld [vmem:[%s3 + $0x4a8] sm:$0xff]
  %v524 = vld [vmem:[%s3 + $0x4b0] sm:$0xff]
  %v525 = vld [vmem:[%s3 + $0x4b8] sm:$0xff]
  %v526 = vld [vmem:[%s3 + $0x4c0] sm:$0xff]
  %v527 = vld [vmem:[%s3 + $0x4c8] sm:$0xff]
  %v528 = vld [vmem:[%s3 + $0x4d0] sm:$0xff]
  %v529 = vld [vmem:[%s3 + $0x4d8] sm:$0xff]
  %v530 = vld [vmem:[%s3 + $0x4e0] sm:$0xff]
  %v531 = vld [vmem:[%s3 + $0x4e8] sm:$0xff]
  %v532 = vld [vmem:[%s3 + $0x4f0] sm:$0xff]
  %v533 = vld [vmem:[%s3 + $0x4f8] sm:$0xff]
  %v534 = vld [vmem:[%s3 + $0x500] sm:$0xff]
  %v535 = vld [vmem:[%s3 + $0x508] sm:$0xff]
  %v536 = vld [vmem:[%s3 + $0x510] sm:$0xff]
  %v537 = vld [vmem:[%s3 + $0x518] sm:$0xff]
  %v538 = vld [vmem:[%s3 + $0x520] sm:$0xff]
  %v539 = vld [vmem:[%s3 + $0x528] sm:$0xff]
  %v540 = vld [vmem:[%s3 + $0x530] sm:$0xff]
  %v541 = vld [vmem:[%s3 + $0x538] sm:$0xff]
  %v542 = vld [vmem:[%s3 + $0x540] sm:$0xff]
  %v543 = vld [vmem:[%s3 + $0x548] sm:$0xff]
  %v544 = vld [vmem:[%s3 + $0x550] sm:$0xff]
  %v545 = vld [vmem:[%s3 + $0x558] sm:$0xff]
  %v546 = vld [vmem:[%s3 + $0x560] sm:$0xff]
  %v547 = vld [vmem:[%s3 + $0x568] sm:$0xff]
  %v548 = vld [vmem:[%s3 + $0x570] sm:$0xff]
  %v549 = vld [vmem:[%s3 + $0x578] sm:$0xff]
  %v550 = vld [vmem:[%s3 + $0x580] sm:$0xff]
  %v551 = vld [vmem:[%s3 + $0x588] sm:$0xff]
  %v552 = vld [vmem:[%s3 + $0x590] sm:$0xff]
  %v553 = vld [vmem:[%s3 + $0x598] sm:$0xff]
  %v554 = vld [vmem:[%s3 + $0x5a0] sm:$0xff]
  %v555 = vld [vmem:[%s3 + $0x5a8] sm:$0xff]
  %v556 = vld [vmem:[%s3 + $0x5b0] sm:$0xff]
  %v557 = vld [vmem:[%s3 + $0x5b8] sm:$0xff]
  %v558 = vld [vmem:[%s3 + $0x5c0] sm:$0xff]
  %v559 = vld [vmem:[%s3 + $0x5c8] sm:$0xff]
  %v560 = vld [vmem:[%s3 + $0x5d0] sm:$0xff]
  %v561 = vld [vmem:[%s3 + $0x5d8] sm:$0xff]
  %v562 = vld [vmem:[%s3 + $0x5e0] sm:$0xff]
  %v563 = vld [vmem:[%s3 + $0x5e8] sm:$0xff]
  %v564 = vld [vmem:[%s3 + $0x5f0] sm:$0xff]
  %v565 = vld [vmem:[%s3 + $0x5f8] sm:$0xff]
  %v566 = vld [vmem:[%s3 + $0x600] sm:$0xff]
  %v567 = vld [vmem:[%s3 + $0x608] sm:$0xff]
  %v568 = vld [vmem:[%s3 + $0x610] sm:$0xff]
  %v569 = vld [vmem:[%s3 + $0x618] sm:$0xff]
  %v570 = vld [vmem:[%s3 + $0x620] sm:$0xff]
  %v571 = vld [vmem:[%s3 + $0x628] sm:$0xff]
  %v572 = vld [vmem:[%s3 + $0x630] sm:$0xff]
  %v573 = vld [vmem:[%s3 + $0x638] sm:$0xff]
  %v574 = vld [vmem:[%s3 + $0x640] sm:$0xff]
  %v575 = vld [vmem:[%s3 + $0x648] sm:$0xff]
  %v576 = vld [vmem:[%s3 + $0x650] sm:$0xff]
  %v577 = vld [vmem:[%s3 + $0x658] sm:$0xff]
  %v578 = vld [vmem:[%s3 + $0x660] sm:$0xff]
  %v579 = vld [vmem:[%s3 + $0x668] sm:$0xff]
  %v580 = vld [vmem:[%s3 + $0x670] sm:$0xff]
  %v581 = vld [vmem:[%s3 + $0x678] sm:$0xff]
  %v582 = vld [vmem:[%s3 + $0x680] sm:$0xff]
  %v583 = vld [vmem:[%s3 + $0x688] sm:$0xff]
  %v584 = vld [vmem:[%s3 + $0x690] sm:$0xff]
  %v585 = vld [vmem:[%s3 + $0x698] sm:$0xff]
  %v586 = vld [vmem:[%s3 + $0x6a0] sm:$0xff]
  %v587 = vld [vmem:[%s3 + $0x6a8] sm:$0xff]
  %v588 = vld [vmem:[%s3 + $0x6b0] sm:$0xff]
  %v589 = vld [vmem:[%s3 + $0x6b8] sm:$0xff]
  %v590 = vld [vmem:[%s3 + $0x6c0] sm:$0xff]
  %v591 = vld [vmem:[%s3 + $0x6c8] sm:$0xff]
  %v592 = vld [vmem:[%s3 + $0x6d0] sm:$0xff]
  %v593 = vld [vmem:[%s3 + $0x6d8] sm:$0xff]
  %v594 = vld [vmem:[%s3 + $0x6e0] sm:$0xff]
  %v595 = vld [vmem:[%s3 + $0x6e8] sm:$0xff]
  %v596 = vld [vmem:[%s3 + $0x6f0] sm:$0xff]
  %v597 = vld [vmem:[%s3 + $0x6f8] sm:$0xff]
  %v598 = vld [vmem:[%s3 + $0x700] sm:$0xff]
  %v599 = vld [vmem:[%s3 + $0x708] sm:$0xff]
  %v600 = vld [vmem:[%s3 + $0x710] sm:$0xff]
  %v601 = vld [vmem:[%s3 + $0x718] sm:$0xff]
  %v602 = vld [vmem:[%s3 + $0x720] sm:$0xff]
  %v603 = vld [vmem:[%s3 + $0x728] sm:$0xff]
  %v604 = vld [vmem:[%s3 + $0x730] sm:$0xff]
  %v605 = vld [vmem:[%s3 + $0x738] sm:$0xff]
  %v606 = vld [vmem:[%s3 + $0x740] sm:$0xff]
  %v607 = vld [vmem:[%s3 + $0x748] sm:$0xff]
  %v608 = vld [vmem:[%s3 + $0x750] sm:$0xff]
  %v609 = vld [vmem:[%s3 + $0x758] sm:$0xff]
  %v610 = vld [vmem:[%s3 + $0x760] sm:$0xff]
  %v611 = vld [vmem:[%s3 + $0x768] sm:$0xff]
  %v612 = vld [vmem:[%s3 + $0x770] sm:$0xff]
  %v613 = vld [vmem:[%s3 + $0x778] sm:$0xff]
  %v614 = vld [vmem:[%s3 + $0x780] sm:$0xff]
  %v615 = vld [vmem:[%s3 + $0x788] sm:$0xff]
  %v616 = vld [vmem:[%s3 + $0x790] sm:$0xff]
  %v617 = vld [vmem:[%s3 + $0x798] sm:$0xff]
  %v618 = vld [vmem:[%s3 + $0x7a0] sm:$0xff]
  %v619 = vld [vmem:[%s3 + $0x7a8] sm:$0xff]
  %v620 = vld [vmem:[%s3 + $0x7b0] sm:$0xff]
  %v621 = vld [vmem:[%s3 + $0x7b8] sm:$0xff]
  %v622 = vld [vmem:[%s3 + $0x7c0] sm:$0xff]
  %v623 = vld [vmem:[%s3 + $0x7c8] sm:$0xff]
  %v624 = vld [vmem:[%s3 + $0x7d0] sm:$0xff]
  %v625 = vld [vmem:[%s3 + $0x7d8] sm:$0xff]
  %v626 = vld [vmem:[%s3 + $0x7e0] sm:$0xff]
  %v627 = vld [vmem:[%s3 + $0x7e8] sm:$0xff]
  %v628 = vld [vmem:[%s3 + $0x7f0] sm:$0xff]
  %v629 = vld [vmem:[%s3 + $0x7f8] sm:$0xff]
  %v630 = vld [vmem:[%s3 + $0x800] sm:$0xff]
  %v631 = vld [vmem:[%s3 + $0x808] sm:$0xff]
  %v632 = vld [vmem:[%s3 + $0x810] sm:$0xff]
  %v633 = vld [vmem:[%s3 + $0x818] sm:$0xff]
  %v634 = vld [vmem:[%s3 + $0x820] sm:$0xff]
  %v635 = vld [vmem:[%s3 + $0x828] sm:$0xff]
  %v636 = vld [vmem:[%s3 + $0x830] sm:$0xff]
  %v637 = vld [vmem:[%s3 + $0x838] sm:$0xff]
  %v638 = vld [vmem:[%s3 + $0x840] sm:$0xff]
  %v639 = vld [vmem:[%s3 + $0x848] sm:$0xff]
  %v640 = vld [vmem:[%s3 + $0x850] sm:$0xff]
  %v641 = vld [vmem:[%s3 + $0x858] sm:$0xff]
  %v642 = vld [vmem:[%s3 + $0x860] sm:$0xff]
  %v643 = vld [vmem:[%s3 + $0x868] sm:$0xff]
  %v644 = vld [vmem:[%s3 + $0x870] sm:$0xff]
  %v645 = vld [vmem:[%s3 + $0x878] sm:$0xff]
  %v646 = vld [vmem:[%s3 + $0x880] sm:$0xff]
  %v647 = vld [vmem:[%s3 + $0x888] sm:$0xff]
  %v648 = vld [vmem:[%s3 + $0x890] sm:$0xff]
  %v649 = vld [vmem:[%s3 + $0x898] sm:$0xff]
  %v650 = vld [vmem:[%s3 + $0x8a0] sm:$0xff]
  %v651 = vld [vmem:[%s3 + $0x8a8] sm:$0xff]
  %v652 = vld [vmem:[%s3 + $0x8b0] sm:$0xff]
  %v653 = vld [vmem:[%s3 + $0x8b8] sm:$0xff]
  %v654 = vld [vmem:[%s3 + $0x8c0] sm:$0xff]
  %v655 = vld [vmem:[%s3 + $0x8c8] sm:$0xff]
  %v656 = vld [vmem:[%s3 + $0x8d0] sm:$0xff]
  %v657 = vld [vmem:[%s3 + $0x8d8] sm:$0xff]
  %v658 = vld [vmem:[%s3 + $0x8e0] sm:$0xff]
  %v659 = vld [vmem:[%s3 + $0x8e8] sm:$0xff]
  %v660 = vld [vmem:[%s3 + $0x8f0] sm:$0xff]
  %v661 = vld [vmem:[%s3 + $0x8f8] sm:$0xff]
  %v662 = vld [vmem:[%s3 + $0x900] sm:$0xff]
  %v663 = vld [vmem:[%s3 + $0x908] sm:$0xff]
  %v664 = vld [vmem:[%s3 + $0x910] sm:$0xff]
  %v665 = vld [vmem:[%s3 + $0x918] sm:$0xff]
  %v666 = vld [vmem:[%s3 + $0x920] sm:$0xff]
  %v667 = vld [vmem:[%s3 + $0x928] sm:$0xff]
  %v668 = vld [vmem:[%s3 + $0x930] sm:$0xff]
  %v669 = vld [vmem:[%s3 + $0x938] sm:$0xff]
  %v670 = vld [vmem:[%s3 + $0x940] sm:$0xff]
  %v671 = vld [vmem:[%s3 + $0x948] sm:$0xff]
  %v672 = vld [vmem:[%s3 + $0x950] sm:$0xff]
  %v673 = vld [vmem:[%s3 + $0x958] sm:$0xff]
  %v674 = vld [vmem:[%s3 + $0x960] sm:$0xff]
  %v675 = vld [vmem:[%s3 + $0x968] sm:$0xff]
  %v676 = vld [vmem:[%s3 + $0x970] sm:$0xff]
  %v677 = vld [vmem:[%s3 + $0x978] sm:$0xff]
  %v678 = vld [vmem:[%s3 + $0x980] sm:$0xff]
  %v679 = vld [vmem:[%s3 + $0x988] sm:$0xff]
  %v680 = vld [vmem:[%s3 + $0x990] sm:$0xff]
  %v681 = vld [vmem:[%s3 + $0x998] sm:$0xff]
  %v682 = vld [vmem:[%s3 + $0x9a0] sm:$0xff]
  %v683 = vld [vmem:[%s3 + $0x9a8] sm:$0xff]
  %v684 = vld [vmem:[%s3 + $0x9b0] sm:$0xff]
  %v685 = vld [vmem:[%s3 + $0x9b8] sm:$0xff]
  %v686 = vld [vmem:[%s3 + $0x9c0] sm:$0xff]
  %v687 = vld [vmem:[%s3 + $0x9c8] sm:$0xff]
  %v688 = vld [vmem:[%s3 + $0x9d0] sm:$0xff]
  %v689 = vld [vmem:[%s3 + $0x9d8] sm:$0xff]
  %v690 = vld [vmem:[%s3 + $0x9e0] sm:$0xff]
  %v691 = vld [vmem:[%s3 + $0x9e8] sm:$0xff]
  %v692 = vld [vmem:[%s3 + $0x9f0] sm:$0xff]
  %v693 = vld [vmem:[%s3 + $0x9f8] sm:$0xff]
  %v694 = vld [vmem:[%s3 + $0xa00] sm:$0xff]
  %v695 = vld [vmem:[%s3 + $0xa08] sm:$0xff]
  %v696 = vld [vmem:[%s3 + $0xa10] sm:$0xff]
  %v697 = vld [vmem:[%s3 + $0xa18] sm:$0xff]
  %v698 = vld [vmem:[%s3 + $0xa20] sm:$0xff]
  %v699 = vld [vmem:[%s3 + $0xa28] sm:$0xff]
  %v700 = vld [vmem:[%s3 + $0xa30] sm:$0xff]
  %v701 = vld [vmem:[%s3 + $0xa38] sm:$0xff]
  %v702 = vld [vmem:[%s3 + $0xa40] sm:$0xff]
  %v703 = vld [vmem:[%s3 + $0xa48] sm:$0xff]
  %v704 = vld [vmem:[%s3 + $0xa50] sm:$0xff]
  %v705 = vld [vmem:[%s3 + $0xa58] sm:$0xff]
  %v706 = vld [vmem:[%s3 + $0xa60] sm:$0xff]
  %v707 = vld [vmem:[%s3 + $0xa68] sm:$0xff]
  %v708 = vld [vmem:[%s3 + $0xa70] sm:$0xff]
  %v709 = vld [vmem:[%s3 + $0xa78] sm:$0xff]
  %v710 = vld [vmem:[%s3 + $0xa80] sm:$0xff]
  %v711 = vld [vmem:[%s3 + $0xa88] sm:$0xff]
  %v712 = vld [vmem:[%s3 + $0xa90] sm:$0xff]
  %v713 = vld [vmem:[%s3 + $0xa98] sm:$0xff]
  %v714 = vld [vmem:[%s3 + $0xaa0] sm:$0xff]
  %v715 = vld [vmem:[%s3 + $0xaa8] sm:$0xff]
  %v716 = vld [vmem:[%s3 + $0xab0] sm:$0xff]
  %v717 = vld [vmem:[%s3 + $0xab8] sm:$0xff]
  %v718 = vld [vmem:[%s3 + $0xac0] sm:$0xff]
  %v719 = vld [vmem:[%s3 + $0xac8] sm:$0xff]
  %v720 = vld [vmem:[%s3 + $0xad0] sm:$0xff]
  %v721 = vld [vmem:[%s3 + $0xad8] sm:$0xff]
  %v722 = vld [vmem:[%s3 + $0xae0] sm:$0xff]
  %v723 = vld [vmem:[%s3 + $0xae8] sm:$0xff]
  %v724 = vld [vmem:[%s3 + $0xaf0] sm:$0xff]
  %v725 = vld [vmem:[%s3 + $0xaf8] sm:$0xff]
  %v726 = vld [vmem:[%s3 + $0xb00] sm:$0xff]
  %v727 = vld [vmem:[%s3 + $0xb08] sm:$0xff]
  %v728 = vld [vmem:[%s3 + $0xb10] sm:$0xff]
  %v729 = vld [vmem:[%s3 + $0xb18] sm:$0xff]
  %v730 = vld [vmem:[%s3 + $0xb20] sm:$0xff]
  %v731 = vld [vmem:[%s3 + $0xb28] sm:$0xff]
  %v732 = vld [vmem:[%s3 + $0xb30] sm:$0xff]
  %v733 = vld [vmem:[%s3 + $0xb38] sm:$0xff]
  %v734 = vld [vmem:[%s3 + $0xb40] sm:$0xff]
  %v735 = vld [vmem:[%s3 + $0xb48] sm:$0xff]
  %v736 = vld [vmem:[%s3 + $0xb50] sm:$0xff]
  %v737 = vld [vmem:[%s3 + $0xb58] sm:$0xff]
  %v738 = vld [vmem:[%s3 + $0xb60] sm:$0xff]
  %v739 = vld [vmem:[%s3 + $0xb68] sm:$0xff]
  %v740 = vld [vmem:[%s3 + $0xb70] sm:$0xff]
  %v741 = vld [vmem:[%s3 + $0xb78] sm:$0xff]
  %v742 = vld [vmem:[%s3 + $0xb80] sm:$0xff]
  %v743 = vld [vmem:[%s3 + $0xb88] sm:$0xff]
  %v744 = vld [vmem:[%s3 + $0xb90] sm:$0xff]
  %v745 = vld [vmem:[%s3 + $0xb98] sm:$0xff]
  %v746 = vld [vmem:[%s3 + $0xba0] sm:$0xff]
  %v747 = vld [vmem:[%s3 + $0xba8] sm:$0xff]
  %v748 = vld [vmem:[%s3 + $0xbb0] sm:$0xff]
  %v749 = vld [vmem:[%s3 + $0xbb8] sm:$0xff]
  %v750 = vld [vmem:[%s3 + $0xbc0] sm:$0xff]
  %v751 = vld [vmem:[%s3 + $0xbc8] sm:$0xff]
  %v752 = vld [vmem:[%s3 + $0xbd0] sm:$0xff]
  %v753 = vld [vmem:[%s3 + $0xbd8] sm:$0xff]
  %v754 = vld [vmem:[%s3 + $0xbe0] sm:$0xff]
  %v755 = vld [vmem:[%s3 + $0xbe8] sm:$0xff]
  %v756 = vld [vmem:[%s3 + $0xbf0] sm:$0xff]
  %v757 = vld [vmem:[%s3 + $0xbf8] sm:$0xff]
  %v758 = vld [vmem:[%s3 + $0xc00] sm:$0xff]
  %v759 = vld [vmem:[%s3 + $0xc08] sm:$0xff]
  %v760 = vld [vmem:[%s3 + $0xc10] sm:$0xff]
  %v761 = vld [vmem:[%s3 + $0xc18] sm:$0xff]
  %v762 = vld [vmem:[%s3 + $0xc20] sm:$0xff]
  %v763 = vld [vmem:[%s3 + $0xc28] sm:$0xff]
  %v764 = vld [vmem:[%s3 + $0xc30] sm:$0xff]
  %v765 = vld [vmem:[%s3 + $0xc38] sm:$0xff]
  %v766 = vld [vmem:[%s3 + $0xc40] sm:$0xff]
  %v767 = vld [vmem:[%s3 + $0xc48] sm:$0xff]
  %v768 = vld [vmem:[%s3 + $0xc50] sm:$0xff]
  %v769 = vld [vmem:[%s3 + $0xc58] sm:$0xff]
  %v770 = vld [vmem:[%s3 + $0xc60] sm:$0xff]
  %v771 = vld [vmem:[%s3 + $0xc68] sm:$0xff]
  %v772 = vld [vmem:[%s3 + $0xc70] sm:$0xff]
  %v773 = vld [vmem:[%s3 + $0xc78] sm:$0xff]
  %v774 = vld [vmem:[%s3 + $0xc80] sm:$0xff]
  %v775 = vld [vmem:[%s3 + $0xc88] sm:$0xff]
  %v776 = vld [vmem:[%s3 + $0xc90] sm:$0xff]
  %v777 = vld [vmem:[%s3 + $0xc98] sm:$0xff]
  %v778 = vld [vmem:[%s3 + $0xca0] sm:$0xff]
  %v779 = vld [vmem:[%s3 + $0xca8] sm:$0xff]
  %v780 = vld [vmem:[%s3 + $0xcb0] sm:$0xff]
  %v781 = vld [vmem:[%s3 + $0xcb8] sm:$0xff]
  %v782 = vld [vmem:[%s3 + $0xcc0] sm:$0xff]
  %v783 = vld [vmem:[%s3 + $0xcc8] sm:$0xff]
  %v784 = vld [vmem:[%s3 + $0xcd0] sm:$0xff]
  %v785 = vld [vmem:[%s3 + $0xcd8] sm:$0xff]
  %v786 = vld [vmem:[%s3 + $0xce0] sm:$0xff]
  %v787 = vld [vmem:[%s3 + $0xce8] sm:$0xff]
  %v788 = vld [vmem:[%s3 + $0xcf0] sm:$0xff]
  %v789 = vld [vmem:[%s3 + $0xcf8] sm:$0xff]
  %v790 = vld [vmem:[%s3 + $0xd00] sm:$0xff]
  %v791 = vld [vmem:[%s3 + $0xd08] sm:$0xff]
  %v792 = vld [vmem:[%s3 + $0xd10] sm:$0xff]
  %v793 = vld [vmem:[%s3 + $0xd18] sm:$0xff]
  %v794 = vld [vmem:[%s3 + $0xd20] sm:$0xff]
  %v795 = vld [vmem:[%s3 + $0xd28] sm:$0xff]
  %v796 = vld [vmem:[%s3 + $0xd30] sm:$0xff]
  %v797 = vld [vmem:[%s3 + $0xd38] sm:$0xff]
  %v798 = vld [vmem:[%s3 + $0xd40] sm:$0xff]
  %v799 = vld [vmem:[%s3 + $0xd48] sm:$0xff]
  %v800 = vld [vmem:[%s3 + $0xd50] sm:$0xff]
  %v801 = vld [vmem:[%s3 + $0xd58] sm:$0xff]
  %v802 = vld [vmem:[%s3 + $0xd60] sm:$0xff]
  %v803 = vld [vmem:[%s3 + $0xd68] sm:$0xff]
  %v804 = vld [vmem:[%s3 + $0xd70] sm:$0xff]
  %v805 = vld [vmem:[%s3 + $0xd78] sm:$0xff]
  %v806 = vld [vmem:[%s3 + $0xd80] sm:$0xff]
  %v807 = vld [vmem:[%s3 + $0xd88] sm:$0xff]
  %v808 = vld [vmem:[%s3 + $0xd90] sm:$0xff]
  %v809 = vld [vmem:[%s3 + $0xd98] sm:$0xff]
  %v810 = vld [vmem:[%s3 + $0xda0] sm:$0xff]
  %v811 = vld [vmem:[%s3 + $0xda8] sm:$0xff]
  %v812 = vld [vmem:[%s3 + $0xdb0] sm:$0xff]
  %v813 = vld [vmem:[%s3 + $0xdb8] sm:$0xff]
  %v814 = vld [vmem:[%s3 + $0xdc0] sm:$0xff]
  %v815 = vld [vmem:[%s3 + $0xdc8] sm:$0xff]
  %v816 = vld [vmem:[%s3 + $0xdd0] sm:$0xff]
  %v817 = vld [vmem:[%s3 + $0xdd8] sm:$0xff]
  %v818 = vld [vmem:[%s3 + $0xde0] sm:$0xff]
  %v819 = vld [vmem:[%s3 + $0xde8] sm:$0xff]
  %v820 = vld [vmem:[%s3 + $0xdf0] sm:$0xff]
  %v821 = vld [vmem:[%s3 + $0xdf8] sm:$0xff]
  %v822 = vld [vmem:[%s3 + $0xe00] sm:$0xff]
  %v823 = vld [vmem:[%s3 + $0xe08] sm:$0xff]
  %v824 = vld [vmem:[%s3 + $0xe10] sm:$0xff]
  %v825 = vld [vmem:[%s3 + $0xe18] sm:$0xff]
  %v826 = vld [vmem:[%s3 + $0xe20] sm:$0xff]
  %v827 = vld [vmem:[%s3 + $0xe28] sm:$0xff]
  %v828 = vld [vmem:[%s3 + $0xe30] sm:$0xff]
  %v829 = vld [vmem:[%s3 + $0xe38] sm:$0xff]
  %v830 = vld [vmem:[%s3 + $0xe40] sm:$0xff]
  %v831 = vld [vmem:[%s3 + $0xe48] sm:$0xff]
  %v832 = vld [vmem:[%s3 + $0xe50] sm:$0xff]
  %v833 = vld [vmem:[%s3 + $0xe58] sm:$0xff]
  %v834 = vld [vmem:[%s3 + $0xe60] sm:$0xff]
  %v835 = vld [vmem:[%s3 + $0xe68] sm:$0xff]
  %v836 = vld [vmem:[%s3 + $0xe70] sm:$0xff]
  %v837 = vld [vmem:[%s3 + $0xe78] sm:$0xff]
  %v838 = vld [vmem:[%s3 + $0xe80] sm:$0xff]
  %v839 = vld [vmem:[%s3 + $0xe88] sm:$0xff]
  %v840 = vld [vmem:[%s3 + $0xe90] sm:$0xff]
  %v841 = vld [vmem:[%s3 + $0xe98] sm:$0xff]
  %v842 = vld [vmem:[%s3 + $0xea0] sm:$0xff]
  %v843 = vld [vmem:[%s3 + $0xea8] sm:$0xff]
  %v844 = vld [vmem:[%s3 + $0xeb0] sm:$0xff]
  %v845 = vld [vmem:[%s3 + $0xeb8] sm:$0xff]
  %v846 = vld [vmem:[%s3 + $0xec0] sm:$0xff]
  %v847 = vld [vmem:[%s3 + $0xec8] sm:$0xff]
  %v848 = vld [vmem:[%s3 + $0xed0] sm:$0xff]
  %v849 = vld [vmem:[%s3 + $0xed8] sm:$0xff]
  %v850 = vld [vmem:[%s3 + $0xee0] sm:$0xff]
  %v851 = vld [vmem:[%s3 + $0xee8] sm:$0xff]
  %v852 = vld [vmem:[%s3 + $0xef0] sm:$0xff]
  %v853 = vld [vmem:[%s3 + $0xef8] sm:$0xff]
  %v854 = vld [vmem:[%s3 + $0xf00] sm:$0xff]
  %v855 = vld [vmem:[%s3 + $0xf08] sm:$0xff]
  %v856 = vld [vmem:[%s3 + $0xf10] sm:$0xff]
  %v857 = vld [vmem:[%s3 + $0xf18] sm:$0xff]
  %v858 = vld [vmem:[%s3 + $0xf20] sm:$0xff]
  %v859 = vld [vmem:[%s3 + $0xf28] sm:$0xff]
  %v860 = vld [vmem:[%s3 + $0xf30] sm:$0xff]
  %v861 = vld [vmem:[%s3 + $0xf38] sm:$0xff]
  %v862 = vld [vmem:[%s3 + $0xf40] sm:$0xff]
  %v863 = vld [vmem:[%s3 + $0xf48] sm:$0xff]
  %v864 = vld [vmem:[%s3 + $0xf50] sm:$0xff]
  %v865 = vld [vmem:[%s3 + $0xf58] sm:$0xff]
  %v866 = vld [vmem:[%s3 + $0xf60] sm:$0xff]
  %v867 = vld [vmem:[%s3 + $0xf68] sm:$0xff]
  %v868 = vld [vmem:[%s3 + $0xf70] sm:$0xff]
  %v869 = vld [vmem:[%s3 + $0xf78] sm:$0xff]
  %v870 = vld [vmem:[%s3 + $0xf80] sm:$0xff]
  %v871 = vld [vmem:[%s3 + $0xf88] sm:$0xff]
  %v872 = vld [vmem:[%s3 + $0xf90] sm:$0xff]
  %v873 = vld [vmem:[%s3 + $0xf98] sm:$0xff]
  %v874 = vld [vmem:[%s3 + $0xfa0] sm:$0xff]
  %v875 = vld [vmem:[%s3 + $0xfa8] sm:$0xff]
  %v876 = vld [vmem:[%s3 + $0xfb0] sm:$0xff]
  %v877 = vld [vmem:[%s3 + $0xfb8] sm:$0xff]
  %v878 = vld [vmem:[%s3 + $0xfc0] sm:$0xff]
  %v879 = vld [vmem:[%s3 + $0xfc8] sm:$0xff]
  %v880 = vld [vmem:[%s3 + $0xfd0] sm:$0xff]
  %v881 = vld [vmem:[%s3 + $0xfd8] sm:$0xff]
  %v882 = vld [vmem:[%s3 + $0xfe0] sm:$0xff]
  %v883 = vld [vmem:[%s3 + $0xfe8] sm:$0xff]
  %v884 = vld [vmem:[%s3 + $0xff0] sm:$0xff]
  %v885 = vld [vmem:[%s3 + $0xff8] sm:$0xff]
  %v886 = vld [vmem:[%s4] sm:$0xff]
  %v888 = vlaneseq
  %v889 = vshrl.u32 %v888, 7
  %v890 = vsub.s32 0, %v889
  %v891 = vrot.slane %v886, %v890
  %v892 = vlaneseq
  %v893 = vshrl.u32 %v892, 7
  %v894 = vsub.s32 1, %v893
  %v895 = vrot.slane %v886, %v894
  %v896 = vlaneseq
  %v897 = vshrl.u32 %v896, 7
  %v898 = vsub.s32 2, %v897
  %v899 = vrot.slane %v886, %v898
  %v900 = vlaneseq
  %v901 = vshrl.u32 %v900, 7
  %v902 = vsub.s32 3, %v901
  %v903 = vrot.slane %v886, %v902
  %v904 = vlaneseq
  %v905 = vshrl.u32 %v904, 7
  %v906 = vsub.s32 4, %v905
  %v907 = vrot.slane %v886, %v906
  %v908 = vlaneseq
  %v909 = vshrl.u32 %v908, 7
  %v910 = vsub.s32 5, %v909
  %v911 = vrot.slane %v886, %v910
  %v912 = vlaneseq
  %v913 = vshrl.u32 %v912, 7
  %v914 = vsub.s32 6, %v913
  %v915 = vrot.slane %v886, %v914
  %v916 = vlaneseq
  %v917 = vshrl.u32 %v916, 7
  %v918 = vsub.s32 7, %v917
  %v919 = vrot.slane %v886, %v918
  %v1440 = vunpack.c.l.b16 %v374
  %v1441 = vunpack.c.h.b16 %v374
  %v1442 = vunpack.c.l.b16 %v375
  %v1443 = vunpack.c.h.b16 %v375
  %v1444 = vunpack.c.l.b16 %v376
  %v1445 = vunpack.c.h.b16 %v376
  %v1446 = vunpack.c.l.b16 %v377
  %v1447 = vunpack.c.h.b16 %v377
  %v1448 = vunpack.c.l.b16 %v378
  %v1449 = vunpack.c.h.b16 %v378
  %v1450 = vunpack.c.l.b16 %v379
  %v1451 = vunpack.c.h.b16 %v379
  %v1452 = vunpack.c.l.b16 %v380
  %v1453 = vunpack.c.h.b16 %v380
  %v1454 = vunpack.c.l.b16 %v381
  %v1455 = vunpack.c.h.b16 %v381
  %v1456 = vunpack.c.l.b16 %v382
  %v1457 = vunpack.c.h.b16 %v382
  %v1458 = vunpack.c.l.b16 %v383
  %v1459 = vunpack.c.h.b16 %v383
  %v1460 = vunpack.c.l.b16 %v384
  %v1461 = vunpack.c.h.b16 %v384
  %v1462 = vunpack.c.l.b16 %v385
  %v1463 = vunpack.c.h.b16 %v385
  %v1464 = vunpack.c.l.b16 %v386
  %v1465 = vunpack.c.h.b16 %v386
  %v1466 = vunpack.c.l.b16 %v387
  %v1467 = vunpack.c.h.b16 %v387
  %v1468 = vunpack.c.l.b16 %v388
  %v1469 = vunpack.c.h.b16 %v388
  %v1470 = vunpack.c.l.b16 %v389
  %v1471 = vunpack.c.h.b16 %v389
  %v1472 = vunpack.c.l.b16 %v390
  %v1473 = vunpack.c.h.b16 %v390
  %v1474 = vunpack.c.l.b16 %v391
  %v1475 = vunpack.c.h.b16 %v391
  %v1476 = vunpack.c.l.b16 %v392
  %v1477 = vunpack.c.h.b16 %v392
  %v1478 = vunpack.c.l.b16 %v393
  %v1479 = vunpack.c.h.b16 %v393
  %v1480 = vunpack.c.l.b16 %v394
  %v1481 = vunpack.c.h.b16 %v394
  %v1482 = vunpack.c.l.b16 %v395
  %v1483 = vunpack.c.h.b16 %v395
  %v1484 = vunpack.c.l.b16 %v396
  %v1485 = vunpack.c.h.b16 %v396
  %v1486 = vunpack.c.l.b16 %v397
  %v1487 = vunpack.c.h.b16 %v397
  %v1488 = vunpack.c.l.b16 %v398
  %v1489 = vunpack.c.h.b16 %v398
  %v1490 = vunpack.c.l.b16 %v399
  %v1491 = vunpack.c.h.b16 %v399
  %v1492 = vunpack.c.l.b16 %v400
  %v1493 = vunpack.c.h.b16 %v400
  %v1494 = vunpack.c.l.b16 %v401
  %v1495 = vunpack.c.h.b16 %v401
  %v1496 = vunpack.c.l.b16 %v402
  %v1497 = vunpack.c.h.b16 %v402
  %v1498 = vunpack.c.l.b16 %v403
  %v1499 = vunpack.c.h.b16 %v403
  %v1500 = vunpack.c.l.b16 %v404
  %v1501 = vunpack.c.h.b16 %v404
  %v1502 = vunpack.c.l.b16 %v405
  %v1503 = vunpack.c.h.b16 %v405
  %v1504 = vunpack.c.l.b16 %v406
  %v1505 = vunpack.c.h.b16 %v406
  %v1506 = vunpack.c.l.b16 %v407
  %v1507 = vunpack.c.h.b16 %v407
  %v1508 = vunpack.c.l.b16 %v408
  %v1509 = vunpack.c.h.b16 %v408
  %v1510 = vunpack.c.l.b16 %v409
  %v1511 = vunpack.c.h.b16 %v409
  %v1512 = vunpack.c.l.b16 %v410
  %v1513 = vunpack.c.h.b16 %v410
  %v1514 = vunpack.c.l.b16 %v411
  %v1515 = vunpack.c.h.b16 %v411
  %v1516 = vunpack.c.l.b16 %v412
  %v1517 = vunpack.c.h.b16 %v412
  %v1518 = vunpack.c.l.b16 %v413
  %v1519 = vunpack.c.h.b16 %v413
  %v1520 = vunpack.c.l.b16 %v414
  %v1521 = vunpack.c.h.b16 %v414
  %v1522 = vunpack.c.l.b16 %v415
  %v1523 = vunpack.c.h.b16 %v415
  %v1524 = vunpack.c.l.b16 %v416
  %v1525 = vunpack.c.h.b16 %v416
  %v1526 = vunpack.c.l.b16 %v417
  %v1527 = vunpack.c.h.b16 %v417
  %v1528 = vunpack.c.l.b16 %v418
  %v1529 = vunpack.c.h.b16 %v418
  %v1530 = vunpack.c.l.b16 %v419
  %v1531 = vunpack.c.h.b16 %v419
  %v1532 = vunpack.c.l.b16 %v420
  %v1533 = vunpack.c.h.b16 %v420
  %v1534 = vunpack.c.l.b16 %v421
  %v1535 = vunpack.c.h.b16 %v421
  %v1536 = vunpack.c.l.b16 %v422
  %v1537 = vunpack.c.h.b16 %v422
  %v1538 = vunpack.c.l.b16 %v423
  %v1539 = vunpack.c.h.b16 %v423
  %v1540 = vunpack.c.l.b16 %v424
  %v1541 = vunpack.c.h.b16 %v424
  %v1542 = vunpack.c.l.b16 %v425
  %v1543 = vunpack.c.h.b16 %v425
  %v1544 = vunpack.c.l.b16 %v426
  %v1545 = vunpack.c.h.b16 %v426
  %v1546 = vunpack.c.l.b16 %v427
  %v1547 = vunpack.c.h.b16 %v427
  %v1548 = vunpack.c.l.b16 %v428
  %v1549 = vunpack.c.h.b16 %v428
  %v1550 = vunpack.c.l.b16 %v429
  %v1551 = vunpack.c.h.b16 %v429
  %v1552 = vunpack.c.l.b16 %v430
  %v1553 = vunpack.c.h.b16 %v430
  %v1554 = vunpack.c.l.b16 %v431
  %v1555 = vunpack.c.h.b16 %v431
  %v1556 = vunpack.c.l.b16 %v432
  %v1557 = vunpack.c.h.b16 %v432
  %v1558 = vunpack.c.l.b16 %v433
  %v1559 = vunpack.c.h.b16 %v433
  %v1560 = vunpack.c.l.b16 %v434
  %v1561 = vunpack.c.h.b16 %v434
  %v1562 = vunpack.c.l.b16 %v435
  %v1563 = vunpack.c.h.b16 %v435
  %v1564 = vunpack.c.l.b16 %v436
  %v1565 = vunpack.c.h.b16 %v436
  %v1566 = vunpack.c.l.b16 %v437
  %v1567 = vunpack.c.h.b16 %v437
  %v1568 = vunpack.c.l.b16 %v438
  %v1569 = vunpack.c.h.b16 %v438
  %v1570 = vunpack.c.l.b16 %v439
  %v1571 = vunpack.c.h.b16 %v439
  %v1572 = vunpack.c.l.b16 %v440
  %v1573 = vunpack.c.h.b16 %v440
  %v1574 = vunpack.c.l.b16 %v441
  %v1575 = vunpack.c.h.b16 %v441
  %v1576 = vunpack.c.l.b16 %v442
  %v1577 = vunpack.c.h.b16 %v442
  %v1578 = vunpack.c.l.b16 %v443
  %v1579 = vunpack.c.h.b16 %v443
  %v1580 = vunpack.c.l.b16 %v444
  %v1581 = vunpack.c.h.b16 %v444
  %v1582 = vunpack.c.l.b16 %v445
  %v1583 = vunpack.c.h.b16 %v445
  %v1584 = vunpack.c.l.b16 %v446
  %v1585 = vunpack.c.h.b16 %v446
  %v1586 = vunpack.c.l.b16 %v447
  %v1587 = vunpack.c.h.b16 %v447
  %v1588 = vunpack.c.l.b16 %v448
  %v1589 = vunpack.c.h.b16 %v448
  %v1590 = vunpack.c.l.b16 %v449
  %v1591 = vunpack.c.h.b16 %v449
  %v1592 = vunpack.c.l.b16 %v450
  %v1593 = vunpack.c.h.b16 %v450
  %v1594 = vunpack.c.l.b16 %v451
  %v1595 = vunpack.c.h.b16 %v451
  %v1596 = vunpack.c.l.b16 %v452
  %v1597 = vunpack.c.h.b16 %v452
  %v1598 = vunpack.c.l.b16 %v453
  %v1599 = vunpack.c.h.b16 %v453
  %v1600 = vunpack.c.l.b16 %v454
  %v1601 = vunpack.c.h.b16 %v454
  %v1602 = vunpack.c.l.b16 %v455
  %v1603 = vunpack.c.h.b16 %v455
  %v1604 = vunpack.c.l.b16 %v456
  %v1605 = vunpack.c.h.b16 %v456
  %v1606 = vunpack.c.l.b16 %v457
  %v1607 = vunpack.c.h.b16 %v457
  %v1608 = vunpack.c.l.b16 %v458
  %v1609 = vunpack.c.h.b16 %v458
  %v1610 = vunpack.c.l.b16 %v459
  %v1611 = vunpack.c.h.b16 %v459
  %v1612 = vunpack.c.l.b16 %v460
  %v1613 = vunpack.c.h.b16 %v460
  %v1614 = vunpack.c.l.b16 %v461
  %v1615 = vunpack.c.h.b16 %v461
  %v1616 = vunpack.c.l.b16 %v462
  %v1617 = vunpack.c.h.b16 %v462
  %v1618 = vunpack.c.l.b16 %v463
  %v1619 = vunpack.c.h.b16 %v463
  %v1620 = vunpack.c.l.b16 %v464
  %v1621 = vunpack.c.h.b16 %v464
  %v1622 = vunpack.c.l.b16 %v465
  %v1623 = vunpack.c.h.b16 %v465
  %v1624 = vunpack.c.l.b16 %v466
  %v1625 = vunpack.c.h.b16 %v466
  %v1626 = vunpack.c.l.b16 %v467
  %v1627 = vunpack.c.h.b16 %v467
  %v1628 = vunpack.c.l.b16 %v468
  %v1629 = vunpack.c.h.b16 %v468
  %v1630 = vunpack.c.l.b16 %v469
  %v1631 = vunpack.c.h.b16 %v469
  %v1632 = vunpack.c.l.b16 %v470
  %v1633 = vunpack.c.h.b16 %v470
  %v1634 = vunpack.c.l.b16 %v471
  %v1635 = vunpack.c.h.b16 %v471
  %v1636 = vunpack.c.l.b16 %v472
  %v1637 = vunpack.c.h.b16 %v472
  %v1638 = vunpack.c.l.b16 %v473
  %v1639 = vunpack.c.h.b16 %v473
  %v1640 = vunpack.c.l.b16 %v474
  %v1641 = vunpack.c.h.b16 %v474
  %v1642 = vunpack.c.l.b16 %v475
  %v1643 = vunpack.c.h.b16 %v475
  %v1644 = vunpack.c.l.b16 %v476
  %v1645 = vunpack.c.h.b16 %v476
  %v1646 = vunpack.c.l.b16 %v477
  %v1647 = vunpack.c.h.b16 %v477
  %v1648 = vunpack.c.l.b16 %v478
  %v1649 = vunpack.c.h.b16 %v478
  %v1650 = vunpack.c.l.b16 %v479
  %v1651 = vunpack.c.h.b16 %v479
  %v1652 = vunpack.c.l.b16 %v480
  %v1653 = vunpack.c.h.b16 %v480
  %v1654 = vunpack.c.l.b16 %v481
  %v1655 = vunpack.c.h.b16 %v481
  %v1656 = vunpack.c.l.b16 %v482
  %v1657 = vunpack.c.h.b16 %v482
  %v1658 = vunpack.c.l.b16 %v483
  %v1659 = vunpack.c.h.b16 %v483
  %v1660 = vunpack.c.l.b16 %v484
  %v1661 = vunpack.c.h.b16 %v484
  %v1662 = vunpack.c.l.b16 %v485
  %v1663 = vunpack.c.h.b16 %v485
  %v1664 = vunpack.c.l.b16 %v486
  %v1665 = vunpack.c.h.b16 %v486
  %v1666 = vunpack.c.l.b16 %v487
  %v1667 = vunpack.c.h.b16 %v487
  %v1668 = vunpack.c.l.b16 %v488
  %v1669 = vunpack.c.h.b16 %v488
  %v1670 = vunpack.c.l.b16 %v489
  %v1671 = vunpack.c.h.b16 %v489
  %v1672 = vunpack.c.l.b16 %v490
  %v1673 = vunpack.c.h.b16 %v490
  %v1674 = vunpack.c.l.b16 %v491
  %v1675 = vunpack.c.h.b16 %v491
  %v1676 = vunpack.c.l.b16 %v492
  %v1677 = vunpack.c.h.b16 %v492
  %v1678 = vunpack.c.l.b16 %v493
  %v1679 = vunpack.c.h.b16 %v493
  %v1680 = vunpack.c.l.b16 %v494
  %v1681 = vunpack.c.h.b16 %v494
  %v1682 = vunpack.c.l.b16 %v495
  %v1683 = vunpack.c.h.b16 %v495
  %v1684 = vunpack.c.l.b16 %v496
  %v1685 = vunpack.c.h.b16 %v496
  %v1686 = vunpack.c.l.b16 %v497
  %v1687 = vunpack.c.h.b16 %v497
  %v1688 = vunpack.c.l.b16 %v498
  %v1689 = vunpack.c.h.b16 %v498
  %v1690 = vunpack.c.l.b16 %v499
  %v1691 = vunpack.c.h.b16 %v499
  %v1692 = vunpack.c.l.b16 %v500
  %v1693 = vunpack.c.h.b16 %v500
  %v1694 = vunpack.c.l.b16 %v501
  %v1695 = vunpack.c.h.b16 %v501
  %v1696 = vunpack.c.l.b16 %v502
  %v1697 = vunpack.c.h.b16 %v502
  %v1698 = vunpack.c.l.b16 %v503
  %v1699 = vunpack.c.h.b16 %v503
  %v1700 = vunpack.c.l.b16 %v504
  %v1701 = vunpack.c.h.b16 %v504
  %v1702 = vunpack.c.l.b16 %v505
  %v1703 = vunpack.c.h.b16 %v505
  %v1704 = vunpack.c.l.b16 %v506
  %v1705 = vunpack.c.h.b16 %v506
  %v1706 = vunpack.c.l.b16 %v507
  %v1707 = vunpack.c.h.b16 %v507
  %v1708 = vunpack.c.l.b16 %v508
  %v1709 = vunpack.c.h.b16 %v508
  %v1710 = vunpack.c.l.b16 %v509
  %v1711 = vunpack.c.h.b16 %v509
  %v1712 = vunpack.c.l.b16 %v510
  %v1713 = vunpack.c.h.b16 %v510
  %v1714 = vunpack.c.l.b16 %v511
  %v1715 = vunpack.c.h.b16 %v511
  %v1716 = vunpack.c.l.b16 %v512
  %v1717 = vunpack.c.h.b16 %v512
  %v1718 = vunpack.c.l.b16 %v513
  %v1719 = vunpack.c.h.b16 %v513
  %v1720 = vunpack.c.l.b16 %v514
  %v1721 = vunpack.c.h.b16 %v514
  %v1722 = vunpack.c.l.b16 %v515
  %v1723 = vunpack.c.h.b16 %v515
  %v1724 = vunpack.c.l.b16 %v516
  %v1725 = vunpack.c.h.b16 %v516
  %v1726 = vunpack.c.l.b16 %v517
  %v1727 = vunpack.c.h.b16 %v517
  %v1728 = vunpack.c.l.b16 %v518
  %v1729 = vunpack.c.h.b16 %v518
  %v1730 = vunpack.c.l.b16 %v519
  %v1731 = vunpack.c.h.b16 %v519
  %v1732 = vunpack.c.l.b16 %v520
  %v1733 = vunpack.c.h.b16 %v520
  %v1734 = vunpack.c.l.b16 %v521
  %v1735 = vunpack.c.h.b16 %v521
  %v1736 = vunpack.c.l.b16 %v522
  %v1737 = vunpack.c.h.b16 %v522
  %v1738 = vunpack.c.l.b16 %v523
  %v1739 = vunpack.c.h.b16 %v523
  %v1740 = vunpack.c.l.b16 %v524
  %v1741 = vunpack.c.h.b16 %v524
  %v1742 = vunpack.c.l.b16 %v525
  %v1743 = vunpack.c.h.b16 %v525
  %v1744 = vunpack.c.l.b16 %v526
  %v1745 = vunpack.c.h.b16 %v526
  %v1746 = vunpack.c.l.b16 %v527
  %v1747 = vunpack.c.h.b16 %v527
  %v1748 = vunpack.c.l.b16 %v528
  %v1749 = vunpack.c.h.b16 %v528
  %v1750 = vunpack.c.l.b16 %v529
  %v1751 = vunpack.c.h.b16 %v529
  %v1752 = vunpack.c.l.b16 %v530
  %v1753 = vunpack.c.h.b16 %v530
  %v1754 = vunpack.c.l.b16 %v531
  %v1755 = vunpack.c.h.b16 %v531
  %v1756 = vunpack.c.l.b16 %v532
  %v1757 = vunpack.c.h.b16 %v532
  %v1758 = vunpack.c.l.b16 %v533
  %v1759 = vunpack.c.h.b16 %v533
  %v1760 = vunpack.c.l.b16 %v534
  %v1761 = vunpack.c.h.b16 %v534
  %v1762 = vunpack.c.l.b16 %v535
  %v1763 = vunpack.c.h.b16 %v535
  %v1764 = vunpack.c.l.b16 %v536
  %v1765 = vunpack.c.h.b16 %v536
  %v1766 = vunpack.c.l.b16 %v537
  %v1767 = vunpack.c.h.b16 %v537
  %v1768 = vunpack.c.l.b16 %v538
  %v1769 = vunpack.c.h.b16 %v538
  %v1770 = vunpack.c.l.b16 %v539
  %v1771 = vunpack.c.h.b16 %v539
  %v1772 = vunpack.c.l.b16 %v540
  %v1773 = vunpack.c.h.b16 %v540
  %v1774 = vunpack.c.l.b16 %v541
  %v1775 = vunpack.c.h.b16 %v541
  %v1776 = vunpack.c.l.b16 %v542
  %v1777 = vunpack.c.h.b16 %v542
  %v1778 = vunpack.c.l.b16 %v543
  %v1779 = vunpack.c.h.b16 %v543
  %v1780 = vunpack.c.l.b16 %v544
  %v1781 = vunpack.c.h.b16 %v544
  %v1782 = vunpack.c.l.b16 %v545
  %v1783 = vunpack.c.h.b16 %v545
  %v1784 = vunpack.c.l.b16 %v546
  %v1785 = vunpack.c.h.b16 %v546
  %v1786 = vunpack.c.l.b16 %v547
  %v1787 = vunpack.c.h.b16 %v547
  %v1788 = vunpack.c.l.b16 %v548
  %v1789 = vunpack.c.h.b16 %v548
  %v1790 = vunpack.c.l.b16 %v549
  %v1791 = vunpack.c.h.b16 %v549
  %v1792 = vunpack.c.l.b16 %v550
  %v1793 = vunpack.c.h.b16 %v550
  %v1794 = vunpack.c.l.b16 %v551
  %v1795 = vunpack.c.h.b16 %v551
  %v1796 = vunpack.c.l.b16 %v552
  %v1797 = vunpack.c.h.b16 %v552
  %v1798 = vunpack.c.l.b16 %v553
  %v1799 = vunpack.c.h.b16 %v553
  %v1800 = vunpack.c.l.b16 %v554
  %v1801 = vunpack.c.h.b16 %v554
  %v1802 = vunpack.c.l.b16 %v555
  %v1803 = vunpack.c.h.b16 %v555
  %v1804 = vunpack.c.l.b16 %v556
  %v1805 = vunpack.c.h.b16 %v556
  %v1806 = vunpack.c.l.b16 %v557
  %v1807 = vunpack.c.h.b16 %v557
  %v1808 = vunpack.c.l.b16 %v558
  %v1809 = vunpack.c.h.b16 %v558
  %v1810 = vunpack.c.l.b16 %v559
  %v1811 = vunpack.c.h.b16 %v559
  %v1812 = vunpack.c.l.b16 %v560
  %v1813 = vunpack.c.h.b16 %v560
  %v1814 = vunpack.c.l.b16 %v561
  %v1815 = vunpack.c.h.b16 %v561
  %v1816 = vunpack.c.l.b16 %v562
  %v1817 = vunpack.c.h.b16 %v562
  %v1818 = vunpack.c.l.b16 %v563
  %v1819 = vunpack.c.h.b16 %v563
  %v1820 = vunpack.c.l.b16 %v564
  %v1821 = vunpack.c.h.b16 %v564
  %v1822 = vunpack.c.l.b16 %v565
  %v1823 = vunpack.c.h.b16 %v565
  %v1824 = vunpack.c.l.b16 %v566
  %v1825 = vunpack.c.h.b16 %v566
  %v1826 = vunpack.c.l.b16 %v567
  %v1827 = vunpack.c.h.b16 %v567
  %v1828 = vunpack.c.l.b16 %v568
  %v1829 = vunpack.c.h.b16 %v568
  %v1830 = vunpack.c.l.b16 %v569
  %v1831 = vunpack.c.h.b16 %v569
  %v1832 = vunpack.c.l.b16 %v570
  %v1833 = vunpack.c.h.b16 %v570
  %v1834 = vunpack.c.l.b16 %v571
  %v1835 = vunpack.c.h.b16 %v571
  %v1836 = vunpack.c.l.b16 %v572
  %v1837 = vunpack.c.h.b16 %v572
  %v1838 = vunpack.c.l.b16 %v573
  %v1839 = vunpack.c.h.b16 %v573
  %v1840 = vunpack.c.l.b16 %v574
  %v1841 = vunpack.c.h.b16 %v574
  %v1842 = vunpack.c.l.b16 %v575
  %v1843 = vunpack.c.h.b16 %v575
  %v1844 = vunpack.c.l.b16 %v576
  %v1845 = vunpack.c.h.b16 %v576
  %v1846 = vunpack.c.l.b16 %v577
  %v1847 = vunpack.c.h.b16 %v577
  %v1848 = vunpack.c.l.b16 %v578
  %v1849 = vunpack.c.h.b16 %v578
  %v1850 = vunpack.c.l.b16 %v579
  %v1851 = vunpack.c.h.b16 %v579
  %v1852 = vunpack.c.l.b16 %v580
  %v1853 = vunpack.c.h.b16 %v580
  %v1854 = vunpack.c.l.b16 %v581
  %v1855 = vunpack.c.h.b16 %v581
  %v1856 = vunpack.c.l.b16 %v582
  %v1857 = vunpack.c.h.b16 %v582
  %v1858 = vunpack.c.l.b16 %v583
  %v1859 = vunpack.c.h.b16 %v583
  %v1860 = vunpack.c.l.b16 %v584
  %v1861 = vunpack.c.h.b16 %v584
  %v1862 = vunpack.c.l.b16 %v585
  %v1863 = vunpack.c.h.b16 %v585
  %v1864 = vunpack.c.l.b16 %v586
  %v1865 = vunpack.c.h.b16 %v586
  %v1866 = vunpack.c.l.b16 %v587
  %v1867 = vunpack.c.h.b16 %v587
  %v1868 = vunpack.c.l.b16 %v588
  %v1869 = vunpack.c.h.b16 %v588
  %v1870 = vunpack.c.l.b16 %v589
  %v1871 = vunpack.c.h.b16 %v589
  %v1872 = vunpack.c.l.b16 %v590
  %v1873 = vunpack.c.h.b16 %v590
  %v1874 = vunpack.c.l.b16 %v591
  %v1875 = vunpack.c.h.b16 %v591
  %v1876 = vunpack.c.l.b16 %v592
  %v1877 = vunpack.c.h.b16 %v592
  %v1878 = vunpack.c.l.b16 %v593
  %v1879 = vunpack.c.h.b16 %v593
  %v1880 = vunpack.c.l.b16 %v594
  %v1881 = vunpack.c.h.b16 %v594
  %v1882 = vunpack.c.l.b16 %v595
  %v1883 = vunpack.c.h.b16 %v595
  %v1884 = vunpack.c.l.b16 %v596
  %v1885 = vunpack.c.h.b16 %v596
  %v1886 = vunpack.c.l.b16 %v597
  %v1887 = vunpack.c.h.b16 %v597
  %v1888 = vunpack.c.l.b16 %v598
  %v1889 = vunpack.c.h.b16 %v598
  %v1890 = vunpack.c.l.b16 %v599
  %v1891 = vunpack.c.h.b16 %v599
  %v1892 = vunpack.c.l.b16 %v600
  %v1893 = vunpack.c.h.b16 %v600
  %v1894 = vunpack.c.l.b16 %v601
  %v1895 = vunpack.c.h.b16 %v601
  %v1896 = vunpack.c.l.b16 %v602
  %v1897 = vunpack.c.h.b16 %v602
  %v1898 = vunpack.c.l.b16 %v603
  %v1899 = vunpack.c.h.b16 %v603
  %v1900 = vunpack.c.l.b16 %v604
  %v1901 = vunpack.c.h.b16 %v604
  %v1902 = vunpack.c.l.b16 %v605
  %v1903 = vunpack.c.h.b16 %v605
  %v1904 = vunpack.c.l.b16 %v606
  %v1905 = vunpack.c.h.b16 %v606
  %v1906 = vunpack.c.l.b16 %v607
  %v1907 = vunpack.c.h.b16 %v607
  %v1908 = vunpack.c.l.b16 %v608
  %v1909 = vunpack.c.h.b16 %v608
  %v1910 = vunpack.c.l.b16 %v609
  %v1911 = vunpack.c.h.b16 %v609
  %v1912 = vunpack.c.l.b16 %v610
  %v1913 = vunpack.c.h.b16 %v610
  %v1914 = vunpack.c.l.b16 %v611
  %v1915 = vunpack.c.h.b16 %v611
  %v1916 = vunpack.c.l.b16 %v612
  %v1917 = vunpack.c.h.b16 %v612
  %v1918 = vunpack.c.l.b16 %v613
  %v1919 = vunpack.c.h.b16 %v613
  %v1920 = vunpack.c.l.b16 %v614
  %v1921 = vunpack.c.h.b16 %v614
  %v1922 = vunpack.c.l.b16 %v615
  %v1923 = vunpack.c.h.b16 %v615
  %v1924 = vunpack.c.l.b16 %v616
  %v1925 = vunpack.c.h.b16 %v616
  %v1926 = vunpack.c.l.b16 %v617
  %v1927 = vunpack.c.h.b16 %v617
  %v1928 = vunpack.c.l.b16 %v618
  %v1929 = vunpack.c.h.b16 %v618
  %v1930 = vunpack.c.l.b16 %v619
  %v1931 = vunpack.c.h.b16 %v619
  %v1932 = vunpack.c.l.b16 %v620
  %v1933 = vunpack.c.h.b16 %v620
  %v1934 = vunpack.c.l.b16 %v621
  %v1935 = vunpack.c.h.b16 %v621
  %v1936 = vunpack.c.l.b16 %v622
  %v1937 = vunpack.c.h.b16 %v622
  %v1938 = vunpack.c.l.b16 %v623
  %v1939 = vunpack.c.h.b16 %v623
  %v1940 = vunpack.c.l.b16 %v624
  %v1941 = vunpack.c.h.b16 %v624
  %v1942 = vunpack.c.l.b16 %v625
  %v1943 = vunpack.c.h.b16 %v625
  %v1944 = vunpack.c.l.b16 %v626
  %v1945 = vunpack.c.h.b16 %v626
  %v1946 = vunpack.c.l.b16 %v627
  %v1947 = vunpack.c.h.b16 %v627
  %v1948 = vunpack.c.l.b16 %v628
  %v1949 = vunpack.c.h.b16 %v628
  %v1950 = vunpack.c.l.b16 %v629
  %v1951 = vunpack.c.h.b16 %v629
  %v1952 = vunpack.c.l.b16 %v630
  %v1953 = vunpack.c.h.b16 %v630
  %v1954 = vunpack.c.l.b16 %v631
  %v1955 = vunpack.c.h.b16 %v631
  %v1956 = vunpack.c.l.b16 %v632
  %v1957 = vunpack.c.h.b16 %v632
  %v1958 = vunpack.c.l.b16 %v633
  %v1959 = vunpack.c.h.b16 %v633
  %v1960 = vunpack.c.l.b16 %v634
  %v1961 = vunpack.c.h.b16 %v634
  %v1962 = vunpack.c.l.b16 %v635
  %v1963 = vunpack.c.h.b16 %v635
  %v1964 = vunpack.c.l.b16 %v636
  %v1965 = vunpack.c.h.b16 %v636
  %v1966 = vunpack.c.l.b16 %v637
  %v1967 = vunpack.c.h.b16 %v637
  %v1968 = vunpack.c.l.b16 %v638
  %v1969 = vunpack.c.h.b16 %v638
  %v1970 = vunpack.c.l.b16 %v639
  %v1971 = vunpack.c.h.b16 %v639
  %v1972 = vunpack.c.l.b16 %v640
  %v1973 = vunpack.c.h.b16 %v640
  %v1974 = vunpack.c.l.b16 %v641
  %v1975 = vunpack.c.h.b16 %v641
  %v1976 = vunpack.c.l.b16 %v642
  %v1977 = vunpack.c.h.b16 %v642
  %v1978 = vunpack.c.l.b16 %v643
  %v1979 = vunpack.c.h.b16 %v643
  %v1980 = vunpack.c.l.b16 %v644
  %v1981 = vunpack.c.h.b16 %v644
  %v1982 = vunpack.c.l.b16 %v645
  %v1983 = vunpack.c.h.b16 %v645
  %v1984 = vunpack.c.l.b16 %v646
  %v1985 = vunpack.c.h.b16 %v646
  %v1986 = vunpack.c.l.b16 %v647
  %v1987 = vunpack.c.h.b16 %v647
  %v1988 = vunpack.c.l.b16 %v648
  %v1989 = vunpack.c.h.b16 %v648
  %v1990 = vunpack.c.l.b16 %v649
  %v1991 = vunpack.c.h.b16 %v649
  %v1992 = vunpack.c.l.b16 %v650
  %v1993 = vunpack.c.h.b16 %v650
  %v1994 = vunpack.c.l.b16 %v651
  %v1995 = vunpack.c.h.b16 %v651
  %v1996 = vunpack.c.l.b16 %v652
  %v1997 = vunpack.c.h.b16 %v652
  %v1998 = vunpack.c.l.b16 %v653
  %v1999 = vunpack.c.h.b16 %v653
  %v2000 = vunpack.c.l.b16 %v654
  %v2001 = vunpack.c.h.b16 %v654
  %v2002 = vunpack.c.l.b16 %v655
  %v2003 = vunpack.c.h.b16 %v655
  %v2004 = vunpack.c.l.b16 %v656
  %v2005 = vunpack.c.h.b16 %v656
  %v2006 = vunpack.c.l.b16 %v657
  %v2007 = vunpack.c.h.b16 %v657
  %v2008 = vunpack.c.l.b16 %v658
  %v2009 = vunpack.c.h.b16 %v658
  %v2010 = vunpack.c.l.b16 %v659
  %v2011 = vunpack.c.h.b16 %v659
  %v2012 = vunpack.c.l.b16 %v660
  %v2013 = vunpack.c.h.b16 %v660
  %v2014 = vunpack.c.l.b16 %v661
  %v2015 = vunpack.c.h.b16 %v661
  %v2016 = vunpack.c.l.b16 %v662
  %v2017 = vunpack.c.h.b16 %v662
  %v2018 = vunpack.c.l.b16 %v663
  %v2019 = vunpack.c.h.b16 %v663
  %v2020 = vunpack.c.l.b16 %v664
  %v2021 = vunpack.c.h.b16 %v664
  %v2022 = vunpack.c.l.b16 %v665
  %v2023 = vunpack.c.h.b16 %v665
  %v2024 = vunpack.c.l.b16 %v666
  %v2025 = vunpack.c.h.b16 %v666
  %v2026 = vunpack.c.l.b16 %v667
  %v2027 = vunpack.c.h.b16 %v667
  %v2028 = vunpack.c.l.b16 %v668
  %v2029 = vunpack.c.h.b16 %v668
  %v2030 = vunpack.c.l.b16 %v669
  %v2031 = vunpack.c.h.b16 %v669
  %v2032 = vunpack.c.l.b16 %v670
  %v2033 = vunpack.c.h.b16 %v670
  %v2034 = vunpack.c.l.b16 %v671
  %v2035 = vunpack.c.h.b16 %v671
  %v2036 = vunpack.c.l.b16 %v672
  %v2037 = vunpack.c.h.b16 %v672
  %v2038 = vunpack.c.l.b16 %v673
  %v2039 = vunpack.c.h.b16 %v673
  %v2040 = vunpack.c.l.b16 %v674
  %v2041 = vunpack.c.h.b16 %v674
  %v2042 = vunpack.c.l.b16 %v675
  %v2043 = vunpack.c.h.b16 %v675
  %v2044 = vunpack.c.l.b16 %v676
  %v2045 = vunpack.c.h.b16 %v676
  %v2046 = vunpack.c.l.b16 %v677
  %v2047 = vunpack.c.h.b16 %v677
  %v2048 = vunpack.c.l.b16 %v678
  %v2049 = vunpack.c.h.b16 %v678
  %v2050 = vunpack.c.l.b16 %v679
  %v2051 = vunpack.c.h.b16 %v679
  %v2052 = vunpack.c.l.b16 %v680
  %v2053 = vunpack.c.h.b16 %v680
  %v2054 = vunpack.c.l.b16 %v681
  %v2055 = vunpack.c.h.b16 %v681
  %v2056 = vunpack.c.l.b16 %v682
  %v2057 = vunpack.c.h.b16 %v682
  %v2058 = vunpack.c.l.b16 %v683
  %v2059 = vunpack.c.h.b16 %v683
  %v2060 = vunpack.c.l.b16 %v684
  %v2061 = vunpack.c.h.b16 %v684
  %v2062 = vunpack.c.l.b16 %v685
  %v2063 = vunpack.c.h.b16 %v685
  %v2064 = vunpack.c.l.b16 %v686
  %v2065 = vunpack.c.h.b16 %v686
  %v2066 = vunpack.c.l.b16 %v687
  %v2067 = vunpack.c.h.b16 %v687
  %v2068 = vunpack.c.l.b16 %v688
  %v2069 = vunpack.c.h.b16 %v688
  %v2070 = vunpack.c.l.b16 %v689
  %v2071 = vunpack.c.h.b16 %v689
  %v2072 = vunpack.c.l.b16 %v690
  %v2073 = vunpack.c.h.b16 %v690
  %v2074 = vunpack.c.l.b16 %v691
  %v2075 = vunpack.c.h.b16 %v691
  %v2076 = vunpack.c.l.b16 %v692
  %v2077 = vunpack.c.h.b16 %v692
  %v2078 = vunpack.c.l.b16 %v693
  %v2079 = vunpack.c.h.b16 %v693
  %v2080 = vunpack.c.l.b16 %v694
  %v2081 = vunpack.c.h.b16 %v694
  %v2082 = vunpack.c.l.b16 %v695
  %v2083 = vunpack.c.h.b16 %v695
  %v2084 = vunpack.c.l.b16 %v696
  %v2085 = vunpack.c.h.b16 %v696
  %v2086 = vunpack.c.l.b16 %v697
  %v2087 = vunpack.c.h.b16 %v697
  %v2088 = vunpack.c.l.b16 %v698
  %v2089 = vunpack.c.h.b16 %v698
  %v2090 = vunpack.c.l.b16 %v699
  %v2091 = vunpack.c.h.b16 %v699
  %v2092 = vunpack.c.l.b16 %v700
  %v2093 = vunpack.c.h.b16 %v700
  %v2094 = vunpack.c.l.b16 %v701
  %v2095 = vunpack.c.h.b16 %v701
  %v2096 = vunpack.c.l.b16 %v702
  %v2097 = vunpack.c.h.b16 %v702
  %v2098 = vunpack.c.l.b16 %v703
  %v2099 = vunpack.c.h.b16 %v703
  %v2100 = vunpack.c.l.b16 %v704
  %v2101 = vunpack.c.h.b16 %v704
  %v2102 = vunpack.c.l.b16 %v705
  %v2103 = vunpack.c.h.b16 %v705
  %v2104 = vunpack.c.l.b16 %v706
  %v2105 = vunpack.c.h.b16 %v706
  %v2106 = vunpack.c.l.b16 %v707
  %v2107 = vunpack.c.h.b16 %v707
  %v2108 = vunpack.c.l.b16 %v708
  %v2109 = vunpack.c.h.b16 %v708
  %v2110 = vunpack.c.l.b16 %v709
  %v2111 = vunpack.c.h.b16 %v709
  %v2112 = vunpack.c.l.b16 %v710
  %v2113 = vunpack.c.h.b16 %v710
  %v2114 = vunpack.c.l.b16 %v711
  %v2115 = vunpack.c.h.b16 %v711
  %v2116 = vunpack.c.l.b16 %v712
  %v2117 = vunpack.c.h.b16 %v712
  %v2118 = vunpack.c.l.b16 %v713
  %v2119 = vunpack.c.h.b16 %v713
  %v2120 = vunpack.c.l.b16 %v714
  %v2121 = vunpack.c.h.b16 %v714
  %v2122 = vunpack.c.l.b16 %v715
  %v2123 = vunpack.c.h.b16 %v715
  %v2124 = vunpack.c.l.b16 %v716
  %v2125 = vunpack.c.h.b16 %v716
  %v2126 = vunpack.c.l.b16 %v717
  %v2127 = vunpack.c.h.b16 %v717
  %v2128 = vunpack.c.l.b16 %v718
  %v2129 = vunpack.c.h.b16 %v718
  %v2130 = vunpack.c.l.b16 %v719
  %v2131 = vunpack.c.h.b16 %v719
  %v2132 = vunpack.c.l.b16 %v720
  %v2133 = vunpack.c.h.b16 %v720
  %v2134 = vunpack.c.l.b16 %v721
  %v2135 = vunpack.c.h.b16 %v721
  %v2136 = vunpack.c.l.b16 %v722
  %v2137 = vunpack.c.h.b16 %v722
  %v2138 = vunpack.c.l.b16 %v723
  %v2139 = vunpack.c.h.b16 %v723
  %v2140 = vunpack.c.l.b16 %v724
  %v2141 = vunpack.c.h.b16 %v724
  %v2142 = vunpack.c.l.b16 %v725
  %v2143 = vunpack.c.h.b16 %v725
  %v2144 = vunpack.c.l.b16 %v726
  %v2145 = vunpack.c.h.b16 %v726
  %v2146 = vunpack.c.l.b16 %v727
  %v2147 = vunpack.c.h.b16 %v727
  %v2148 = vunpack.c.l.b16 %v728
  %v2149 = vunpack.c.h.b16 %v728
  %v2150 = vunpack.c.l.b16 %v729
  %v2151 = vunpack.c.h.b16 %v729
  %v2152 = vunpack.c.l.b16 %v730
  %v2153 = vunpack.c.h.b16 %v730
  %v2154 = vunpack.c.l.b16 %v731
  %v2155 = vunpack.c.h.b16 %v731
  %v2156 = vunpack.c.l.b16 %v732
  %v2157 = vunpack.c.h.b16 %v732
  %v2158 = vunpack.c.l.b16 %v733
  %v2159 = vunpack.c.h.b16 %v733
  %v2160 = vunpack.c.l.b16 %v734
  %v2161 = vunpack.c.h.b16 %v734
  %v2162 = vunpack.c.l.b16 %v735
  %v2163 = vunpack.c.h.b16 %v735
  %v2164 = vunpack.c.l.b16 %v736
  %v2165 = vunpack.c.h.b16 %v736
  %v2166 = vunpack.c.l.b16 %v737
  %v2167 = vunpack.c.h.b16 %v737
  %v2168 = vunpack.c.l.b16 %v738
  %v2169 = vunpack.c.h.b16 %v738
  %v2170 = vunpack.c.l.b16 %v739
  %v2171 = vunpack.c.h.b16 %v739
  %v2172 = vunpack.c.l.b16 %v740
  %v2173 = vunpack.c.h.b16 %v740
  %v2174 = vunpack.c.l.b16 %v741
  %v2175 = vunpack.c.h.b16 %v741
  %v2176 = vunpack.c.l.b16 %v742
  %v2177 = vunpack.c.h.b16 %v742
  %v2178 = vunpack.c.l.b16 %v743
  %v2179 = vunpack.c.h.b16 %v743
  %v2180 = vunpack.c.l.b16 %v744
  %v2181 = vunpack.c.h.b16 %v744
  %v2182 = vunpack.c.l.b16 %v745
  %v2183 = vunpack.c.h.b16 %v745
  %v2184 = vunpack.c.l.b16 %v746
  %v2185 = vunpack.c.h.b16 %v746
  %v2186 = vunpack.c.l.b16 %v747
  %v2187 = vunpack.c.h.b16 %v747
  %v2188 = vunpack.c.l.b16 %v748
  %v2189 = vunpack.c.h.b16 %v748
  %v2190 = vunpack.c.l.b16 %v749
  %v2191 = vunpack.c.h.b16 %v749
  %v2192 = vunpack.c.l.b16 %v750
  %v2193 = vunpack.c.h.b16 %v750
  %v2194 = vunpack.c.l.b16 %v751
  %v2195 = vunpack.c.h.b16 %v751
  %v2196 = vunpack.c.l.b16 %v752
  %v2197 = vunpack.c.h.b16 %v752
  %v2198 = vunpack.c.l.b16 %v753
  %v2199 = vunpack.c.h.b16 %v753
  %v2200 = vunpack.c.l.b16 %v754
  %v2201 = vunpack.c.h.b16 %v754
  %v2202 = vunpack.c.l.b16 %v755
  %v2203 = vunpack.c.h.b16 %v755
  %v2204 = vunpack.c.l.b16 %v756
  %v2205 = vunpack.c.h.b16 %v756
  %v2206 = vunpack.c.l.b16 %v757
  %v2207 = vunpack.c.h.b16 %v757
  %v2208 = vunpack.c.l.b16 %v758
  %v2209 = vunpack.c.h.b16 %v758
  %v2210 = vunpack.c.l.b16 %v759
  %v2211 = vunpack.c.h.b16 %v759
  %v2212 = vunpack.c.l.b16 %v760
  %v2213 = vunpack.c.h.b16 %v760
  %v2214 = vunpack.c.l.b16 %v761
  %v2215 = vunpack.c.h.b16 %v761
  %v2216 = vunpack.c.l.b16 %v762
  %v2217 = vunpack.c.h.b16 %v762
  %v2218 = vunpack.c.l.b16 %v763
  %v2219 = vunpack.c.h.b16 %v763
  %v2220 = vunpack.c.l.b16 %v764
  %v2221 = vunpack.c.h.b16 %v764
  %v2222 = vunpack.c.l.b16 %v765
  %v2223 = vunpack.c.h.b16 %v765
  %v2224 = vunpack.c.l.b16 %v766
  %v2225 = vunpack.c.h.b16 %v766
  %v2226 = vunpack.c.l.b16 %v767
  %v2227 = vunpack.c.h.b16 %v767
  %v2228 = vunpack.c.l.b16 %v768
  %v2229 = vunpack.c.h.b16 %v768
  %v2230 = vunpack.c.l.b16 %v769
  %v2231 = vunpack.c.h.b16 %v769
  %v2232 = vunpack.c.l.b16 %v770
  %v2233 = vunpack.c.h.b16 %v770
  %v2234 = vunpack.c.l.b16 %v771
  %v2235 = vunpack.c.h.b16 %v771
  %v2236 = vunpack.c.l.b16 %v772
  %v2237 = vunpack.c.h.b16 %v772
  %v2238 = vunpack.c.l.b16 %v773
  %v2239 = vunpack.c.h.b16 %v773
  %v2240 = vunpack.c.l.b16 %v774
  %v2241 = vunpack.c.h.b16 %v774
  %v2242 = vunpack.c.l.b16 %v775
  %v2243 = vunpack.c.h.b16 %v775
  %v2244 = vunpack.c.l.b16 %v776
  %v2245 = vunpack.c.h.b16 %v776
  %v2246 = vunpack.c.l.b16 %v777
  %v2247 = vunpack.c.h.b16 %v777
  %v2248 = vunpack.c.l.b16 %v778
  %v2249 = vunpack.c.h.b16 %v778
  %v2250 = vunpack.c.l.b16 %v779
  %v2251 = vunpack.c.h.b16 %v779
  %v2252 = vunpack.c.l.b16 %v780
  %v2253 = vunpack.c.h.b16 %v780
  %v2254 = vunpack.c.l.b16 %v781
  %v2255 = vunpack.c.h.b16 %v781
  %v2256 = vunpack.c.l.b16 %v782
  %v2257 = vunpack.c.h.b16 %v782
  %v2258 = vunpack.c.l.b16 %v783
  %v2259 = vunpack.c.h.b16 %v783
  %v2260 = vunpack.c.l.b16 %v784
  %v2261 = vunpack.c.h.b16 %v784
  %v2262 = vunpack.c.l.b16 %v785
  %v2263 = vunpack.c.h.b16 %v785
  %v2264 = vunpack.c.l.b16 %v786
  %v2265 = vunpack.c.h.b16 %v786
  %v2266 = vunpack.c.l.b16 %v787
  %v2267 = vunpack.c.h.b16 %v787
  %v2268 = vunpack.c.l.b16 %v788
  %v2269 = vunpack.c.h.b16 %v788
  %v2270 = vunpack.c.l.b16 %v789
  %v2271 = vunpack.c.h.b16 %v789
  %v2272 = vunpack.c.l.b16 %v790
  %v2273 = vunpack.c.h.b16 %v790
  %v2274 = vunpack.c.l.b16 %v791
  %v2275 = vunpack.c.h.b16 %v791
  %v2276 = vunpack.c.l.b16 %v792
  %v2277 = vunpack.c.h.b16 %v792
  %v2278 = vunpack.c.l.b16 %v793
  %v2279 = vunpack.c.h.b16 %v793
  %v2280 = vunpack.c.l.b16 %v794
  %v2281 = vunpack.c.h.b16 %v794
  %v2282 = vunpack.c.l.b16 %v795
  %v2283 = vunpack.c.h.b16 %v795
  %v2284 = vunpack.c.l.b16 %v796
  %v2285 = vunpack.c.h.b16 %v796
  %v2286 = vunpack.c.l.b16 %v797
  %v2287 = vunpack.c.h.b16 %v797
  %v2288 = vunpack.c.l.b16 %v798
  %v2289 = vunpack.c.h.b16 %v798
  %v2290 = vunpack.c.l.b16 %v799
  %v2291 = vunpack.c.h.b16 %v799
  %v2292 = vunpack.c.l.b16 %v800
  %v2293 = vunpack.c.h.b16 %v800
  %v2294 = vunpack.c.l.b16 %v801
  %v2295 = vunpack.c.h.b16 %v801
  %v2296 = vunpack.c.l.b16 %v802
  %v2297 = vunpack.c.h.b16 %v802
  %v2298 = vunpack.c.l.b16 %v803
  %v2299 = vunpack.c.h.b16 %v803
  %v2300 = vunpack.c.l.b16 %v804
  %v2301 = vunpack.c.h.b16 %v804
  %v2302 = vunpack.c.l.b16 %v805
  %v2303 = vunpack.c.h.b16 %v805
  %v2304 = vunpack.c.l.b16 %v806
  %v2305 = vunpack.c.h.b16 %v806
  %v2306 = vunpack.c.l.b16 %v807
  %v2307 = vunpack.c.h.b16 %v807
  %v2308 = vunpack.c.l.b16 %v808
  %v2309 = vunpack.c.h.b16 %v808
  %v2310 = vunpack.c.l.b16 %v809
  %v2311 = vunpack.c.h.b16 %v809
  %v2312 = vunpack.c.l.b16 %v810
  %v2313 = vunpack.c.h.b16 %v810
  %v2314 = vunpack.c.l.b16 %v811
  %v2315 = vunpack.c.h.b16 %v811
  %v2316 = vunpack.c.l.b16 %v812
  %v2317 = vunpack.c.h.b16 %v812
  %v2318 = vunpack.c.l.b16 %v813
  %v2319 = vunpack.c.h.b16 %v813
  %v2320 = vunpack.c.l.b16 %v814
  %v2321 = vunpack.c.h.b16 %v814
  %v2322 = vunpack.c.l.b16 %v815
  %v2323 = vunpack.c.h.b16 %v815
  %v2324 = vunpack.c.l.b16 %v816
  %v2325 = vunpack.c.h.b16 %v816
  %v2326 = vunpack.c.l.b16 %v817
  %v2327 = vunpack.c.h.b16 %v817
  %v2328 = vunpack.c.l.b16 %v818
  %v2329 = vunpack.c.h.b16 %v818
  %v2330 = vunpack.c.l.b16 %v819
  %v2331 = vunpack.c.h.b16 %v819
  %v2332 = vunpack.c.l.b16 %v820
  %v2333 = vunpack.c.h.b16 %v820
  %v2334 = vunpack.c.l.b16 %v821
  %v2335 = vunpack.c.h.b16 %v821
  %v2336 = vunpack.c.l.b16 %v822
  %v2337 = vunpack.c.h.b16 %v822
  %v2338 = vunpack.c.l.b16 %v823
  %v2339 = vunpack.c.h.b16 %v823
  %v2340 = vunpack.c.l.b16 %v824
  %v2341 = vunpack.c.h.b16 %v824
  %v2342 = vunpack.c.l.b16 %v825
  %v2343 = vunpack.c.h.b16 %v825
  %v2344 = vunpack.c.l.b16 %v826
  %v2345 = vunpack.c.h.b16 %v826
  %v2346 = vunpack.c.l.b16 %v827
  %v2347 = vunpack.c.h.b16 %v827
  %v2348 = vunpack.c.l.b16 %v828
  %v2349 = vunpack.c.h.b16 %v828
  %v2350 = vunpack.c.l.b16 %v829
  %v2351 = vunpack.c.h.b16 %v829
  %v2352 = vunpack.c.l.b16 %v830
  %v2353 = vunpack.c.h.b16 %v830
  %v2354 = vunpack.c.l.b16 %v831
  %v2355 = vunpack.c.h.b16 %v831
  %v2356 = vunpack.c.l.b16 %v832
  %v2357 = vunpack.c.h.b16 %v832
  %v2358 = vunpack.c.l.b16 %v833
  %v2359 = vunpack.c.h.b16 %v833
  %v2360 = vunpack.c.l.b16 %v834
  %v2361 = vunpack.c.h.b16 %v834
  %v2362 = vunpack.c.l.b16 %v835
  %v2363 = vunpack.c.h.b16 %v835
  %v2364 = vunpack.c.l.b16 %v836
  %v2365 = vunpack.c.h.b16 %v836
  %v2366 = vunpack.c.l.b16 %v837
  %v2367 = vunpack.c.h.b16 %v837
  %v2368 = vunpack.c.l.b16 %v838
  %v2369 = vunpack.c.h.b16 %v838
  %v2370 = vunpack.c.l.b16 %v839
  %v2371 = vunpack.c.h.b16 %v839
  %v2372 = vunpack.c.l.b16 %v840
  %v2373 = vunpack.c.h.b16 %v840
  %v2374 = vunpack.c.l.b16 %v841
  %v2375 = vunpack.c.h.b16 %v841
  %v2376 = vunpack.c.l.b16 %v842
  %v2377 = vunpack.c.h.b16 %v842
  %v2378 = vunpack.c.l.b16 %v843
  %v2379 = vunpack.c.h.b16 %v843
  %v2380 = vunpack.c.l.b16 %v844
  %v2381 = vunpack.c.h.b16 %v844
  %v2382 = vunpack.c.l.b16 %v845
  %v2383 = vunpack.c.h.b16 %v845
  %v2384 = vunpack.c.l.b16 %v846
  %v2385 = vunpack.c.h.b16 %v846
  %v2386 = vunpack.c.l.b16 %v847
  %v2387 = vunpack.c.h.b16 %v847
  %v2388 = vunpack.c.l.b16 %v848
  %v2389 = vunpack.c.h.b16 %v848
  %v2390 = vunpack.c.l.b16 %v849
  %v2391 = vunpack.c.h.b16 %v849
  %v2392 = vunpack.c.l.b16 %v850
  %v2393 = vunpack.c.h.b16 %v850
  %v2394 = vunpack.c.l.b16 %v851
  %v2395 = vunpack.c.h.b16 %v851
  %v2396 = vunpack.c.l.b16 %v852
  %v2397 = vunpack.c.h.b16 %v852
  %v2398 = vunpack.c.l.b16 %v853
  %v2399 = vunpack.c.h.b16 %v853
  %v2400 = vunpack.c.l.b16 %v854
  %v2401 = vunpack.c.h.b16 %v854
  %v2402 = vunpack.c.l.b16 %v855
  %v2403 = vunpack.c.h.b16 %v855
  %v2404 = vunpack.c.l.b16 %v856
  %v2405 = vunpack.c.h.b16 %v856
  %v2406 = vunpack.c.l.b16 %v857
  %v2407 = vunpack.c.h.b16 %v857
  %v2408 = vunpack.c.l.b16 %v858
  %v2409 = vunpack.c.h.b16 %v858
  %v2410 = vunpack.c.l.b16 %v859
  %v2411 = vunpack.c.h.b16 %v859
  %v2412 = vunpack.c.l.b16 %v860
  %v2413 = vunpack.c.h.b16 %v860
  %v2414 = vunpack.c.l.b16 %v861
  %v2415 = vunpack.c.h.b16 %v861
  %v2416 = vunpack.c.l.b16 %v862
  %v2417 = vunpack.c.h.b16 %v862
  %v2418 = vunpack.c.l.b16 %v863
  %v2419 = vunpack.c.h.b16 %v863
  %v2420 = vunpack.c.l.b16 %v864
  %v2421 = vunpack.c.h.b16 %v864
  %v2422 = vunpack.c.l.b16 %v865
  %v2423 = vunpack.c.h.b16 %v865
  %v2424 = vunpack.c.l.b16 %v866
  %v2425 = vunpack.c.h.b16 %v866
  %v2426 = vunpack.c.l.b16 %v867
  %v2427 = vunpack.c.h.b16 %v867
  %v2428 = vunpack.c.l.b16 %v868
  %v2429 = vunpack.c.h.b16 %v868
  %v2430 = vunpack.c.l.b16 %v869
  %v2431 = vunpack.c.h.b16 %v869
  %v2432 = vunpack.c.l.b16 %v870
  %v2433 = vunpack.c.h.b16 %v870
  %v2434 = vunpack.c.l.b16 %v871
  %v2435 = vunpack.c.h.b16 %v871
  %v2436 = vunpack.c.l.b16 %v872
  %v2437 = vunpack.c.h.b16 %v872
  %v2438 = vunpack.c.l.b16 %v873
  %v2439 = vunpack.c.h.b16 %v873
  %v2440 = vunpack.c.l.b16 %v874
  %v2441 = vunpack.c.h.b16 %v874
  %v2442 = vunpack.c.l.b16 %v875
  %v2443 = vunpack.c.h.b16 %v875
  %v2444 = vunpack.c.l.b16 %v876
  %v2445 = vunpack.c.h.b16 %v876
  %v2446 = vunpack.c.l.b16 %v877
  %v2447 = vunpack.c.h.b16 %v877
  %v2448 = vunpack.c.l.b16 %v878
  %v2449 = vunpack.c.h.b16 %v878
  %v2450 = vunpack.c.l.b16 %v879
  %v2451 = vunpack.c.h.b16 %v879
  %v2452 = vunpack.c.l.b16 %v880
  %v2453 = vunpack.c.h.b16 %v880
  %v2454 = vunpack.c.l.b16 %v881
  %v2455 = vunpack.c.h.b16 %v881
  %v2456 = vunpack.c.l.b16 %v882
  %v2457 = vunpack.c.h.b16 %v882
  %v2458 = vunpack.c.l.b16 %v883
  %v2459 = vunpack.c.h.b16 %v883
  %v2460 = vunpack.c.l.b16 %v884
  %v2461 = vunpack.c.h.b16 %v884
  %v2462 = vunpack.c.l.b16 %v885
  %v2463 = vunpack.c.h.b16 %v885
  %v2464 = vpack.c.b16 %v1448, %v1440
  %v2465 = vpack.c.b16 %v1449, %v1441
  %v2466 = vpack.c.b16 %v1450, %v1442
  %v2467 = vpack.c.b16 %v1451, %v1443
  %v2468 = vpack.c.b16 %v1452, %v1444
  %v2469 = vpack.c.b16 %v1453, %v1445
  %v2470 = vpack.c.b16 %v1454, %v1446
  %v2471 = vpack.c.b16 %v1455, %v1447
  %v2472 = vpack.c.b16 %v1464, %v1456
  %v2473 = vpack.c.b16 %v1465, %v1457
  %v2474 = vpack.c.b16 %v1466, %v1458
  %v2475 = vpack.c.b16 %v1467, %v1459
  %v2476 = vpack.c.b16 %v1468, %v1460
  %v2477 = vpack.c.b16 %v1469, %v1461
  %v2478 = vpack.c.b16 %v1470, %v1462
  %v2479 = vpack.c.b16 %v1471, %v1463
  %v2480 = vpack.c.b16 %v1480, %v1472
  %v2481 = vpack.c.b16 %v1481, %v1473
  %v2482 = vpack.c.b16 %v1482, %v1474
  %v2483 = vpack.c.b16 %v1483, %v1475
  %v2484 = vpack.c.b16 %v1484, %v1476
  %v2485 = vpack.c.b16 %v1485, %v1477
  %v2486 = vpack.c.b16 %v1486, %v1478
  %v2487 = vpack.c.b16 %v1487, %v1479
  %v2488 = vpack.c.b16 %v1496, %v1488
  %v2489 = vpack.c.b16 %v1497, %v1489
  %v2490 = vpack.c.b16 %v1498, %v1490
  %v2491 = vpack.c.b16 %v1499, %v1491
  %v2492 = vpack.c.b16 %v1500, %v1492
  %v2493 = vpack.c.b16 %v1501, %v1493
  %v2494 = vpack.c.b16 %v1502, %v1494
  %v2495 = vpack.c.b16 %v1503, %v1495
  %v2496 = vpack.c.b16 %v1512, %v1504
  %v2497 = vpack.c.b16 %v1513, %v1505
  %v2498 = vpack.c.b16 %v1514, %v1506
  %v2499 = vpack.c.b16 %v1515, %v1507
  %v2500 = vpack.c.b16 %v1516, %v1508
  %v2501 = vpack.c.b16 %v1517, %v1509
  %v2502 = vpack.c.b16 %v1518, %v1510
  %v2503 = vpack.c.b16 %v1519, %v1511
  %v2504 = vpack.c.b16 %v1528, %v1520
  %v2505 = vpack.c.b16 %v1529, %v1521
  %v2506 = vpack.c.b16 %v1530, %v1522
  %v2507 = vpack.c.b16 %v1531, %v1523
  %v2508 = vpack.c.b16 %v1532, %v1524
  %v2509 = vpack.c.b16 %v1533, %v1525
  %v2510 = vpack.c.b16 %v1534, %v1526
  %v2511 = vpack.c.b16 %v1535, %v1527
  %v2512 = vpack.c.b16 %v1544, %v1536
  %v2513 = vpack.c.b16 %v1545, %v1537
  %v2514 = vpack.c.b16 %v1546, %v1538
  %v2515 = vpack.c.b16 %v1547, %v1539
  %v2516 = vpack.c.b16 %v1548, %v1540
  %v2517 = vpack.c.b16 %v1549, %v1541
  %v2518 = vpack.c.b16 %v1550, %v1542
  %v2519 = vpack.c.b16 %v1551, %v1543
  %v2520 = vpack.c.b16 %v1560, %v1552
  %v2521 = vpack.c.b16 %v1561, %v1553
  %v2522 = vpack.c.b16 %v1562, %v1554
  %v2523 = vpack.c.b16 %v1563, %v1555
  %v2524 = vpack.c.b16 %v1564, %v1556
  %v2525 = vpack.c.b16 %v1565, %v1557
  %v2526 = vpack.c.b16 %v1566, %v1558
  %v2527 = vpack.c.b16 %v1567, %v1559
  %v2528 = vpack.c.b16 %v1576, %v1568
  %v2529 = vpack.c.b16 %v1577, %v1569
  %v2530 = vpack.c.b16 %v1578, %v1570
  %v2531 = vpack.c.b16 %v1579, %v1571
  %v2532 = vpack.c.b16 %v1580, %v1572
  %v2533 = vpack.c.b16 %v1581, %v1573
  %v2534 = vpack.c.b16 %v1582, %v1574
  %v2535 = vpack.c.b16 %v1583, %v1575
  %v2536 = vpack.c.b16 %v1592, %v1584
  %v2537 = vpack.c.b16 %v1593, %v1585
  %v2538 = vpack.c.b16 %v1594, %v1586
  %v2539 = vpack.c.b16 %v1595, %v1587
  %v2540 = vpack.c.b16 %v1596, %v1588
  %v2541 = vpack.c.b16 %v1597, %v1589
  %v2542 = vpack.c.b16 %v1598, %v1590
  %v2543 = vpack.c.b16 %v1599, %v1591
  %v2544 = vpack.c.b16 %v1608, %v1600
  %v2545 = vpack.c.b16 %v1609, %v1601
  %v2546 = vpack.c.b16 %v1610, %v1602
  %v2547 = vpack.c.b16 %v1611, %v1603
  %v2548 = vpack.c.b16 %v1612, %v1604
  %v2549 = vpack.c.b16 %v1613, %v1605
  %v2550 = vpack.c.b16 %v1614, %v1606
  %v2551 = vpack.c.b16 %v1615, %v1607
  %v2552 = vpack.c.b16 %v1624, %v1616
  %v2553 = vpack.c.b16 %v1625, %v1617
  %v2554 = vpack.c.b16 %v1626, %v1618
  %v2555 = vpack.c.b16 %v1627, %v1619
  %v2556 = vpack.c.b16 %v1628, %v1620
  %v2557 = vpack.c.b16 %v1629, %v1621
  %v2558 = vpack.c.b16 %v1630, %v1622
  %v2559 = vpack.c.b16 %v1631, %v1623
  %v2560 = vpack.c.b16 %v1640, %v1632
  %v2561 = vpack.c.b16 %v1641, %v1633
  %v2562 = vpack.c.b16 %v1642, %v1634
  %v2563 = vpack.c.b16 %v1643, %v1635
  %v2564 = vpack.c.b16 %v1644, %v1636
  %v2565 = vpack.c.b16 %v1645, %v1637
  %v2566 = vpack.c.b16 %v1646, %v1638
  %v2567 = vpack.c.b16 %v1647, %v1639
  %v2568 = vpack.c.b16 %v1656, %v1648
  %v2569 = vpack.c.b16 %v1657, %v1649
  %v2570 = vpack.c.b16 %v1658, %v1650
  %v2571 = vpack.c.b16 %v1659, %v1651
  %v2572 = vpack.c.b16 %v1660, %v1652
  %v2573 = vpack.c.b16 %v1661, %v1653
  %v2574 = vpack.c.b16 %v1662, %v1654
  %v2575 = vpack.c.b16 %v1663, %v1655
  %v2576 = vpack.c.b16 %v1672, %v1664
  %v2577 = vpack.c.b16 %v1673, %v1665
  %v2578 = vpack.c.b16 %v1674, %v1666
  %v2579 = vpack.c.b16 %v1675, %v1667
  %v2580 = vpack.c.b16 %v1676, %v1668
  %v2581 = vpack.c.b16 %v1677, %v1669
  %v2582 = vpack.c.b16 %v1678, %v1670
  %v2583 = vpack.c.b16 %v1679, %v1671
  %v2584 = vpack.c.b16 %v1688, %v1680
  %v2585 = vpack.c.b16 %v1689, %v1681
  %v2586 = vpack.c.b16 %v1690, %v1682
  %v2587 = vpack.c.b16 %v1691, %v1683
  %v2588 = vpack.c.b16 %v1692, %v1684
  %v2589 = vpack.c.b16 %v1693, %v1685
  %v2590 = vpack.c.b16 %v1694, %v1686
  %v2591 = vpack.c.b16 %v1695, %v1687
  %v2592 = vpack.c.b16 %v1704, %v1696
  %v2593 = vpack.c.b16 %v1705, %v1697
  %v2594 = vpack.c.b16 %v1706, %v1698
  %v2595 = vpack.c.b16 %v1707, %v1699
  %v2596 = vpack.c.b16 %v1708, %v1700
  %v2597 = vpack.c.b16 %v1709, %v1701
  %v2598 = vpack.c.b16 %v1710, %v1702
  %v2599 = vpack.c.b16 %v1711, %v1703
  %v2600 = vpack.c.b16 %v1720, %v1712
  %v2601 = vpack.c.b16 %v1721, %v1713
  %v2602 = vpack.c.b16 %v1722, %v1714
  %v2603 = vpack.c.b16 %v1723, %v1715
  %v2604 = vpack.c.b16 %v1724, %v1716
  %v2605 = vpack.c.b16 %v1725, %v1717
  %v2606 = vpack.c.b16 %v1726, %v1718
  %v2607 = vpack.c.b16 %v1727, %v1719
  %v2608 = vpack.c.b16 %v1736, %v1728
  %v2609 = vpack.c.b16 %v1737, %v1729
  %v2610 = vpack.c.b16 %v1738, %v1730
  %v2611 = vpack.c.b16 %v1739, %v1731
  %v2612 = vpack.c.b16 %v1740, %v1732
  %v2613 = vpack.c.b16 %v1741, %v1733
  %v2614 = vpack.c.b16 %v1742, %v1734
  %v2615 = vpack.c.b16 %v1743, %v1735
  %v2616 = vpack.c.b16 %v1752, %v1744
  %v2617 = vpack.c.b16 %v1753, %v1745
  %v2618 = vpack.c.b16 %v1754, %v1746
  %v2619 = vpack.c.b16 %v1755, %v1747
  %v2620 = vpack.c.b16 %v1756, %v1748
  %v2621 = vpack.c.b16 %v1757, %v1749
  %v2622 = vpack.c.b16 %v1758, %v1750
  %v2623 = vpack.c.b16 %v1759, %v1751
  %v2624 = vpack.c.b16 %v1768, %v1760
  %v2625 = vpack.c.b16 %v1769, %v1761
  %v2626 = vpack.c.b16 %v1770, %v1762
  %v2627 = vpack.c.b16 %v1771, %v1763
  %v2628 = vpack.c.b16 %v1772, %v1764
  %v2629 = vpack.c.b16 %v1773, %v1765
  %v2630 = vpack.c.b16 %v1774, %v1766
  %v2631 = vpack.c.b16 %v1775, %v1767
  %v2632 = vpack.c.b16 %v1784, %v1776
  %v2633 = vpack.c.b16 %v1785, %v1777
  %v2634 = vpack.c.b16 %v1786, %v1778
  %v2635 = vpack.c.b16 %v1787, %v1779
  %v2636 = vpack.c.b16 %v1788, %v1780
  %v2637 = vpack.c.b16 %v1789, %v1781
  %v2638 = vpack.c.b16 %v1790, %v1782
  %v2639 = vpack.c.b16 %v1791, %v1783
  %v2640 = vpack.c.b16 %v1800, %v1792
  %v2641 = vpack.c.b16 %v1801, %v1793
  %v2642 = vpack.c.b16 %v1802, %v1794
  %v2643 = vpack.c.b16 %v1803, %v1795
  %v2644 = vpack.c.b16 %v1804, %v1796
  %v2645 = vpack.c.b16 %v1805, %v1797
  %v2646 = vpack.c.b16 %v1806, %v1798
  %v2647 = vpack.c.b16 %v1807, %v1799
  %v2648 = vpack.c.b16 %v1816, %v1808
  %v2649 = vpack.c.b16 %v1817, %v1809
  %v2650 = vpack.c.b16 %v1818, %v1810
  %v2651 = vpack.c.b16 %v1819, %v1811
  %v2652 = vpack.c.b16 %v1820, %v1812
  %v2653 = vpack.c.b16 %v1821, %v1813
  %v2654 = vpack.c.b16 %v1822, %v1814
  %v2655 = vpack.c.b16 %v1823, %v1815
  %v2656 = vpack.c.b16 %v1832, %v1824
  %v2657 = vpack.c.b16 %v1833, %v1825
  %v2658 = vpack.c.b16 %v1834, %v1826
  %v2659 = vpack.c.b16 %v1835, %v1827
  %v2660 = vpack.c.b16 %v1836, %v1828
  %v2661 = vpack.c.b16 %v1837, %v1829
  %v2662 = vpack.c.b16 %v1838, %v1830
  %v2663 = vpack.c.b16 %v1839, %v1831
  %v2664 = vpack.c.b16 %v1848, %v1840
  %v2665 = vpack.c.b16 %v1849, %v1841
  %v2666 = vpack.c.b16 %v1850, %v1842
  %v2667 = vpack.c.b16 %v1851, %v1843
  %v2668 = vpack.c.b16 %v1852, %v1844
  %v2669 = vpack.c.b16 %v1853, %v1845
  %v2670 = vpack.c.b16 %v1854, %v1846
  %v2671 = vpack.c.b16 %v1855, %v1847
  %v2672 = vpack.c.b16 %v1864, %v1856
  %v2673 = vpack.c.b16 %v1865, %v1857
  %v2674 = vpack.c.b16 %v1866, %v1858
  %v2675 = vpack.c.b16 %v1867, %v1859
  %v2676 = vpack.c.b16 %v1868, %v1860
  %v2677 = vpack.c.b16 %v1869, %v1861
  %v2678 = vpack.c.b16 %v1870, %v1862
  %v2679 = vpack.c.b16 %v1871, %v1863
  %v2680 = vpack.c.b16 %v1880, %v1872
  %v2681 = vpack.c.b16 %v1881, %v1873
  %v2682 = vpack.c.b16 %v1882, %v1874
  %v2683 = vpack.c.b16 %v1883, %v1875
  %v2684 = vpack.c.b16 %v1884, %v1876
  %v2685 = vpack.c.b16 %v1885, %v1877
  %v2686 = vpack.c.b16 %v1886, %v1878
  %v2687 = vpack.c.b16 %v1887, %v1879
  %v2688 = vpack.c.b16 %v1896, %v1888
  %v2689 = vpack.c.b16 %v1897, %v1889
  %v2690 = vpack.c.b16 %v1898, %v1890
  %v2691 = vpack.c.b16 %v1899, %v1891
  %v2692 = vpack.c.b16 %v1900, %v1892
  %v2693 = vpack.c.b16 %v1901, %v1893
  %v2694 = vpack.c.b16 %v1902, %v1894
  %v2695 = vpack.c.b16 %v1903, %v1895
  %v2696 = vpack.c.b16 %v1912, %v1904
  %v2697 = vpack.c.b16 %v1913, %v1905
  %v2698 = vpack.c.b16 %v1914, %v1906
  %v2699 = vpack.c.b16 %v1915, %v1907
  %v2700 = vpack.c.b16 %v1916, %v1908
  %v2701 = vpack.c.b16 %v1917, %v1909
  %v2702 = vpack.c.b16 %v1918, %v1910
  %v2703 = vpack.c.b16 %v1919, %v1911
  %v2704 = vpack.c.b16 %v1928, %v1920
  %v2705 = vpack.c.b16 %v1929, %v1921
  %v2706 = vpack.c.b16 %v1930, %v1922
  %v2707 = vpack.c.b16 %v1931, %v1923
  %v2708 = vpack.c.b16 %v1932, %v1924
  %v2709 = vpack.c.b16 %v1933, %v1925
  %v2710 = vpack.c.b16 %v1934, %v1926
  %v2711 = vpack.c.b16 %v1935, %v1927
  %v2712 = vpack.c.b16 %v1944, %v1936
  %v2713 = vpack.c.b16 %v1945, %v1937
  %v2714 = vpack.c.b16 %v1946, %v1938
  %v2715 = vpack.c.b16 %v1947, %v1939
  %v2716 = vpack.c.b16 %v1948, %v1940
  %v2717 = vpack.c.b16 %v1949, %v1941
  %v2718 = vpack.c.b16 %v1950, %v1942
  %v2719 = vpack.c.b16 %v1951, %v1943
  %v2720 = vpack.c.b16 %v1960, %v1952
  %v2721 = vpack.c.b16 %v1961, %v1953
  %v2722 = vpack.c.b16 %v1962, %v1954
  %v2723 = vpack.c.b16 %v1963, %v1955
  %v2724 = vpack.c.b16 %v1964, %v1956
  %v2725 = vpack.c.b16 %v1965, %v1957
  %v2726 = vpack.c.b16 %v1966, %v1958
  %v2727 = vpack.c.b16 %v1967, %v1959
  %v2728 = vpack.c.b16 %v1976, %v1968
  %v2729 = vpack.c.b16 %v1977, %v1969
  %v2730 = vpack.c.b16 %v1978, %v1970
  %v2731 = vpack.c.b16 %v1979, %v1971
  %v2732 = vpack.c.b16 %v1980, %v1972
  %v2733 = vpack.c.b16 %v1981, %v1973
  %v2734 = vpack.c.b16 %v1982, %v1974
  %v2735 = vpack.c.b16 %v1983, %v1975
  %v2736 = vpack.c.b16 %v1992, %v1984
  %v2737 = vpack.c.b16 %v1993, %v1985
  %v2738 = vpack.c.b16 %v1994, %v1986
  %v2739 = vpack.c.b16 %v1995, %v1987
  %v2740 = vpack.c.b16 %v1996, %v1988
  %v2741 = vpack.c.b16 %v1997, %v1989
  %v2742 = vpack.c.b16 %v1998, %v1990
  %v2743 = vpack.c.b16 %v1999, %v1991
  %v2744 = vpack.c.b16 %v2008, %v2000
  %v2745 = vpack.c.b16 %v2009, %v2001
  %v2746 = vpack.c.b16 %v2010, %v2002
  %v2747 = vpack.c.b16 %v2011, %v2003
  %v2748 = vpack.c.b16 %v2012, %v2004
  %v2749 = vpack.c.b16 %v2013, %v2005
  %v2750 = vpack.c.b16 %v2014, %v2006
  %v2751 = vpack.c.b16 %v2015, %v2007
  %v2752 = vpack.c.b16 %v2024, %v2016
  %v2753 = vpack.c.b16 %v2025, %v2017
  %v2754 = vpack.c.b16 %v2026, %v2018
  %v2755 = vpack.c.b16 %v2027, %v2019
  %v2756 = vpack.c.b16 %v2028, %v2020
  %v2757 = vpack.c.b16 %v2029, %v2021
  %v2758 = vpack.c.b16 %v2030, %v2022
  %v2759 = vpack.c.b16 %v2031, %v2023
  %v2760 = vpack.c.b16 %v2040, %v2032
  %v2761 = vpack.c.b16 %v2041, %v2033
  %v2762 = vpack.c.b16 %v2042, %v2034
  %v2763 = vpack.c.b16 %v2043, %v2035
  %v2764 = vpack.c.b16 %v2044, %v2036
  %v2765 = vpack.c.b16 %v2045, %v2037
  %v2766 = vpack.c.b16 %v2046, %v2038
  %v2767 = vpack.c.b16 %v2047, %v2039
  %v2768 = vpack.c.b16 %v2056, %v2048
  %v2769 = vpack.c.b16 %v2057, %v2049
  %v2770 = vpack.c.b16 %v2058, %v2050
  %v2771 = vpack.c.b16 %v2059, %v2051
  %v2772 = vpack.c.b16 %v2060, %v2052
  %v2773 = vpack.c.b16 %v2061, %v2053
  %v2774 = vpack.c.b16 %v2062, %v2054
  %v2775 = vpack.c.b16 %v2063, %v2055
  %v2776 = vpack.c.b16 %v2072, %v2064
  %v2777 = vpack.c.b16 %v2073, %v2065
  %v2778 = vpack.c.b16 %v2074, %v2066
  %v2779 = vpack.c.b16 %v2075, %v2067
  %v2780 = vpack.c.b16 %v2076, %v2068
  %v2781 = vpack.c.b16 %v2077, %v2069
  %v2782 = vpack.c.b16 %v2078, %v2070
  %v2783 = vpack.c.b16 %v2079, %v2071
  %v2784 = vpack.c.b16 %v2088, %v2080
  %v2785 = vpack.c.b16 %v2089, %v2081
  %v2786 = vpack.c.b16 %v2090, %v2082
  %v2787 = vpack.c.b16 %v2091, %v2083
  %v2788 = vpack.c.b16 %v2092, %v2084
  %v2789 = vpack.c.b16 %v2093, %v2085
  %v2790 = vpack.c.b16 %v2094, %v2086
  %v2791 = vpack.c.b16 %v2095, %v2087
  %v2792 = vpack.c.b16 %v2104, %v2096
  %v2793 = vpack.c.b16 %v2105, %v2097
  %v2794 = vpack.c.b16 %v2106, %v2098
  %v2795 = vpack.c.b16 %v2107, %v2099
  %v2796 = vpack.c.b16 %v2108, %v2100
  %v2797 = vpack.c.b16 %v2109, %v2101
  %v2798 = vpack.c.b16 %v2110, %v2102
  %v2799 = vpack.c.b16 %v2111, %v2103
  %v2800 = vpack.c.b16 %v2120, %v2112
  %v2801 = vpack.c.b16 %v2121, %v2113
  %v2802 = vpack.c.b16 %v2122, %v2114
  %v2803 = vpack.c.b16 %v2123, %v2115
  %v2804 = vpack.c.b16 %v2124, %v2116
  %v2805 = vpack.c.b16 %v2125, %v2117
  %v2806 = vpack.c.b16 %v2126, %v2118
  %v2807 = vpack.c.b16 %v2127, %v2119
  %v2808 = vpack.c.b16 %v2136, %v2128
  %v2809 = vpack.c.b16 %v2137, %v2129
  %v2810 = vpack.c.b16 %v2138, %v2130
  %v2811 = vpack.c.b16 %v2139, %v2131
  %v2812 = vpack.c.b16 %v2140, %v2132
  %v2813 = vpack.c.b16 %v2141, %v2133
  %v2814 = vpack.c.b16 %v2142, %v2134
  %v2815 = vpack.c.b16 %v2143, %v2135
  %v2816 = vpack.c.b16 %v2152, %v2144
  %v2817 = vpack.c.b16 %v2153, %v2145
  %v2818 = vpack.c.b16 %v2154, %v2146
  %v2819 = vpack.c.b16 %v2155, %v2147
  %v2820 = vpack.c.b16 %v2156, %v2148
  %v2821 = vpack.c.b16 %v2157, %v2149
  %v2822 = vpack.c.b16 %v2158, %v2150
  %v2823 = vpack.c.b16 %v2159, %v2151
  %v2824 = vpack.c.b16 %v2168, %v2160
  %v2825 = vpack.c.b16 %v2169, %v2161
  %v2826 = vpack.c.b16 %v2170, %v2162
  %v2827 = vpack.c.b16 %v2171, %v2163
  %v2828 = vpack.c.b16 %v2172, %v2164
  %v2829 = vpack.c.b16 %v2173, %v2165
  %v2830 = vpack.c.b16 %v2174, %v2166
  %v2831 = vpack.c.b16 %v2175, %v2167
  %v2832 = vpack.c.b16 %v2184, %v2176
  %v2833 = vpack.c.b16 %v2185, %v2177
  %v2834 = vpack.c.b16 %v2186, %v2178
  %v2835 = vpack.c.b16 %v2187, %v2179
  %v2836 = vpack.c.b16 %v2188, %v2180
  %v2837 = vpack.c.b16 %v2189, %v2181
  %v2838 = vpack.c.b16 %v2190, %v2182
  %v2839 = vpack.c.b16 %v2191, %v2183
  %v2840 = vpack.c.b16 %v2200, %v2192
  %v2841 = vpack.c.b16 %v2201, %v2193
  %v2842 = vpack.c.b16 %v2202, %v2194
  %v2843 = vpack.c.b16 %v2203, %v2195
  %v2844 = vpack.c.b16 %v2204, %v2196
  %v2845 = vpack.c.b16 %v2205, %v2197
  %v2846 = vpack.c.b16 %v2206, %v2198
  %v2847 = vpack.c.b16 %v2207, %v2199
  %v2848 = vpack.c.b16 %v2216, %v2208
  %v2849 = vpack.c.b16 %v2217, %v2209
  %v2850 = vpack.c.b16 %v2218, %v2210
  %v2851 = vpack.c.b16 %v2219, %v2211
  %v2852 = vpack.c.b16 %v2220, %v2212
  %v2853 = vpack.c.b16 %v2221, %v2213
  %v2854 = vpack.c.b16 %v2222, %v2214
  %v2855 = vpack.c.b16 %v2223, %v2215
  %v2856 = vpack.c.b16 %v2232, %v2224
  %v2857 = vpack.c.b16 %v2233, %v2225
  %v2858 = vpack.c.b16 %v2234, %v2226
  %v2859 = vpack.c.b16 %v2235, %v2227
  %v2860 = vpack.c.b16 %v2236, %v2228
  %v2861 = vpack.c.b16 %v2237, %v2229
  %v2862 = vpack.c.b16 %v2238, %v2230
  %v2863 = vpack.c.b16 %v2239, %v2231
  %v2864 = vpack.c.b16 %v2248, %v2240
  %v2865 = vpack.c.b16 %v2249, %v2241
  %v2866 = vpack.c.b16 %v2250, %v2242
  %v2867 = vpack.c.b16 %v2251, %v2243
  %v2868 = vpack.c.b16 %v2252, %v2244
  %v2869 = vpack.c.b16 %v2253, %v2245
  %v2870 = vpack.c.b16 %v2254, %v2246
  %v2871 = vpack.c.b16 %v2255, %v2247
  %v2872 = vpack.c.b16 %v2264, %v2256
  %v2873 = vpack.c.b16 %v2265, %v2257
  %v2874 = vpack.c.b16 %v2266, %v2258
  %v2875 = vpack.c.b16 %v2267, %v2259
  %v2876 = vpack.c.b16 %v2268, %v2260
  %v2877 = vpack.c.b16 %v2269, %v2261
  %v2878 = vpack.c.b16 %v2270, %v2262
  %v2879 = vpack.c.b16 %v2271, %v2263
  %v2880 = vpack.c.b16 %v2280, %v2272
  %v2881 = vpack.c.b16 %v2281, %v2273
  %v2882 = vpack.c.b16 %v2282, %v2274
  %v2883 = vpack.c.b16 %v2283, %v2275
  %v2884 = vpack.c.b16 %v2284, %v2276
  %v2885 = vpack.c.b16 %v2285, %v2277
  %v2886 = vpack.c.b16 %v2286, %v2278
  %v2887 = vpack.c.b16 %v2287, %v2279
  %v2888 = vpack.c.b16 %v2296, %v2288
  %v2889 = vpack.c.b16 %v2297, %v2289
  %v2890 = vpack.c.b16 %v2298, %v2290
  %v2891 = vpack.c.b16 %v2299, %v2291
  %v2892 = vpack.c.b16 %v2300, %v2292
  %v2893 = vpack.c.b16 %v2301, %v2293
  %v2894 = vpack.c.b16 %v2302, %v2294
  %v2895 = vpack.c.b16 %v2303, %v2295
  %v2896 = vpack.c.b16 %v2312, %v2304
  %v2897 = vpack.c.b16 %v2313, %v2305
  %v2898 = vpack.c.b16 %v2314, %v2306
  %v2899 = vpack.c.b16 %v2315, %v2307
  %v2900 = vpack.c.b16 %v2316, %v2308
  %v2901 = vpack.c.b16 %v2317, %v2309
  %v2902 = vpack.c.b16 %v2318, %v2310
  %v2903 = vpack.c.b16 %v2319, %v2311
  %v2904 = vpack.c.b16 %v2328, %v2320
  %v2905 = vpack.c.b16 %v2329, %v2321
  %v2906 = vpack.c.b16 %v2330, %v2322
  %v2907 = vpack.c.b16 %v2331, %v2323
  %v2908 = vpack.c.b16 %v2332, %v2324
  %v2909 = vpack.c.b16 %v2333, %v2325
  %v2910 = vpack.c.b16 %v2334, %v2326
  %v2911 = vpack.c.b16 %v2335, %v2327
  %v2912 = vpack.c.b16 %v2344, %v2336
  %v2913 = vpack.c.b16 %v2345, %v2337
  %v2914 = vpack.c.b16 %v2346, %v2338
  %v2915 = vpack.c.b16 %v2347, %v2339
  %v2916 = vpack.c.b16 %v2348, %v2340
  %v2917 = vpack.c.b16 %v2349, %v2341
  %v2918 = vpack.c.b16 %v2350, %v2342
  %v2919 = vpack.c.b16 %v2351, %v2343
  %v2920 = vpack.c.b16 %v2360, %v2352
  %v2921 = vpack.c.b16 %v2361, %v2353
  %v2922 = vpack.c.b16 %v2362, %v2354
  %v2923 = vpack.c.b16 %v2363, %v2355
  %v2924 = vpack.c.b16 %v2364, %v2356
  %v2925 = vpack.c.b16 %v2365, %v2357
  %v2926 = vpack.c.b16 %v2366, %v2358
  %v2927 = vpack.c.b16 %v2367, %v2359
  %v2928 = vpack.c.b16 %v2376, %v2368
  %v2929 = vpack.c.b16 %v2377, %v2369
  %v2930 = vpack.c.b16 %v2378, %v2370
  %v2931 = vpack.c.b16 %v2379, %v2371
  %v2932 = vpack.c.b16 %v2380, %v2372
  %v2933 = vpack.c.b16 %v2381, %v2373
  %v2934 = vpack.c.b16 %v2382, %v2374
  %v2935 = vpack.c.b16 %v2383, %v2375
  %v2936 = vpack.c.b16 %v2392, %v2384
  %v2937 = vpack.c.b16 %v2393, %v2385
  %v2938 = vpack.c.b16 %v2394, %v2386
  %v2939 = vpack.c.b16 %v2395, %v2387
  %v2940 = vpack.c.b16 %v2396, %v2388
  %v2941 = vpack.c.b16 %v2397, %v2389
  %v2942 = vpack.c.b16 %v2398, %v2390
  %v2943 = vpack.c.b16 %v2399, %v2391
  %v2944 = vpack.c.b16 %v2408, %v2400
  %v2945 = vpack.c.b16 %v2409, %v2401
  %v2946 = vpack.c.b16 %v2410, %v2402
  %v2947 = vpack.c.b16 %v2411, %v2403
  %v2948 = vpack.c.b16 %v2412, %v2404
  %v2949 = vpack.c.b16 %v2413, %v2405
  %v2950 = vpack.c.b16 %v2414, %v2406
  %v2951 = vpack.c.b16 %v2415, %v2407
  %v2952 = vpack.c.b16 %v2424, %v2416
  %v2953 = vpack.c.b16 %v2425, %v2417
  %v2954 = vpack.c.b16 %v2426, %v2418
  %v2955 = vpack.c.b16 %v2427, %v2419
  %v2956 = vpack.c.b16 %v2428, %v2420
  %v2957 = vpack.c.b16 %v2429, %v2421
  %v2958 = vpack.c.b16 %v2430, %v2422
  %v2959 = vpack.c.b16 %v2431, %v2423
  %v2960 = vpack.c.b16 %v2440, %v2432
  %v2961 = vpack.c.b16 %v2441, %v2433
  %v2962 = vpack.c.b16 %v2442, %v2434
  %v2963 = vpack.c.b16 %v2443, %v2435
  %v2964 = vpack.c.b16 %v2444, %v2436
  %v2965 = vpack.c.b16 %v2445, %v2437
  %v2966 = vpack.c.b16 %v2446, %v2438
  %v2967 = vpack.c.b16 %v2447, %v2439
  %v2968 = vpack.c.b16 %v2456, %v2448
  %v2969 = vpack.c.b16 %v2457, %v2449
  %v2970 = vpack.c.b16 %v2458, %v2450
  %v2971 = vpack.c.b16 %v2459, %v2451
  %v2972 = vpack.c.b16 %v2460, %v2452
  %v2973 = vpack.c.b16 %v2461, %v2453
  %v2974 = vpack.c.b16 %v2462, %v2454
  %v2975 = vpack.c.b16 %v2463, %v2455
  %3488 = vmatprep.subr.bf16.mxu0 %v2465
  %3489 = vmatpush1.bf16.msra.mxu0 %v2464
  %3490 = vmatprep.subr.bf16.mxu0 %v2473
  %3491 = vmatpush1.bf16.msra.mxu0 %v2472
  %3492 = vmatprep.subr.bf16.mxu0 %v2481
  %3493 = vmatpush1.bf16.msra.mxu0 %v2480
  %3494 = vmatprep.subr.bf16.mxu0 %v2489
  %3495 = vmatpush1.bf16.msra.mxu0 %v2488
  %3496 = vmatprep.subr.bf16.mxu0 %v2497
  %3497 = vmatpush1.bf16.msra.mxu0 %v2496
  %3498 = vmatprep.subr.bf16.mxu0 %v2505
  %3499 = vmatpush1.bf16.msra.mxu0 %v2504
  %3500 = vmatprep.subr.bf16.mxu0 %v2513
  %3501 = vmatpush1.bf16.msra.mxu0 %v2512
  %3502 = vmatprep.subr.bf16.mxu0 %v2521
  %3503 = vmatpush1.bf16.msra.mxu0 %v2520
  %3504 = vmatprep.subr.bf16.mxu0 %v2529
  %3505 = vmatpush1.bf16.msra.mxu0 %v2528
  %3506 = vmatprep.subr.bf16.mxu0 %v2537
  %3507 = vmatpush1.bf16.msra.mxu0 %v2536
  %3508 = vmatprep.subr.bf16.mxu0 %v2545
  %3509 = vmatpush1.bf16.msra.mxu0 %v2544
  %3510 = vmatprep.subr.bf16.mxu0 %v2553
  %3511 = vmatpush1.bf16.msra.mxu0 %v2552
  %3512 = vmatprep.subr.bf16.mxu0 %v2561
  %3513 = vmatpush1.bf16.msra.mxu0 %v2560
  %3514 = vmatprep.subr.bf16.mxu0 %v2569
  %3515 = vmatpush1.bf16.msra.mxu0 %v2568
  %3516 = vmatprep.subr.bf16.mxu0 %v2577
  %3517 = vmatpush1.bf16.msra.mxu0 %v2576
  %3518 = vmatprep.subr.bf16.mxu0 %v2585
  %3519 = vmatpush1.bf16.msra.mxu0 %v2584
  %3520 = vmatprep.mubr.bf16.mxu0 %v367
  %3521 = vmatmul.mubr.bf16.gmra.mrb[0].mxu0 %v366
  %v3522 = vpop.f32.mrb[0].mxu0
  %v3523 = vadd.f32 %v891, %v3522
  %v3524 = vpop.f32.mrb[0].mxu0
  %v3525 = vadd.f32 %v895, %v3524
  %v3526 = vpop.f32.mrb[0].mxu0
  %v3527 = vadd.f32 %v891, %v3526
  %v3528 = vpop.f32.mrb[0].mxu0
  %v3529 = vadd.f32 %v895, %v3528
  %3530 = vdwg.mxu0
  %3531 = vmatprep.subr.bf16.mxu0 %v2593
  %3532 = vmatpush1.bf16.msra.mxu0 %v2592
  %3533 = vmatprep.subr.bf16.mxu0 %v2601
  %3534 = vmatpush1.bf16.msra.mxu0 %v2600
  %3535 = vmatprep.subr.bf16.mxu0 %v2609
  %3536 = vmatpush1.bf16.msra.mxu0 %v2608
  %3537 = vmatprep.subr.bf16.mxu0 %v2617
  %3538 = vmatpush1.bf16.msra.mxu0 %v2616
  %3539 = vmatprep.subr.bf16.mxu0 %v2625
  %3540 = vmatpush1.bf16.msra.mxu0 %v2624
  %3541 = vmatprep.subr.bf16.mxu0 %v2633
  %3542 = vmatpush1.bf16.msra.mxu0 %v2632
  %3543 = vmatprep.subr.bf16.mxu0 %v2641
  %3544 = vmatpush1.bf16.msra.mxu0 %v2640
  %3545 = vmatprep.subr.bf16.mxu0 %v2649
  %3546 = vmatpush1.bf16.msra.mxu0 %v2648
  %3547 = vmatprep.subr.bf16.mxu0 %v2657
  %3548 = vmatpush1.bf16.msra.mxu0 %v2656
  %3549 = vmatprep.subr.bf16.mxu0 %v2665
  %3550 = vmatpush1.bf16.msra.mxu0 %v2664
  %3551 = vmatprep.subr.bf16.mxu0 %v2673
  %3552 = vmatpush1.bf16.msra.mxu0 %v2672
  %3553 = vmatprep.subr.bf16.mxu0 %v2681
  %3554 = vmatpush1.bf16.msra.mxu0 %v2680
  %3555 = vmatprep.subr.bf16.mxu0 %v2689
  %3556 = vmatpush1.bf16.msra.mxu0 %v2688
  %3557 = vmatprep.subr.bf16.mxu0 %v2697
  %3558 = vmatpush1.bf16.msra.mxu0 %v2696
  %3559 = vmatprep.subr.bf16.mxu0 %v2705
  %3560 = vmatpush1.bf16.msra.mxu0 %v2704
  %3561 = vmatprep.subr.bf16.mxu0 %v2713
  %3562 = vmatpush1.bf16.msra.mxu0 %v2712
  %3563 = vmatprep.mubr.bf16.mxu0 %v369
  %3564 = vmatmul.mubr.bf16.gmra.mrb[0].mxu0 %v368
  %v3565 = vpop.f32.mrb[0].mxu0
  %v3566 = vadd.f32 %v3523, %v3565
  %v3567 = vpop.f32.mrb[0].mxu0
  %v3568 = vadd.f32 %v3525, %v3567
  %v3569 = vpop.f32.mrb[0].mxu0
  %v3570 = vadd.f32 %v3527, %v3569
  %v3571 = vpop.f32.mrb[0].mxu0
  %v3572 = vadd.f32 %v3529, %v3571
  %3573 = vdwg.mxu0
  %3574 = vmatprep.subr.bf16.mxu0 %v2721
  %3575 = vmatpush1.bf16.msra.mxu0 %v2720
  %3576 = vmatprep.subr.bf16.mxu0 %v2729
  %3577 = vmatpush1.bf16.msra.mxu0 %v2728
  %3578 = vmatprep.subr.bf16.mxu0 %v2737
  %3579 = vmatpush1.bf16.msra.mxu0 %v2736
  %3580 = vmatprep.subr.bf16.mxu0 %v2745
  %3581 = vmatpush1.bf16.msra.mxu0 %v2744
  %3582 = vmatprep.subr.bf16.mxu0 %v2753
  %3583 = vmatpush1.bf16.msra.mxu0 %v2752
  %3584 = vmatprep.subr.bf16.mxu0 %v2761
  %3585 = vmatpush1.bf16.msra.mxu0 %v2760
  %3586 = vmatprep.subr.bf16.mxu0 %v2769
  %3587 = vmatpush1.bf16.msra.mxu0 %v2768
  %3588 = vmatprep.subr.bf16.mxu0 %v2777
  %3589 = vmatpush1.bf16.msra.mxu0 %v2776
  %3590 = vmatprep.subr.bf16.mxu0 %v2785
  %3591 = vmatpush1.bf16.msra.mxu0 %v2784
  %3592 = vmatprep.subr.bf16.mxu0 %v2793
  %3593 = vmatpush1.bf16.msra.mxu0 %v2792
  %3594 = vmatprep.subr.bf16.mxu0 %v2801
  %3595 = vmatpush1.bf16.msra.mxu0 %v2800
  %3596 = vmatprep.subr.bf16.mxu0 %v2809
  %3597 = vmatpush1.bf16.msra.mxu0 %v2808
  %3598 = vmatprep.subr.bf16.mxu0 %v2817
  %3599 = vmatpush1.bf16.msra.mxu0 %v2816
  %3600 = vmatprep.subr.bf16.mxu0 %v2825
  %3601 = vmatpush1.bf16.msra.mxu0 %v2824
  %3602 = vmatprep.subr.bf16.mxu0 %v2833
  %3603 = vmatpush1.bf16.msra.mxu0 %v2832
  %3604 = vmatprep.subr.bf16.mxu0 %v2841
  %3605 = vmatpush1.bf16.msra.mxu0 %v2840
  %3606 = vmatprep.mubr.bf16.mxu0 %v371
  %3607 = vmatmul.mubr.bf16.gmra.mrb[0].mxu0 %v370
  %v3608 = vpop.f32.mrb[0].mxu0
  %v3609 = vadd.f32 %v3566, %v3608
  %v3610 = vpop.f32.mrb[0].mxu0
  %v3611 = vadd.f32 %v3568, %v3610
  %v3612 = vpop.f32.mrb[0].mxu0
  %v3613 = vadd.f32 %v3570, %v3612
  %v3614 = vpop.f32.mrb[0].mxu0
  %v3615 = vadd.f32 %v3572, %v3614
  %3616 = vdwg.mxu0
  %3617 = vmatprep.subr.bf16.mxu0 %v2849
  %3618 = vmatpush1.bf16.msra.mxu0 %v2848
  %3619 = vmatprep.subr.bf16.mxu0 %v2857
  %3620 = vmatpush1.bf16.msra.mxu0 %v2856
  %3621 = vmatprep.subr.bf16.mxu0 %v2865
  %3622 = vmatpush1.bf16.msra.mxu0 %v2864
  %3623 = vmatprep.subr.bf16.mxu0 %v2873
  %3624 = vmatpush1.bf16.msra.mxu0 %v2872
  %3625 = vmatprep.subr.bf16.mxu0 %v2881
  %3626 = vmatpush1.bf16.msra.mxu0 %v2880
  %3627 = vmatprep.subr.bf16.mxu0 %v2889
  %3628 = vmatpush1.bf16.msra.mxu0 %v2888
  %3629 = vmatprep.subr.bf16.mxu0 %v2897
  %3630 = vmatpush1.bf16.msra.mxu0 %v2896
  %3631 = vmatprep.subr.bf16.mxu0 %v2905
  %3632 = vmatpush1.bf16.msra.mxu0 %v2904
  %3633 = vmatprep.subr.bf16.mxu0 %v2913
  %3634 = vmatpush1.bf16.msra.mxu0 %v2912
  %3635 = vmatprep.subr.bf16.mxu0 %v2921
  %3636 = vmatpush1.bf16.msra.mxu0 %v2920
  %3637 = vmatprep.subr.bf16.mxu0 %v2929
  %3638 = vmatpush1.bf16.msra.mxu0 %v2928
  %3639 = vmatprep.subr.bf16.mxu0 %v2937
  %3640 = vmatpush1.bf16.msra.mxu0 %v2936
  %3641 = vmatprep.subr.bf16.mxu0 %v2945
  %3642 = vmatpush1.bf16.msra.mxu0 %v2944
  %3643 = vmatprep.subr.bf16.mxu0 %v2953
  %3644 = vmatpush1.bf16.msra.mxu0 %v2952
  %3645 = vmatprep.subr.bf16.mxu0 %v2961
  %3646 = vmatpush1.bf16.msra.mxu0 %v2960
  %3647 = vmatprep.subr.bf16.mxu0 %v2969
  %3648 = vmatpush1.bf16.msra.mxu0 %v2968
  %3649 = vmatprep.mubr.bf16.mxu0 %v373
  %3650 = vmatmul.mubr.bf16.gmra.mrb[0].mxu0 %v372
  %v3651 = vpop.f32.mrb[0].mxu0
  %v3652 = vadd.f32 %v3609, %v3651
  %v3653 = vpop.f32.mrb[0].mxu0
  %v3654 = vadd.f32 %v3611, %v3653
  %v3655 = vpop.f32.mrb[0].mxu0
  %v3656 = vadd.f32 %v3613, %v3655
  %v3657 = vpop.f32.mrb[0].mxu0
  %v3658 = vadd.f32 %v3615, %v3657
  %3659 = vdwg.mxu0
  %3660 = vmatprep.subr.bf16.mxu0 %v2467
  %3661 = vmatpush1.bf16.msra.mxu0 %v2466
  %3662 = vmatprep.subr.bf16.mxu0 %v2475
  %3663 = vmatpush1.bf16.msra.mxu0 %v2474
  %3664 = vmatprep.subr.bf16.mxu0 %v2483
  %3665 = vmatpush1.bf16.msra.mxu0 %v2482
  %3666 = vmatprep.subr.bf16.mxu0 %v2491
  %3667 = vmatpush1.bf16.msra.mxu0 %v2490
  %3668 = vmatprep.subr.bf16.mxu0 %v2499
  %3669 = vmatpush1.bf16.msra.mxu0 %v2498
  %3670 = vmatprep.subr.bf16.mxu0 %v2507
  %3671 = vmatpush1.bf16.msra.mxu0 %v2506
  %3672 = vmatprep.subr.bf16.mxu0 %v2515
  %3673 = vmatpush1.bf16.msra.mxu0 %v2514
  %3674 = vmatprep.subr.bf16.mxu0 %v2523
  %3675 = vmatpush1.bf16.msra.mxu0 %v2522
  %3676 = vmatprep.subr.bf16.mxu0 %v2531
  %3677 = vmatpush1.bf16.msra.mxu0 %v2530
  %3678 = vmatprep.subr.bf16.mxu0 %v2539
  %3679 = vmatpush1.bf16.msra.mxu0 %v2538
  %3680 = vmatprep.subr.bf16.mxu0 %v2547
  %3681 = vmatpush1.bf16.msra.mxu0 %v2546
  %3682 = vmatprep.subr.bf16.mxu0 %v2555
  %3683 = vmatpush1.bf16.msra.mxu0 %v2554
  %3684 = vmatprep.subr.bf16.mxu0 %v2563
  %3685 = vmatpush1.bf16.msra.mxu0 %v2562
  %3686 = vmatprep.subr.bf16.mxu0 %v2571
  %3687 = vmatpush1.bf16.msra.mxu0 %v2570
  %3688 = vmatprep.subr.bf16.mxu0 %v2579
  %3689 = vmatpush1.bf16.msra.mxu0 %v2578
  %3690 = vmatprep.subr.bf16.mxu0 %v2587
  %3691 = vmatpush1.bf16.msra.mxu0 %v2586
  %3692 = vmatprep.mubr.bf16.mxu0 %v367
  %3693 = vmatmul.mubr.bf16.gmra.mrb[0].mxu0 %v366
  %v3694 = vpop.f32.mrb[0].mxu0
  %v3695 = vadd.f32 %v899, %v3694
  %v3696 = vpop.f32.mrb[0].mxu0
  %v3697 = vadd.f32 %v903, %v3696
  %v3698 = vpop.f32.mrb[0].mxu0
  %v3699 = vadd.f32 %v899, %v3698
  %v3700 = vpop.f32.mrb[0].mxu0
  %v3701 = vadd.f32 %v903, %v3700
  %3702 = vdwg.mxu0
  %3703 = vmatprep.subr.bf16.mxu0 %v2595
  %3704 = vmatpush1.bf16.msra.mxu0 %v2594
  %3705 = vmatprep.subr.bf16.mxu0 %v2603
  %3706 = vmatpush1.bf16.msra.mxu0 %v2602
  %3707 = vmatprep.subr.bf16.mxu0 %v2611
  %3708 = vmatpush1.bf16.msra.mxu0 %v2610
  %3709 = vmatprep.subr.bf16.mxu0 %v2619
  %3710 = vmatpush1.bf16.msra.mxu0 %v2618
  %3711 = vmatprep.subr.bf16.mxu0 %v2627
  %3712 = vmatpush1.bf16.msra.mxu0 %v2626
  %3713 = vmatprep.subr.bf16.mxu0 %v2635
  %3714 = vmatpush1.bf16.msra.mxu0 %v2634
  %3715 = vmatprep.subr.bf16.mxu0 %v2643
  %3716 = vmatpush1.bf16.msra.mxu0 %v2642
  %3717 = vmatprep.subr.bf16.mxu0 %v2651
  %3718 = vmatpush1.bf16.msra.mxu0 %v2650
  %3719 = vmatprep.subr.bf16.mxu0 %v2659
  %3720 = vmatpush1.bf16.msra.mxu0 %v2658
  %3721 = vmatprep.subr.bf16.mxu0 %v2667
  %3722 = vmatpush1.bf16.msra.mxu0 %v2666
  %3723 = vmatprep.subr.bf16.mxu0 %v2675
  %3724 = vmatpush1.bf16.msra.mxu0 %v2674
  %3725 = vmatprep.subr.bf16.mxu0 %v2683
  %3726 = vmatpush1.bf16.msra.mxu0 %v2682
  %3727 = vmatprep.subr.bf16.mxu0 %v2691
  %3728 = vmatpush1.bf16.msra.mxu0 %v2690
  %3729 = vmatprep.subr.bf16.mxu0 %v2699
  %3730 = vmatpush1.bf16.msra.mxu0 %v2698
  %3731 = vmatprep.subr.bf16.mxu0 %v2707
  %3732 = vmatpush1.bf16.msra.mxu0 %v2706
  %3733 = vmatprep.subr.bf16.mxu0 %v2715
  %3734 = vmatpush1.bf16.msra.mxu0 %v2714
  %3735 = vmatprep.mubr.bf16.mxu0 %v369
  %3736 = vmatmul.mubr.bf16.gmra.mrb[0].mxu0 %v368
  %v3737 = vpop.f32.mrb[0].mxu0
  %v3738 = vadd.f32 %v3695, %v3737
  %v3739 = vpop.f32.mrb[0].mxu0
  %v3740 = vadd.f32 %v3697, %v3739
  %v3741 = vpop.f32.mrb[0].mxu0
  %v3742 = vadd.f32 %v3699, %v3741
  %v3743 = vpop.f32.mrb[0].mxu0
  %v3744 = vadd.f32 %v3701, %v3743
  %3745 = vdwg.mxu0
  %3746 = vmatprep.subr.bf16.mxu0 %v2723
  %3747 = vmatpush1.bf16.msra.mxu0 %v2722
  %3748 = vmatprep.subr.bf16.mxu0 %v2731
  %3749 = vmatpush1.bf16.msra.mxu0 %v2730
  %3750 = vmatprep.subr.bf16.mxu0 %v2739
  %3751 = vmatpush1.bf16.msra.mxu0 %v2738
  %3752 = vmatprep.subr.bf16.mxu0 %v2747
  %3753 = vmatpush1.bf16.msra.mxu0 %v2746
  %3754 = vmatprep.subr.bf16.mxu0 %v2755
  %3755 = vmatpush1.bf16.msra.mxu0 %v2754
  %3756 = vmatprep.subr.bf16.mxu0 %v2763
  %3757 = vmatpush1.bf16.msra.mxu0 %v2762
  %3758 = vmatprep.subr.bf16.mxu0 %v2771
  %3759 = vmatpush1.bf16.msra.mxu0 %v2770
  %3760 = vmatprep.subr.bf16.mxu0 %v2779
  %3761 = vmatpush1.bf16.msra.mxu0 %v2778
  %3762 = vmatprep.subr.bf16.mxu0 %v2787
  %3763 = vmatpush1.bf16.msra.mxu0 %v2786
  %3764 = vmatprep.subr.bf16.mxu0 %v2795
  %3765 = vmatpush1.bf16.msra.mxu0 %v2794
  %3766 = vmatprep.subr.bf16.mxu0 %v2803
  %3767 = vmatpush1.bf16.msra.mxu0 %v2802
  %3768 = vmatprep.subr.bf16.mxu0 %v2811
  %3769 = vmatpush1.bf16.msra.mxu0 %v2810
  %3770 = vmatprep.subr.bf16.mxu0 %v2819
  %3771 = vmatpush1.bf16.msra.mxu0 %v2818
  %3772 = vmatprep.subr.bf16.mxu0 %v2827
  %3773 = vmatpush1.bf16.msra.mxu0 %v2826
  %3774 = vmatprep.subr.bf16.mxu0 %v2835
  %3775 = vmatpush1.bf16.msra.mxu0 %v2834
  %3776 = vmatprep.subr.bf16.mxu0 %v2843
  %3777 = vmatpush1.bf16.msra.mxu0 %v2842
  %3778 = vmatprep.mubr.bf16.mxu0 %v371
  %3779 = vmatmul.mubr.bf16.gmra.mrb[0].mxu0 %v370
  %v3780 = vpop.f32.mrb[0].mxu0
  %v3781 = vadd.f32 %v3738, %v3780
  %v3782 = vpop.f32.mrb[0].mxu0
  %v3783 = vadd.f32 %v3740, %v3782
  %v3784 = vpop.f32.mrb[0].mxu0
  %v3785 = vadd.f32 %v3742, %v3784
  %v3786 = vpop.f32.mrb[0].mxu0
  %v3787 = vadd.f32 %v3744, %v3786
  %3788 = vdwg.mxu0
  %3789 = vmatprep.subr.bf16.mxu0 %v2851
  %3790 = vmatpush1.bf16.msra.mxu0 %v2850
  %3791 = vmatprep.subr.bf16.mxu0 %v2859
  %3792 = vmatpush1.bf16.msra.mxu0 %v2858
  %3793 = vmatprep.subr.bf16.mxu0 %v2867
  %3794 = vmatpush1.bf16.msra.mxu0 %v2866
  %3795 = vmatprep.subr.bf16.mxu0 %v2875
  %3796 = vmatpush1.bf16.msra.mxu0 %v2874
  %3797 = vmatprep.subr.bf16.mxu0 %v2883
  %3798 = vmatpush1.bf16.msra.mxu0 %v2882
  %3799 = vmatprep.subr.bf16.mxu0 %v2891
  %3800 = vmatpush1.bf16.msra.mxu0 %v2890
  %3801 = vmatprep.subr.bf16.mxu0 %v2899
  %3802 = vmatpush1.bf16.msra.mxu0 %v2898
  %3803 = vmatprep.subr.bf16.mxu0 %v2907
  %3804 = vmatpush1.bf16.msra.mxu0 %v2906
  %3805 = vmatprep.subr.bf16.mxu0 %v2915
  %3806 = vmatpush1.bf16.msra.mxu0 %v2914
  %3807 = vmatprep.subr.bf16.mxu0 %v2923
  %3808 = vmatpush1.bf16.msra.mxu0 %v2922
  %3809 = vmatprep.subr.bf16.mxu0 %v2931
  %3810 = vmatpush1.bf16.msra.mxu0 %v2930
  %3811 = vmatprep.subr.bf16.mxu0 %v2939
  %3812 = vmatpush1.bf16.msra.mxu0 %v2938
  %3813 = vmatprep.subr.bf16.mxu0 %v2947
  %3814 = vmatpush1.bf16.msra.mxu0 %v2946
  %3815 = vmatprep.subr.bf16.mxu0 %v2955
  %3816 = vmatpush1.bf16.msra.mxu0 %v2954
  %3817 = vmatprep.subr.bf16.mxu0 %v2963
  %3818 = vmatpush1.bf16.msra.mxu0 %v2962
  %3819 = vmatprep.subr.bf16.mxu0 %v2971
  %3820 = vmatpush1.bf16.msra.mxu0 %v2970
  %3821 = vmatprep.mubr.bf16.mxu0 %v373
  %3822 = vmatmul.mubr.bf16.gmra.mrb[0].mxu0 %v372
  %v3823 = vpop.f32.mrb[0].mxu0
  %v3824 = vadd.f32 %v3781, %v3823
  %v3825 = vpop.f32.mrb[0].mxu0
  %v3826 = vadd.f32 %v3783, %v3825
  %v3827 = vpop.f32.mrb[0].mxu0
  %v3828 = vadd.f32 %v3785, %v3827
  %v3829 = vpop.f32.mrb[0].mxu0
  %v3830 = vadd.f32 %v3787, %v3829
  %3831 = vdwg.mxu0
  %3832 = vmatprep.subr.bf16.mxu0 %v2469
  %3833 = vmatpush1.bf16.msra.mxu0 %v2468
  %3834 = vmatprep.subr.bf16.mxu0 %v2477
  %3835 = vmatpush1.bf16.msra.mxu0 %v2476
  %3836 = vmatprep.subr.bf16.mxu0 %v2485
  %3837 = vmatpush1.bf16.msra.mxu0 %v2484
  %3838 = vmatprep.subr.bf16.mxu0 %v2493
  %3839 = vmatpush1.bf16.msra.mxu0 %v2492
  %3840 = vmatprep.subr.bf16.mxu0 %v2501
  %3841 = vmatpush1.bf16.msra.mxu0 %v2500
  %3842 = vmatprep.subr.bf16.mxu0 %v2509
  %3843 = vmatpush1.bf16.msra.mxu0 %v2508
  %3844 = vmatprep.subr.bf16.mxu0 %v2517
  %3845 = vmatpush1.bf16.msra.mxu0 %v2516
  %3846 = vmatprep.subr.bf16.mxu0 %v2525
  %3847 = vmatpush1.bf16.msra.mxu0 %v2524
  %3848 = vmatprep.subr.bf16.mxu0 %v2533
  %3849 = vmatpush1.bf16.msra.mxu0 %v2532
  %3850 = vmatprep.subr.bf16.mxu0 %v2541
  %3851 = vmatpush1.bf16.msra.mxu0 %v2540
  %3852 = vmatprep.subr.bf16.mxu0 %v2549
  %3853 = vmatpush1.bf16.msra.mxu0 %v2548
  %3854 = vmatprep.subr.bf16.mxu0 %v2557
  %3855 = vmatpush1.bf16.msra.mxu0 %v2556
  %3856 = vmatprep.subr.bf16.mxu0 %v2565
  %3857 = vmatpush1.bf16.msra.mxu0 %v2564
  %3858 = vmatprep.subr.bf16.mxu0 %v2573
  %3859 = vmatpush1.bf16.msra.mxu0 %v2572
  %3860 = vmatprep.subr.bf16.mxu0 %v2581
  %3861 = vmatpush1.bf16.msra.mxu0 %v2580
  %3862 = vmatprep.subr.bf16.mxu0 %v2589
  %3863 = vmatpush1.bf16.msra.mxu0 %v2588
  %3864 = vmatprep.mubr.bf16.mxu0 %v367
  %3865 = vmatmul.mubr.bf16.gmra.mrb[0].mxu0 %v366
  %v3866 = vpop.f32.mrb[0].mxu0
  %v3867 = vadd.f32 %v907, %v3866
  %v3868 = vpop.f32.mrb[0].mxu0
  %v3869 = vadd.f32 %v911, %v3868
  %v3870 = vpop.f32.mrb[0].mxu0
  %v3871 = vadd.f32 %v907, %v3870
  %v3872 = vpop.f32.mrb[0].mxu0
  %v3873 = vadd.f32 %v911, %v3872
  %3874 = vdwg.mxu0
  %3875 = vmatprep.subr.bf16.mxu0 %v2597
  %3876 = vmatpush1.bf16.msra.mxu0 %v2596
  %3877 = vmatprep.subr.bf16.mxu0 %v2605
  %3878 = vmatpush1.bf16.msra.mxu0 %v2604
  %3879 = vmatprep.subr.bf16.mxu0 %v2613
  %3880 = vmatpush1.bf16.msra.mxu0 %v2612
  %3881 = vmatprep.subr.bf16.mxu0 %v2621
  %3882 = vmatpush1.bf16.msra.mxu0 %v2620
  %3883 = vmatprep.subr.bf16.mxu0 %v2629
  %3884 = vmatpush1.bf16.msra.mxu0 %v2628
  %3885 = vmatprep.subr.bf16.mxu0 %v2637
  %3886 = vmatpush1.bf16.msra.mxu0 %v2636
  %3887 = vmatprep.subr.bf16.mxu0 %v2645
  %3888 = vmatpush1.bf16.msra.mxu0 %v2644
  %3889 = vmatprep.subr.bf16.mxu0 %v2653
  %3890 = vmatpush1.bf16.msra.mxu0 %v2652
  %3891 = vmatprep.subr.bf16.mxu0 %v2661
  %3892 = vmatpush1.bf16.msra.mxu0 %v2660
  %3893 = vmatprep.subr.bf16.mxu0 %v2669
  %3894 = vmatpush1.bf16.msra.mxu0 %v2668
  %3895 = vmatprep.subr.bf16.mxu0 %v2677
  %3896 = vmatpush1.bf16.msra.mxu0 %v2676
  %3897 = vmatprep.subr.bf16.mxu0 %v2685
  %3898 = vmatpush1.bf16.msra.mxu0 %v2684
  %3899 = vmatprep.subr.bf16.mxu0 %v2693
  %3900 = vmatpush1.bf16.msra.mxu0 %v2692
  %3901 = vmatprep.subr.bf16.mxu0 %v2701
  %3902 = vmatpush1.bf16.msra.mxu0 %v2700
  %3903 = vmatprep.subr.bf16.mxu0 %v2709
  %3904 = vmatpush1.bf16.msra.mxu0 %v2708
  %3905 = vmatprep.subr.bf16.mxu0 %v2717
  %3906 = vmatpush1.bf16.msra.mxu0 %v2716
  %3907 = vmatprep.mubr.bf16.mxu0 %v369
  %3908 = vmatmul.mubr.bf16.gmra.mrb[0].mxu0 %v368
  %v3909 = vpop.f32.mrb[0].mxu0
  %v3910 = vadd.f32 %v3867, %v3909
  %v3911 = vpop.f32.mrb[0].mxu0
  %v3912 = vadd.f32 %v3869, %v3911
  %v3913 = vpop.f32.mrb[0].mxu0
  %v3914 = vadd.f32 %v3871, %v3913
  %v3915 = vpop.f32.mrb[0].mxu0
  %v3916 = vadd.f32 %v3873, %v3915
  %3917 = vdwg.mxu0
  %3918 = vmatprep.subr.bf16.mxu0 %v2725
  %3919 = vmatpush1.bf16.msra.mxu0 %v2724
  %3920 = vmatprep.subr.bf16.mxu0 %v2733
  %3921 = vmatpush1.bf16.msra.mxu0 %v2732
  %3922 = vmatprep.subr.bf16.mxu0 %v2741
  %3923 = vmatpush1.bf16.msra.mxu0 %v2740
  %3924 = vmatprep.subr.bf16.mxu0 %v2749
  %3925 = vmatpush1.bf16.msra.mxu0 %v2748
  %3926 = vmatprep.subr.bf16.mxu0 %v2757
  %3927 = vmatpush1.bf16.msra.mxu0 %v2756
  %3928 = vmatprep.subr.bf16.mxu0 %v2765
  %3929 = vmatpush1.bf16.msra.mxu0 %v2764
  %3930 = vmatprep.subr.bf16.mxu0 %v2773
  %3931 = vmatpush1.bf16.msra.mxu0 %v2772
  %3932 = vmatprep.subr.bf16.mxu0 %v2781
  %3933 = vmatpush1.bf16.msra.mxu0 %v2780
  %3934 = vmatprep.subr.bf16.mxu0 %v2789
  %3935 = vmatpush1.bf16.msra.mxu0 %v2788
  %3936 = vmatprep.subr.bf16.mxu0 %v2797
  %3937 = vmatpush1.bf16.msra.mxu0 %v2796
  %3938 = vmatprep.subr.bf16.mxu0 %v2805
  %3939 = vmatpush1.bf16.msra.mxu0 %v2804
  %3940 = vmatprep.subr.bf16.mxu0 %v2813
  %3941 = vmatpush1.bf16.msra.mxu0 %v2812
  %3942 = vmatprep.subr.bf16.mxu0 %v2821
  %3943 = vmatpush1.bf16.msra.mxu0 %v2820
  %3944 = vmatprep.subr.bf16.mxu0 %v2829
  %3945 = vmatpush1.bf16.msra.mxu0 %v2828
  %3946 = vmatprep.subr.bf16.mxu0 %v2837
  %3947 = vmatpush1.bf16.msra.mxu0 %v2836
  %3948 = vmatprep.subr.bf16.mxu0 %v2845
  %3949 = vmatpush1.bf16.msra.mxu0 %v2844
  %3950 = vmatprep.mubr.bf16.mxu0 %v371
  %3951 = vmatmul.mubr.bf16.gmra.mrb[0].mxu0 %v370
  %v3952 = vpop.f32.mrb[0].mxu0
  %v3953 = vadd.f32 %v3910, %v3952
  %v3954 = vpop.f32.mrb[0].mxu0
  %v3955 = vadd.f32 %v3912, %v3954
  %v3956 = vpop.f32.mrb[0].mxu0
  %v3957 = vadd.f32 %v3914, %v3956
  %v3958 = vpop.f32.mrb[0].mxu0
  %v3959 = vadd.f32 %v3916, %v3958
  %3960 = vdwg.mxu0
  %3961 = vmatprep.subr.bf16.mxu0 %v2853
  %3962 = vmatpush1.bf16.msra.mxu0 %v2852
  %3963 = vmatprep.subr.bf16.mxu0 %v2861
  %3964 = vmatpush1.bf16.msra.mxu0 %v2860
  %3965 = vmatprep.subr.bf16.mxu0 %v2869
  %3966 = vmatpush1.bf16.msra.mxu0 %v2868
  %3967 = vmatprep.subr.bf16.mxu0 %v2877
  %3968 = vmatpush1.bf16.msra.mxu0 %v2876
  %3969 = vmatprep.subr.bf16.mxu0 %v2885
  %3970 = vmatpush1.bf16.msra.mxu0 %v2884
  %3971 = vmatprep.subr.bf16.mxu0 %v2893
  %3972 = vmatpush1.bf16.msra.mxu0 %v2892
  %3973 = vmatprep.subr.bf16.mxu0 %v2901
  %3974 = vmatpush1.bf16.msra.mxu0 %v2900
  %3975 = vmatprep.subr.bf16.mxu0 %v2909
  %3976 = vmatpush1.bf16.msra.mxu0 %v2908
  %3977 = vmatprep.subr.bf16.mxu0 %v2917
  %3978 = vmatpush1.bf16.msra.mxu0 %v2916
  %3979 = vmatprep.subr.bf16.mxu0 %v2925
  %3980 = vmatpush1.bf16.msra.mxu0 %v2924
  %3981 = vmatprep.subr.bf16.mxu0 %v2933
  %3982 = vmatpush1.bf16.msra.mxu0 %v2932
  %3983 = vmatprep.subr.bf16.mxu0 %v2941
  %3984 = vmatpush1.bf16.msra.mxu0 %v2940
  %3985 = vmatprep.subr.bf16.mxu0 %v2949
  %3986 = vmatpush1.bf16.msra.mxu0 %v2948
  %3987 = vmatprep.subr.bf16.mxu0 %v2957
  %3988 = vmatpush1.bf16.msra.mxu0 %v2956
  %3989 = vmatprep.subr.bf16.mxu0 %v2965
  %3990 = vmatpush1.bf16.msra.mxu0 %v2964
  %3991 = vmatprep.subr.bf16.mxu0 %v2973
  %3992 = vmatpush1.bf16.msra.mxu0 %v2972
  %3993 = vmatprep.mubr.bf16.mxu0 %v373
  %3994 = vmatmul.mubr.bf16.gmra.mrb[0].mxu0 %v372
  %v3995 = vpop.f32.mrb[0].mxu0
  %v3996 = vadd.f32 %v3953, %v3995
  %v3997 = vpop.f32.mrb[0].mxu0
  %v3998 = vadd.f32 %v3955, %v3997
  %v3999 = vpop.f32.mrb[0].mxu0
  %v4000 = vadd.f32 %v3957, %v3999
  %v4001 = vpop.f32.mrb[0].mxu0
  %v4002 = vadd.f32 %v3959, %v4001
  %4003 = vdwg.mxu0
  %4004 = vmatprep.subr.bf16.mxu0 %v2471
  %4005 = vmatpush1.bf16.msra.mxu0 %v2470
  %4006 = vmatprep.subr.bf16.mxu0 %v2479
  %4007 = vmatpush1.bf16.msra.mxu0 %v2478
  %4008 = vmatprep.subr.bf16.mxu0 %v2487
  %4009 = vmatpush1.bf16.msra.mxu0 %v2486
  %4010 = vmatprep.subr.bf16.mxu0 %v2495
  %4011 = vmatpush1.bf16.msra.mxu0 %v2494
  %4012 = vmatprep.subr.bf16.mxu0 %v2503
  %4013 = vmatpush1.bf16.msra.mxu0 %v2502
  %4014 = vmatprep.subr.bf16.mxu0 %v2511
  %4015 = vmatpush1.bf16.msra.mxu0 %v2510
  %4016 = vmatprep.subr.bf16.mxu0 %v2519
  %4017 = vmatpush1.bf16.msra.mxu0 %v2518
  %4018 = vmatprep.subr.bf16.mxu0 %v2527
  %4019 = vmatpush1.bf16.msra.mxu0 %v2526
  %4020 = vmatprep.subr.bf16.mxu0 %v2535
  %4021 = vmatpush1.bf16.msra.mxu0 %v2534
  %4022 = vmatprep.subr.bf16.mxu0 %v2543
  %4023 = vmatpush1.bf16.msra.mxu0 %v2542
  %4024 = vmatprep.subr.bf16.mxu0 %v2551
  %4025 = vmatpush1.bf16.msra.mxu0 %v2550
  %4026 = vmatprep.subr.bf16.mxu0 %v2559
  %4027 = vmatpush1.bf16.msra.mxu0 %v2558
  %4028 = vmatprep.subr.bf16.mxu0 %v2567
  %4029 = vmatpush1.bf16.msra.mxu0 %v2566
  %4030 = vmatprep.subr.bf16.mxu0 %v2575
  %4031 = vmatpush1.bf16.msra.mxu0 %v2574
  %4032 = vmatprep.subr.bf16.mxu0 %v2583
  %4033 = vmatpush1.bf16.msra.mxu0 %v2582
  %4034 = vmatprep.subr.bf16.mxu0 %v2591
  %4035 = vmatpush1.bf16.msra.mxu0 %v2590
  %4036 = vmatprep.mubr.bf16.mxu0 %v367
  %4037 = vmatmul.mubr.bf16.gmra.mrb[0].mxu0 %v366
  %v4038 = vpop.f32.mrb[0].mxu0
  %v4039 = vadd.f32 %v915, %v4038
  %v4040 = vpop.f32.mrb[0].mxu0
  %v4041 = vadd.f32 %v919, %v4040
  %v4042 = vpop.f32.mrb[0].mxu0
  %v4043 = vadd.f32 %v915, %v4042
  %v4044 = vpop.f32.mrb[0].mxu0
  %v4045 = vadd.f32 %v919, %v4044
  %4046 = vdwg.mxu0
  %4047 = vmatprep.subr.bf16.mxu0 %v2599
  %4048 = vmatpush1.bf16.msra.mxu0 %v2598
  %4049 = vmatprep.subr.bf16.mxu0 %v2607
  %4050 = vmatpush1.bf16.msra.mxu0 %v2606
  %4051 = vmatprep.subr.bf16.mxu0 %v2615
  %4052 = vmatpush1.bf16.msra.mxu0 %v2614
  %4053 = vmatprep.subr.bf16.mxu0 %v2623
  %4054 = vmatpush1.bf16.msra.mxu0 %v2622
  %4055 = vmatprep.subr.bf16.mxu0 %v2631
  %4056 = vmatpush1.bf16.msra.mxu0 %v2630
  %4057 = vmatprep.subr.bf16.mxu0 %v2639
  %4058 = vmatpush1.bf16.msra.mxu0 %v2638
  %4059 = vmatprep.subr.bf16.mxu0 %v2647
  %4060 = vmatpush1.bf16.msra.mxu0 %v2646
  %4061 = vmatprep.subr.bf16.mxu0 %v2655
  %4062 = vmatpush1.bf16.msra.mxu0 %v2654
  %4063 = vmatprep.subr.bf16.mxu0 %v2663
  %4064 = vmatpush1.bf16.msra.mxu0 %v2662
  %4065 = vmatprep.subr.bf16.mxu0 %v2671
  %4066 = vmatpush1.bf16.msra.mxu0 %v2670
  %4067 = vmatprep.subr.bf16.mxu0 %v2679
  %4068 = vmatpush1.bf16.msra.mxu0 %v2678
  %4069 = vmatprep.subr.bf16.mxu0 %v2687
  %4070 = vmatpush1.bf16.msra.mxu0 %v2686
  %4071 = vmatprep.subr.bf16.mxu0 %v2695
  %4072 = vmatpush1.bf16.msra.mxu0 %v2694
  %4073 = vmatprep.subr.bf16.mxu0 %v2703
  %4074 = vmatpush1.bf16.msra.mxu0 %v2702
  %4075 = vmatprep.subr.bf16.mxu0 %v2711
  %4076 = vmatpush1.bf16.msra.mxu0 %v2710
  %4077 = vmatprep.subr.bf16.mxu0 %v2719
  %4078 = vmatpush1.bf16.msra.mxu0 %v2718
  %4079 = vmatprep.mubr.bf16.mxu0 %v369
  %4080 = vmatmul.mubr.bf16.gmra.mrb[0].mxu0 %v368
  %v4081 = vpop.f32.mrb[0].mxu0
  %v4082 = vadd.f32 %v4039, %v4081
  %v4083 = vpop.f32.mrb[0].mxu0
  %v4084 = vadd.f32 %v4041, %v4083
  %v4085 = vpop.f32.mrb[0].mxu0
  %v4086 = vadd.f32 %v4043, %v4085
  %v4087 = vpop.f32.mrb[0].mxu0
  %v4088 = vadd.f32 %v4045, %v4087
  %4089 = vdwg.mxu0
  %4090 = vmatprep.subr.bf16.mxu0 %v2727
  %4091 = vmatpush1.bf16.msra.mxu0 %v2726
  %4092 = vmatprep.subr.bf16.mxu0 %v2735
  %4093 = vmatpush1.bf16.msra.mxu0 %v2734
  %4094 = vmatprep.subr.bf16.mxu0 %v2743
  %4095 = vmatpush1.bf16.msra.mxu0 %v2742
  %4096 = vmatprep.subr.bf16.mxu0 %v2751
  %4097 = vmatpush1.bf16.msra.mxu0 %v2750
  %4098 = vmatprep.subr.bf16.mxu0 %v2759
  %4099 = vmatpush1.bf16.msra.mxu0 %v2758
  %4100 = vmatprep.subr.bf16.mxu0 %v2767
  %4101 = vmatpush1.bf16.msra.mxu0 %v2766
  %4102 = vmatprep.subr.bf16.mxu0 %v2775
  %4103 = vmatpush1.bf16.msra.mxu0 %v2774
  %4104 = vmatprep.subr.bf16.mxu0 %v2783
  %4105 = vmatpush1.bf16.msra.mxu0 %v2782
  %4106 = vmatprep.subr.bf16.mxu0 %v2791
  %4107 = vmatpush1.bf16.msra.mxu0 %v2790
  %4108 = vmatprep.subr.bf16.mxu0 %v2799
  %4109 = vmatpush1.bf16.msra.mxu0 %v2798
  %4110 = vmatprep.subr.bf16.mxu0 %v2807
  %4111 = vmatpush1.bf16.msra.mxu0 %v2806
  %4112 = vmatprep.subr.bf16.mxu0 %v2815
  %4113 = vmatpush1.bf16.msra.mxu0 %v2814
  %4114 = vmatprep.subr.bf16.mxu0 %v2823
  %4115 = vmatpush1.bf16.msra.mxu0 %v2822
  %4116 = vmatprep.subr.bf16.mxu0 %v2831
  %4117 = vmatpush1.bf16.msra.mxu0 %v2830
  %4118 = vmatprep.subr.bf16.mxu0 %v2839
  %4119 = vmatpush1.bf16.msra.mxu0 %v2838
  %4120 = vmatprep.subr.bf16.mxu0 %v2847
  %4121 = vmatpush1.bf16.msra.mxu0 %v2846
  %4122 = vmatprep.mubr.bf16.mxu0 %v371
  %4123 = vmatmul.mubr.bf16.gmra.mrb[0].mxu0 %v370
  %v4124 = vpop.f32.mrb[0].mxu0
  %v4125 = vadd.f32 %v4082, %v4124
  %v4126 = vpop.f32.mrb[0].mxu0
  %v4127 = vadd.f32 %v4084, %v4126
  %v4128 = vpop.f32.mrb[0].mxu0
  %v4129 = vadd.f32 %v4086, %v4128
  %v4130 = vpop.f32.mrb[0].mxu0
  %v4131 = vadd.f32 %v4088, %v4130
  %4132 = vdwg.mxu0
  %4133 = vmatprep.subr.bf16.mxu0 %v2855
  %4134 = vmatpush1.bf16.msra.mxu0 %v2854
  %4135 = vmatprep.subr.bf16.mxu0 %v2863
  %4136 = vmatpush1.bf16.msra.mxu0 %v2862
  %4137 = vmatprep.subr.bf16.mxu0 %v2871
  %4138 = vmatpush1.bf16.msra.mxu0 %v2870
  %4139 = vmatprep.subr.bf16.mxu0 %v2879
  %4140 = vmatpush1.bf16.msra.mxu0 %v2878
  %4141 = vmatprep.subr.bf16.mxu0 %v2887
  %4142 = vmatpush1.bf16.msra.mxu0 %v2886
  %4143 = vmatprep.subr.bf16.mxu0 %v2895
  %4144 = vmatpush1.bf16.msra.mxu0 %v2894
  %4145 = vmatprep.subr.bf16.mxu0 %v2903
  %4146 = vmatpush1.bf16.msra.mxu0 %v2902
  %4147 = vmatprep.subr.bf16.mxu0 %v2911
  %4148 = vmatpush1.bf16.msra.mxu0 %v2910
  %4149 = vmatprep.subr.bf16.mxu0 %v2919
  %4150 = vmatpush1.bf16.msra.mxu0 %v2918
  %4151 = vmatprep.subr.bf16.mxu0 %v2927
  %4152 = vmatpush1.bf16.msra.mxu0 %v2926
  %4153 = vmatprep.subr.bf16.mxu0 %v2935
  %4154 = vmatpush1.bf16.msra.mxu0 %v2934
  %4155 = vmatprep.subr.bf16.mxu0 %v2943
  %4156 = vmatpush1.bf16.msra.mxu0 %v2942
  %4157 = vmatprep.subr.bf16.mxu0 %v2951
  %4158 = vmatpush1.bf16.msra.mxu0 %v2950
  %4159 = vmatprep.subr.bf16.mxu0 %v2959
  %4160 = vmatpush1.bf16.msra.mxu0 %v2958
  %4161 = vmatprep.subr.bf16.mxu0 %v2967
  %4162 = vmatpush1.bf16.msra.mxu0 %v2966
  %4163 = vmatprep.subr.bf16.mxu0 %v2975
  %4164 = vmatpush1.bf16.msra.mxu0 %v2974
  %4165 = vmatprep.mubr.bf16.mxu0 %v373
  %4166 = vmatmul.mubr.bf16.gmra.mrb[0].mxu0 %v372
  %v4167 = vpop.f32.mrb[0].mxu0
  %v4168 = vadd.f32 %v4125, %v4167
  %v4169 = vpop.f32.mrb[0].mxu0
  %v4170 = vadd.f32 %v4127, %v4169
  %v4171 = vpop.f32.mrb[0].mxu0
  %v4172 = vadd.f32 %v4129, %v4171
  %v4173 = vpop.f32.mrb[0].mxu0
  %v4174 = vadd.f32 %v4131, %v4173
  %4175 = vdwg.mxu0
  %v4176 = vmax.f32 %v3652, 0.0
  %v4177 = vmax.f32 %v3654, 0.0
  %v4178 = vmax.f32 %v3824, 0.0
  %v4179 = vmax.f32 %v3826, 0.0
  %v4180 = vmax.f32 %v3996, 0.0
  %v4181 = vmax.f32 %v3998, 0.0
  %v4182 = vmax.f32 %v4168, 0.0
  %v4183 = vmax.f32 %v4170, 0.0
  %v4184 = vmax.f32 %v3656, 0.0
  %v4185 = vmax.f32 %v3658, 0.0
  %v4186 = vmax.f32 %v3828, 0.0
  %v4187 = vmax.f32 %v3830, 0.0
  %v4188 = vmax.f32 %v4000, 0.0
  %v4189 = vmax.f32 %v4002, 0.0
  %v4190 = vmax.f32 %v4172, 0.0
  %v4191 = vmax.f32 %v4174, 0.0
  %v4192 = vpack.c.bf16 %v4184, %v4176
  %v4193 = vpack.c.bf16 %v4185, %v4177
  %v4194 = vpack.c.bf16 %v4186, %v4178
  %v4195 = vpack.c.bf16 %v4187, %v4179
  %v4196 = vpack.c.bf16 %v4188, %v4180
  %v4197 = vpack.c.bf16 %v4189, %v4181
  %v4198 = vpack.c.bf16 %v4190, %v4182
  %v4199 = vpack.c.bf16 %v4191, %v4183
  %v4200 = vld [vmem:[%s5] sm:$0xf]
  %v4201 = vld [vmem:[%s5 + $0x4] sm:$0xf]
  %v4202 = vld [vmem:[%s5 + $0x8] sm:$0xf]
  %v4203 = vld [vmem:[%s5 + $0xc] sm:$0xf]
  %v4204 = vld [vmem:[%s5 + $0x10] sm:$0xf]
  %v4205 = vld [vmem:[%s5 + $0x14] sm:$0xf]
  %v4206 = vld [vmem:[%s5 + $0x18] sm:$0xf]
  %v4207 = vld [vmem:[%s5 + $0x1c] sm:$0xf]
  %v4208 = vld [vmem:[%s5 + $0x20] sm:$0xf]
  %v4209 = vld [vmem:[%s5 + $0x24] sm:$0xf]
  %v4210 = vld [vmem:[%s5 + $0x28] sm:$0xf]
  %v4211 = vld [vmem:[%s5 + $0x2c] sm:$0xf]
  %v4212 = vld [vmem:[%s5 + $0x30] sm:$0xf]
  %v4213 = vld [vmem:[%s5 + $0x34] sm:$0xf]
  %v4214 = vld [vmem:[%s5 + $0x38] sm:$0xf]
  %v4215 = vld [vmem:[%s5 + $0x3c] sm:$0xf]
  %v4216 = vld [vmem:[%s5 + $0x40] sm:$0xf]
  %v4217 = vld [vmem:[%s5 + $0x44] sm:$0xf]
  %v4218 = vld [vmem:[%s5 + $0x48] sm:$0xf]
  %v4219 = vld [vmem:[%s5 + $0x4c] sm:$0xf]
  %v4220 = vld [vmem:[%s5 + $0x50] sm:$0xf]
  %v4221 = vld [vmem:[%s5 + $0x54] sm:$0xf]
  %v4222 = vld [vmem:[%s5 + $0x58] sm:$0xf]
  %v4223 = vld [vmem:[%s5 + $0x5c] sm:$0xf]
  %v4224 = vld [vmem:[%s5 + $0x60] sm:$0xf]
  %v4225 = vld [vmem:[%s5 + $0x64] sm:$0xf]
  %v4226 = vld [vmem:[%s5 + $0x68] sm:$0xf]
  %v4227 = vld [vmem:[%s5 + $0x6c] sm:$0xf]
  %v4228 = vld [vmem:[%s5 + $0x70] sm:$0xf]
  %v4229 = vld [vmem:[%s5 + $0x74] sm:$0xf]
  %v4230 = vld [vmem:[%s5 + $0x78] sm:$0xf]
  %v4231 = vld [vmem:[%s5 + $0x7c] sm:$0xf]
  %v4232 = vld [vmem:[%s5 + $0x80] sm:$0xf]
  %v4233 = vld [vmem:[%s5 + $0x84] sm:$0xf]
  %v4234 = vld [vmem:[%s5 + $0x88] sm:$0xf]
  %v4235 = vld [vmem:[%s5 + $0x8c] sm:$0xf]
  %v4236 = vld [vmem:[%s5 + $0x90] sm:$0xf]
  %v4237 = vld [vmem:[%s5 + $0x94] sm:$0xf]
  %v4238 = vld [vmem:[%s5 + $0x98] sm:$0xf]
  %v4239 = vld [vmem:[%s5 + $0x9c] sm:$0xf]
  %v4240 = vld [vmem:[%s5 + $0xa0] sm:$0xf]
  %v4241 = vld [vmem:[%s5 + $0xa4] sm:$0xf]
  %v4242 = vld [vmem:[%s5 + $0xa8] sm:$0xf]
  %v4243 = vld [vmem:[%s5 + $0xac] sm:$0xf]
  %v4244 = vld [vmem:[%s5 + $0xb0] sm:$0xf]
  %v4245 = vld [vmem:[%s5 + $0xb4] sm:$0xf]
  %v4246 = vld [vmem:[%s5 + $0xb8] sm:$0xf]
  %v4247 = vld [vmem:[%s5 + $0xbc] sm:$0xf]
  %v4248 = vld [vmem:[%s5 + $0xc0] sm:$0xf]
  %v4249 = vld [vmem:[%s5 + $0xc4] sm:$0xf]
  %v4250 = vld [vmem:[%s5 + $0xc8] sm:$0xf]
  %v4251 = vld [vmem:[%s5 + $0xcc] sm:$0xf]
  %v4252 = vld [vmem:[%s5 + $0xd0] sm:$0xf]
  %v4253 = vld [vmem:[%s5 + $0xd4] sm:$0xf]
  %v4254 = vld [vmem:[%s5 + $0xd8] sm:$0xf]
  %v4255 = vld [vmem:[%s5 + $0xdc] sm:$0xf]
  %v4256 = vld [vmem:[%s5 + $0xe0] sm:$0xf]
  %v4257 = vld [vmem:[%s5 + $0xe4] sm:$0xf]
  %v4258 = vld [vmem:[%s5 + $0xe8] sm:$0xf]
  %v4259 = vld [vmem:[%s5 + $0xec] sm:$0xf]
  %v4260 = vld [vmem:[%s5 + $0xf0] sm:$0xf]
  %v4261 = vld [vmem:[%s5 + $0xf4] sm:$0xf]
  %v4262 = vld [vmem:[%s5 + $0xf8] sm:$0xf]
  %v4263 = vld [vmem:[%s5 + $0xfc] sm:$0xf]
  %v4264 = vld [vmem:[%s5 + $0x100] sm:$0xf]
  %v4265 = vld [vmem:[%s5 + $0x104] sm:$0xf]
  %v4266 = vld [vmem:[%s5 + $0x108] sm:$0xf]
  %v4267 = vld [vmem:[%s5 + $0x10c] sm:$0xf]
  %v4268 = vld [vmem:[%s5 + $0x110] sm:$0xf]
  %v4269 = vld [vmem:[%s5 + $0x114] sm:$0xf]
  %v4270 = vld [vmem:[%s5 + $0x118] sm:$0xf]
  %v4271 = vld [vmem:[%s5 + $0x11c] sm:$0xf]
  %v4272 = vld [vmem:[%s5 + $0x120] sm:$0xf]
  %v4273 = vld [vmem:[%s5 + $0x124] sm:$0xf]
  %v4274 = vld [vmem:[%s5 + $0x128] sm:$0xf]
  %v4275 = vld [vmem:[%s5 + $0x12c] sm:$0xf]
  %v4276 = vld [vmem:[%s5 + $0x130] sm:$0xf]
  %v4277 = vld [vmem:[%s5 + $0x134] sm:$0xf]
  %v4278 = vld [vmem:[%s5 + $0x138] sm:$0xf]
  %v4279 = vld [vmem:[%s5 + $0x13c] sm:$0xf]
  %v4280 = vld [vmem:[%s5 + $0x140] sm:$0xf]
  %v4281 = vld [vmem:[%s5 + $0x144] sm:$0xf]
  %v4282 = vld [vmem:[%s5 + $0x148] sm:$0xf]
  %v4283 = vld [vmem:[%s5 + $0x14c] sm:$0xf]
  %v4284 = vld [vmem:[%s5 + $0x150] sm:$0xf]
  %v4285 = vld [vmem:[%s5 + $0x154] sm:$0xf]
  %v4286 = vld [vmem:[%s5 + $0x158] sm:$0xf]
  %v4287 = vld [vmem:[%s5 + $0x15c] sm:$0xf]
  %v4288 = vld [vmem:[%s5 + $0x160] sm:$0xf]
  %v4289 = vld [vmem:[%s5 + $0x164] sm:$0xf]
  %v4290 = vld [vmem:[%s5 + $0x168] sm:$0xf]
  %v4291 = vld [vmem:[%s5 + $0x16c] sm:$0xf]
  %v4292 = vld [vmem:[%s5 + $0x170] sm:$0xf]
  %v4293 = vld [vmem:[%s5 + $0x174] sm:$0xf]
  %v4294 = vld [vmem:[%s5 + $0x178] sm:$0xf]
  %v4295 = vld [vmem:[%s5 + $0x17c] sm:$0xf]
  %v4296 = vld [vmem:[%s5 + $0x180] sm:$0xf]
  %v4297 = vld [vmem:[%s5 + $0x184] sm:$0xf]
  %v4298 = vld [vmem:[%s5 + $0x188] sm:$0xf]
  %v4299 = vld [vmem:[%s5 + $0x18c] sm:$0xf]
  %v4300 = vld [vmem:[%s5 + $0x190] sm:$0xf]
  %v4301 = vld [vmem:[%s5 + $0x194] sm:$0xf]
  %v4302 = vld [vmem:[%s5 + $0x198] sm:$0xf]
  %v4303 = vld [vmem:[%s5 + $0x19c] sm:$0xf]
  %v4304 = vld [vmem:[%s5 + $0x1a0] sm:$0xf]
  %v4305 = vld [vmem:[%s5 + $0x1a4] sm:$0xf]
  %v4306 = vld [vmem:[%s5 + $0x1a8] sm:$0xf]
  %v4307 = vld [vmem:[%s5 + $0x1ac] sm:$0xf]
  %v4308 = vld [vmem:[%s5 + $0x1b0] sm:$0xf]
  %v4309 = vld [vmem:[%s5 + $0x1b4] sm:$0xf]
  %v4310 = vld [vmem:[%s5 + $0x1b8] sm:$0xf]
  %v4311 = vld [vmem:[%s5 + $0x1bc] sm:$0xf]
  %v4312 = vld [vmem:[%s5 + $0x1c0] sm:$0xf]
  %v4313 = vld [vmem:[%s5 + $0x1c4] sm:$0xf]
  %v4314 = vld [vmem:[%s5 + $0x1c8] sm:$0xf]
  %v4315 = vld [vmem:[%s5 + $0x1cc] sm:$0xf]
  %v4316 = vld [vmem:[%s5 + $0x1d0] sm:$0xf]
  %v4317 = vld [vmem:[%s5 + $0x1d4] sm:$0xf]
  %v4318 = vld [vmem:[%s5 + $0x1d8] sm:$0xf]
  %v4319 = vld [vmem:[%s5 + $0x1dc] sm:$0xf]
  %v4320 = vld [vmem:[%s5 + $0x1e0] sm:$0xf]
  %v4321 = vld [vmem:[%s5 + $0x1e4] sm:$0xf]
  %v4322 = vld [vmem:[%s5 + $0x1e8] sm:$0xf]
  %v4323 = vld [vmem:[%s5 + $0x1ec] sm:$0xf]
  %v4324 = vld [vmem:[%s5 + $0x1f0] sm:$0xf]
  %v4325 = vld [vmem:[%s5 + $0x1f4] sm:$0xf]
  %v4326 = vld [vmem:[%s5 + $0x1f8] sm:$0xf]
  %v4327 = vld [vmem:[%s5 + $0x1fc] sm:$0xf]
  %v4328 = vld [vmem:[%s6] sm:$0x1]
  %v4330 = vlaneseq
  %v4331 = vshrl.u32 %v4330, 7
  %v4332 = vsub.s32 0, %v4331
  %v4333 = vrot.slane %v4328, %v4332
  %v4463 = vunpack.c.l.b16 %v4200
  %v4464 = vunpack.c.l.b16 %v4201
  %v4465 = vunpack.c.l.b16 %v4202
  %v4466 = vunpack.c.l.b16 %v4203
  %v4467 = vunpack.c.l.b16 %v4204
  %v4468 = vunpack.c.l.b16 %v4205
  %v4469 = vunpack.c.l.b16 %v4206
  %v4470 = vunpack.c.l.b16 %v4207
  %v4471 = vunpack.c.l.b16 %v4208
  %v4472 = vunpack.c.l.b16 %v4209
  %v4473 = vunpack.c.l.b16 %v4210
  %v4474 = vunpack.c.l.b16 %v4211
  %v4475 = vunpack.c.l.b16 %v4212
  %v4476 = vunpack.c.l.b16 %v4213
  %v4477 = vunpack.c.l.b16 %v4214
  %v4478 = vunpack.c.l.b16 %v4215
  %v4479 = vunpack.c.l.b16 %v4216
  %v4480 = vunpack.c.l.b16 %v4217
  %v4481 = vunpack.c.l.b16 %v4218
  %v4482 = vunpack.c.l.b16 %v4219
  %v4483 = vunpack.c.l.b16 %v4220
  %v4484 = vunpack.c.l.b16 %v4221
  %v4485 = vunpack.c.l.b16 %v4222
  %v4486 = vunpack.c.l.b16 %v4223
  %v4487 = vunpack.c.l.b16 %v4224
  %v4488 = vunpack.c.l.b16 %v4225
  %v4489 = vunpack.c.l.b16 %v4226
  %v4490 = vunpack.c.l.b16 %v4227
  %v4491 = vunpack.c.l.b16 %v4228
  %v4492 = vunpack.c.l.b16 %v4229
  %v4493 = vunpack.c.l.b16 %v4230
  %v4494 = vunpack.c.l.b16 %v4231
  %v4495 = vunpack.c.l.b16 %v4232
  %v4496 = vunpack.c.l.b16 %v4233
  %v4497 = vunpack.c.l.b16 %v4234
  %v4498 = vunpack.c.l.b16 %v4235
  %v4499 = vunpack.c.l.b16 %v4236
  %v4500 = vunpack.c.l.b16 %v4237
  %v4501 = vunpack.c.l.b16 %v4238
  %v4502 = vunpack.c.l.b16 %v4239
  %v4503 = vunpack.c.l.b16 %v4240
  %v4504 = vunpack.c.l.b16 %v4241
  %v4505 = vunpack.c.l.b16 %v4242
  %v4506 = vunpack.c.l.b16 %v4243
  %v4507 = vunpack.c.l.b16 %v4244
  %v4508 = vunpack.c.l.b16 %v4245
  %v4509 = vunpack.c.l.b16 %v4246
  %v4510 = vunpack.c.l.b16 %v4247
  %v4511 = vunpack.c.l.b16 %v4248
  %v4512 = vunpack.c.l.b16 %v4249
  %v4513 = vunpack.c.l.b16 %v4250
  %v4514 = vunpack.c.l.b16 %v4251
  %v4515 = vunpack.c.l.b16 %v4252
  %v4516 = vunpack.c.l.b16 %v4253
  %v4517 = vunpack.c.l.b16 %v4254
  %v4518 = vunpack.c.l.b16 %v4255
  %v4519 = vunpack.c.l.b16 %v4256
  %v4520 = vunpack.c.l.b16 %v4257
  %v4521 = vunpack.c.l.b16 %v4258
  %v4522 = vunpack.c.l.b16 %v4259
  %v4523 = vunpack.c.l.b16 %v4260
  %v4524 = vunpack.c.l.b16 %v4261
  %v4525 = vunpack.c.l.b16 %v4262
  %v4526 = vunpack.c.l.b16 %v4263
  %v4527 = vunpack.c.l.b16 %v4264
  %v4528 = vunpack.c.l.b16 %v4265
  %v4529 = vunpack.c.l.b16 %v4266
  %v4530 = vunpack.c.l.b16 %v4267
  %v4531 = vunpack.c.l.b16 %v4268
  %v4532 = vunpack.c.l.b16 %v4269
  %v4533 = vunpack.c.l.b16 %v4270
  %v4534 = vunpack.c.l.b16 %v4271
  %v4535 = vunpack.c.l.b16 %v4272
  %v4536 = vunpack.c.l.b16 %v4273
  %v4537 = vunpack.c.l.b16 %v4274
  %v4538 = vunpack.c.l.b16 %v4275
  %v4539 = vunpack.c.l.b16 %v4276
  %v4540 = vunpack.c.l.b16 %v4277
  %v4541 = vunpack.c.l.b16 %v4278
  %v4542 = vunpack.c.l.b16 %v4279
  %v4543 = vunpack.c.l.b16 %v4280
  %v4544 = vunpack.c.l.b16 %v4281
  %v4545 = vunpack.c.l.b16 %v4282
  %v4546 = vunpack.c.l.b16 %v4283
  %v4547 = vunpack.c.l.b16 %v4284
  %v4548 = vunpack.c.l.b16 %v4285
  %v4549 = vunpack.c.l.b16 %v4286
  %v4550 = vunpack.c.l.b16 %v4287
  %v4551 = vunpack.c.l.b16 %v4288
  %v4552 = vunpack.c.l.b16 %v4289
  %v4553 = vunpack.c.l.b16 %v4290
  %v4554 = vunpack.c.l.b16 %v4291
  %v4555 = vunpack.c.l.b16 %v4292
  %v4556 = vunpack.c.l.b16 %v4293
  %v4557 = vunpack.c.l.b16 %v4294
  %v4558 = vunpack.c.l.b16 %v4295
  %v4559 = vunpack.c.l.b16 %v4296
  %v4560 = vunpack.c.l.b16 %v4297
  %v4561 = vunpack.c.l.b16 %v4298
  %v4562 = vunpack.c.l.b16 %v4299
  %v4563 = vunpack.c.l.b16 %v4300
  %v4564 = vunpack.c.l.b16 %v4301
  %v4565 = vunpack.c.l.b16 %v4302
  %v4566 = vunpack.c.l.b16 %v4303
  %v4567 = vunpack.c.l.b16 %v4304
  %v4568 = vunpack.c.l.b16 %v4305
  %v4569 = vunpack.c.l.b16 %v4306
  %v4570 = vunpack.c.l.b16 %v4307
  %v4571 = vunpack.c.l.b16 %v4308
  %v4572 = vunpack.c.l.b16 %v4309
  %v4573 = vunpack.c.l.b16 %v4310
  %v4574 = vunpack.c.l.b16 %v4311
  %v4575 = vunpack.c.l.b16 %v4312
  %v4576 = vunpack.c.l.b16 %v4313
  %v4577 = vunpack.c.l.b16 %v4314
  %v4578 = vunpack.c.l.b16 %v4315
  %v4579 = vunpack.c.l.b16 %v4316
  %v4580 = vunpack.c.l.b16 %v4317
  %v4581 = vunpack.c.l.b16 %v4318
  %v4582 = vunpack.c.l.b16 %v4319
  %v4583 = vunpack.c.l.b16 %v4320
  %v4584 = vunpack.c.l.b16 %v4321
  %v4585 = vunpack.c.l.b16 %v4322
  %v4586 = vunpack.c.l.b16 %v4323
  %v4587 = vunpack.c.l.b16 %v4324
  %v4588 = vunpack.c.l.b16 %v4325
  %v4589 = vunpack.c.l.b16 %v4326
  %v4590 = vunpack.c.l.b16 %v4327
  %v4591 = vpack.c.b16 %v4464, %v4463
  %v4592 = vpack.c.b16 %v4466, %v4465
  %v4593 = vpack.c.b16 %v4468, %v4467
  %v4594 = vpack.c.b16 %v4470, %v4469
  %v4595 = vpack.c.b16 %v4472, %v4471
  %v4596 = vpack.c.b16 %v4474, %v4473
  %v4597 = vpack.c.b16 %v4476, %v4475
  %v4598 = vpack.c.b16 %v4478, %v4477
  %v4599 = vpack.c.b16 %v4480, %v4479
  %v4600 = vpack.c.b16 %v4482, %v4481
  %v4601 = vpack.c.b16 %v4484, %v4483
  %v4602 = vpack.c.b16 %v4486, %v4485
  %v4603 = vpack.c.b16 %v4488, %v4487
  %v4604 = vpack.c.b16 %v4490, %v4489
  %v4605 = vpack.c.b16 %v4492, %v4491
  %v4606 = vpack.c.b16 %v4494, %v4493
  %v4607 = vpack.c.b16 %v4496, %v4495
  %v4608 = vpack.c.b16 %v4498, %v4497
  %v4609 = vpack.c.b16 %v4500, %v4499
  %v4610 = vpack.c.b16 %v4502, %v4501
  %v4611 = vpack.c.b16 %v4504, %v4503
  %v4612 = vpack.c.b16 %v4506, %v4505
  %v4613 = vpack.c.b16 %v4508, %v4507
  %v4614 = vpack.c.b16 %v4510, %v4509
  %v4615 = vpack.c.b16 %v4512, %v4511
  %v4616 = vpack.c.b16 %v4514, %v4513
  %v4617 = vpack.c.b16 %v4516, %v4515
  %v4618 = vpack.c.b16 %v4518, %v4517
  %v4619 = vpack.c.b16 %v4520, %v4519
  %v4620 = vpack.c.b16 %v4522, %v4521
  %v4621 = vpack.c.b16 %v4524, %v4523
  %v4622 = vpack.c.b16 %v4526, %v4525
  %v4623 = vpack.c.b16 %v4528, %v4527
  %v4624 = vpack.c.b16 %v4530, %v4529
  %v4625 = vpack.c.b16 %v4532, %v4531
  %v4626 = vpack.c.b16 %v4534, %v4533
  %v4627 = vpack.c.b16 %v4536, %v4535
  %v4628 = vpack.c.b16 %v4538, %v4537
  %v4629 = vpack.c.b16 %v4540, %v4539
  %v4630 = vpack.c.b16 %v4542, %v4541
  %v4631 = vpack.c.b16 %v4544, %v4543
  %v4632 = vpack.c.b16 %v4546, %v4545
  %v4633 = vpack.c.b16 %v4548, %v4547
  %v4634 = vpack.c.b16 %v4550, %v4549
  %v4635 = vpack.c.b16 %v4552, %v4551
  %v4636 = vpack.c.b16 %v4554, %v4553
  %v4637 = vpack.c.b16 %v4556, %v4555
  %v4638 = vpack.c.b16 %v4558, %v4557
  %v4639 = vpack.c.b16 %v4560, %v4559
  %v4640 = vpack.c.b16 %v4562, %v4561
  %v4641 = vpack.c.b16 %v4564, %v4563
  %v4642 = vpack.c.b16 %v4566, %v4565
  %v4643 = vpack.c.b16 %v4568, %v4567
  %v4644 = vpack.c.b16 %v4570, %v4569
  %v4645 = vpack.c.b16 %v4572, %v4571
  %v4646 = vpack.c.b16 %v4574, %v4573
  %v4647 = vpack.c.b16 %v4576, %v4575
  %v4648 = vpack.c.b16 %v4578, %v4577
  %v4649 = vpack.c.b16 %v4580, %v4579
  %v4650 = vpack.c.b16 %v4582, %v4581
  %v4651 = vpack.c.b16 %v4584, %v4583
  %v4652 = vpack.c.b16 %v4586, %v4585
  %v4653 = vpack.c.b16 %v4588, %v4587
  %v4654 = vpack.c.b16 %v4590, %v4589
  %4719 = vmatprep.subr.bf16.mxu0 0
  %4720 = vmatpush1.bf16.msra.mxu0 %v4591
  %4721 = vmatprep.subr.bf16.mxu0 0
  %4722 = vmatpush1.bf16.msra.mxu0 %v4592
  %4723 = vmatprep.subr.bf16.mxu0 0
  %4724 = vmatpush1.bf16.msra.mxu0 %v4593
  %4725 = vmatprep.subr.bf16.mxu0 0
  %4726 = vmatpush1.bf16.msra.mxu0 %v4594
  %4727 = vmatprep.subr.bf16.mxu0 0
  %4728 = vmatpush1.bf16.msra.mxu0 %v4595
  %4729 = vmatprep.subr.bf16.mxu0 0
  %4730 = vmatpush1.bf16.msra.mxu0 %v4596
  %4731 = vmatprep.subr.bf16.mxu0 0
  %4732 = vmatpush1.bf16.msra.mxu0 %v4597
  %4733 = vmatprep.subr.bf16.mxu0 0
  %4734 = vmatpush1.bf16.msra.mxu0 %v4598
  %4735 = vmatprep.subr.bf16.mxu0 0
  %4736 = vmatpush1.bf16.msra.mxu0 %v4599
  %4737 = vmatprep.subr.bf16.mxu0 0
  %4738 = vmatpush1.bf16.msra.mxu0 %v4600
  %4739 = vmatprep.subr.bf16.mxu0 0
  %4740 = vmatpush1.bf16.msra.mxu0 %v4601
  %4741 = vmatprep.subr.bf16.mxu0 0
  %4742 = vmatpush1.bf16.msra.mxu0 %v4602
  %4743 = vmatprep.subr.bf16.mxu0 0
  %4744 = vmatpush1.bf16.msra.mxu0 %v4603
  %4745 = vmatprep.subr.bf16.mxu0 0
  %4746 = vmatpush1.bf16.msra.mxu0 %v4604
  %4747 = vmatprep.subr.bf16.mxu0 0
  %4748 = vmatpush1.bf16.msra.mxu0 %v4605
  %4749 = vmatprep.subr.bf16.mxu0 0
  %4750 = vmatpush1.bf16.msra.mxu0 %v4606
  %4751 = vmatprep.mubr.bf16.mxu0 %v4193
  %4752 = vmatmul.mubr.bf16.gmra.mrb[0].mxu0 %v4192
  %v4753 = vpop.f32.mrb[0].mxu0
  %v4754 = vadd.f32 %v4333, %v4753
  %v4755 = vpop.f32.mrb[0].mxu0
  %v4756 = vpop.f32.mrb[0].mxu0
  %v4757 = vadd.f32 %v4333, %v4756
  %v4758 = vpop.f32.mrb[0].mxu0
  %4759 = vdwg.mxu0
  %4760 = vmatprep.subr.bf16.mxu0 0
  %4761 = vmatpush1.bf16.msra.mxu0 %v4607
  %4762 = vmatprep.subr.bf16.mxu0 0
  %4763 = vmatpush1.bf16.msra.mxu0 %v4608
  %4764 = vmatprep.subr.bf16.mxu0 0
  %4765 = vmatpush1.bf16.msra.mxu0 %v4609
  %4766 = vmatprep.subr.bf16.mxu0 0
  %4767 = vmatpush1.bf16.msra.mxu0 %v4610
  %4768 = vmatprep.subr.bf16.mxu0 0
  %4769 = vmatpush1.bf16.msra.mxu0 %v4611
  %4770 = vmatprep.subr.bf16.mxu0 0
  %4771 = vmatpush1.bf16.msra.mxu0 %v4612
  %4772 = vmatprep.subr.bf16.mxu0 0
  %4773 = vmatpush1.bf16.msra.mxu0 %v4613
  %4774 = vmatprep.subr.bf16.mxu0 0
  %4775 = vmatpush1.bf16.msra.mxu0 %v4614
  %4776 = vmatprep.subr.bf16.mxu0 0
  %4777 = vmatpush1.bf16.msra.mxu0 %v4615
  %4778 = vmatprep.subr.bf16.mxu0 0
  %4779 = vmatpush1.bf16.msra.mxu0 %v4616
  %4780 = vmatprep.subr.bf16.mxu0 0
  %4781 = vmatpush1.bf16.msra.mxu0 %v4617
  %4782 = vmatprep.subr.bf16.mxu0 0
  %4783 = vmatpush1.bf16.msra.mxu0 %v4618
  %4784 = vmatprep.subr.bf16.mxu0 0
  %4785 = vmatpush1.bf16.msra.mxu0 %v4619
  %4786 = vmatprep.subr.bf16.mxu0 0
  %4787 = vmatpush1.bf16.msra.mxu0 %v4620
  %4788 = vmatprep.subr.bf16.mxu0 0
  %4789 = vmatpush1.bf16.msra.mxu0 %v4621
  %4790 = vmatprep.subr.bf16.mxu0 0
  %4791 = vmatpush1.bf16.msra.mxu0 %v4622
  %4792 = vmatprep.mubr.bf16.mxu0 %v4195
  %4793 = vmatmul.mubr.bf16.gmra.mrb[0].mxu0 %v4194
  %v4794 = vpop.f32.mrb[0].mxu0
  %v4795 = vadd.f32 %v4754, %v4794
  %v4796 = vpop.f32.mrb[0].mxu0
  %v4797 = vpop.f32.mrb[0].mxu0
  %v4798 = vadd.f32 %v4757, %v4797
  %v4799 = vpop.f32.mrb[0].mxu0
  %4800 = vdwg.mxu0
  %4801 = vmatprep.subr.bf16.mxu0 0
  %4802 = vmatpush1.bf16.msra.mxu0 %v4623
  %4803 = vmatprep.subr.bf16.mxu0 0
  %4804 = vmatpush1.bf16.msra.mxu0 %v4624
  %4805 = vmatprep.subr.bf16.mxu0 0
  %4806 = vmatpush1.bf16.msra.mxu0 %v4625
  %4807 = vmatprep.subr.bf16.mxu0 0
  %4808 = vmatpush1.bf16.msra.mxu0 %v4626
  %4809 = vmatprep.subr.bf16.mxu0 0
  %4810 = vmatpush1.bf16.msra.mxu0 %v4627
  %4811 = vmatprep.subr.bf16.mxu0 0
  %4812 = vmatpush1.bf16.msra.mxu0 %v4628
  %4813 = vmatprep.subr.bf16.mxu0 0
  %4814 = vmatpush1.bf16.msra.mxu0 %v4629
  %4815 = vmatprep.subr.bf16.mxu0 0
  %4816 = vmatpush1.bf16.msra.mxu0 %v4630
  %4817 = vmatprep.subr.bf16.mxu0 0
  %4818 = vmatpush1.bf16.msra.mxu0 %v4631
  %4819 = vmatprep.subr.bf16.mxu0 0
  %4820 = vmatpush1.bf16.msra.mxu0 %v4632
  %4821 = vmatprep.subr.bf16.mxu0 0
  %4822 = vmatpush1.bf16.msra.mxu0 %v4633
  %4823 = vmatprep.subr.bf16.mxu0 0
  %4824 = vmatpush1.bf16.msra.mxu0 %v4634
  %4825 = vmatprep.subr.bf16.mxu0 0
  %4826 = vmatpush1.bf16.msra.mxu0 %v4635
  %4827 = vmatprep.subr.bf16.mxu0 0
  %4828 = vmatpush1.bf16.msra.mxu0 %v4636
  %4829 = vmatprep.subr.bf16.mxu0 0
  %4830 = vmatpush1.bf16.msra.mxu0 %v4637
  %4831 = vmatprep.subr.bf16.mxu0 0
  %4832 = vmatpush1.bf16.msra.mxu0 %v4638
  %4833 = vmatprep.mubr.bf16.mxu0 %v4197
  %4834 = vmatmul.mubr.bf16.gmra.mrb[0].mxu0 %v4196
  %v4835 = vpop.f32.mrb[0].mxu0
  %v4836 = vadd.f32 %v4795, %v4835
  %v4837 = vpop.f32.mrb[0].mxu0
  %v4838 = vpop.f32.mrb[0].mxu0
  %v4839 = vadd.f32 %v4798, %v4838
  %v4840 = vpop.f32.mrb[0].mxu0
  %4841 = vdwg.mxu0
  %4842 = vmatprep.subr.bf16.mxu0 0
  %4843 = vmatpush1.bf16.msra.mxu0 %v4639
  %4844 = vmatprep.subr.bf16.mxu0 0
  %4845 = vmatpush1.bf16.msra.mxu0 %v4640
  %4846 = vmatprep.subr.bf16.mxu0 0
  %4847 = vmatpush1.bf16.msra.mxu0 %v4641
  %4848 = vmatprep.subr.bf16.mxu0 0
  %4849 = vmatpush1.bf16.msra.mxu0 %v4642
  %4850 = vmatprep.subr.bf16.mxu0 0
  %4851 = vmatpush1.bf16.msra.mxu0 %v4643
  %4852 = vmatprep.subr.bf16.mxu0 0
  %4853 = vmatpush1.bf16.msra.mxu0 %v4644
  %4854 = vmatprep.subr.bf16.mxu0 0
  %4855 = vmatpush1.bf16.msra.mxu0 %v4645
  %4856 = vmatprep.subr.bf16.mxu0 0
  %4857 = vmatpush1.bf16.msra.mxu0 %v4646
  %4858 = vmatprep.subr.bf16.mxu0 0
  %4859 = vmatpush1.bf16.msra.mxu0 %v4647
  %4860 = vmatprep.subr.bf16.mxu0 0
  %4861 = vmatpush1.bf16.msra.mxu0 %v4648
  %4862 = vmatprep.subr.bf16.mxu0 0
  %4863 = vmatpush1.bf16.msra.mxu0 %v4649
  %4864 = vmatprep.subr.bf16.mxu0 0
  %4865 = vmatpush1.bf16.msra.mxu0 %v4650
  %4866 = vmatprep.subr.bf16.mxu0 0
  %4867 = vmatpush1.bf16.msra.mxu0 %v4651
  %4868 = vmatprep.subr.bf16.mxu0 0
  %4869 = vmatpush1.bf16.msra.mxu0 %v4652
  %4870 = vmatprep.subr.bf16.mxu0 0
  %4871 = vmatpush1.bf16.msra.mxu0 %v4653
  %4872 = vmatprep.subr.bf16.mxu0 0
  %4873 = vmatpush1.bf16.msra.mxu0 %v4654
  %4874 = vmatprep.mubr.bf16.mxu0 %v4199
  %4875 = vmatmul.mubr.bf16.gmra.mrb[0].mxu0 %v4198
  %v4876 = vpop.f32.mrb[0].mxu0
  %v4877 = vadd.f32 %v4836, %v4876
  %v4878 = vpop.f32.mrb[0].mxu0
  %v4879 = vpop.f32.mrb[0].mxu0
  %v4880 = vadd.f32 %v4839, %v4879
  %v4881 = vpop.f32.mrb[0].mxu0
  %4882 = vdwg.mxu0
  %4883 = vst [vmem:[%s8] sm:$0xff] %v4877
  %4884 = vst [vmem:[%s8 + $0x8] sm:$0xff] %v4880
  %4885 = vmax.xlane.f32.xlu0 %v4877
  %v4886 = vpop.xlane.xlu0 %4885
  %4887 = vmax.xlane.f32.xlu0 %v4880
  %v4888 = vpop.xlane.xlu0 %4887
  %v4889 = vsub.f32 %v4877, %v4886
  %v4890 = vsub.f32 %v4880, %v4888
  %v4891 = vmul.f32 %v4889, 1.442695
  %v4892 = vpow.pop %v4891
  %v4893 = vmul.f32 %v4890, 1.442695
  %v4894 = vpow.pop %v4893
  %4895 = vadd.xlane.f32.xlu0 %v4892
  %v4896 = vpop.xlane.xlu0 %4895
  %4897 = vadd.xlane.f32.xlu0 %v4894
  %v4898 = vpop.xlane.xlu0 %4897
  %v4899 = vrcp.pop %v4896
  %v4900 = vmul.f32 %v4892, %v4899
  %v4901 = vrcp.pop %v4898
  %v4902 = vmul.f32 %v4894, %v4901
  %4903 = vst [vmem:[%s7] sm:$0xff] %v4900
  %4904 = vst [vmem:[%s7 + $0x8] sm:$0xff] %v4902
  // Predicated region
  $region30: #{topology_extraction_forward.3} parent=0 // pred_check
    _
  $region31: #{topology_extraction_forward.3} parent=0 // pred_check_branch
    %4906 = sbr.rel (0) target = $region33
  $region32: #{topology_extraction_forward.3} parent=0 // pred_region
    _
  $region33: #{topology_extraction_forward.3} parent=0 // pred_fallthru
    _
  // Predicated region
  $region34: #{topology_extraction_forward.3} parent=0 // pred_check
    _
  $region35: #{topology_extraction_forward.3} parent=0 // pred_check_branch
    %4908 = sbr.rel (0) target = $region37
  $region36: #{topology_extraction_forward.3} parent=0 // pred_region
    _
  $region37: #{topology_extraction_forward.3} parent=0 // pred_fallthru
    _
  // Predicated region
  $region38: #{topology_extraction_forward.3} parent=0 // pred_check
    _
  $region39: #{topology_extraction_forward.3} parent=0 // pred_check_branch
    %4910 = sbr.rel (0) target = $region41
  $region40: #{topology_extraction_forward.3} parent=0 // pred_region
    _
  $region41: #{topology_extraction_forward.3} parent=0 // pred_fallthru
    _
  // Predicated region
  $region42: #{topology_extraction_forward.3} parent=0 // pred_check
    _
  $region43: #{topology_extraction_forward.3} parent=0 // pred_check_branch
    %4912 = sbr.rel (0) target = $region45
  $region44: #{topology_extraction_forward.3} parent=0 // pred_region
    _
  $region45: #{topology_extraction_forward.3} parent=0 // pred_fallthru
    _

</llo_original>
